<compile_context>
chip_gen: v7x
topology: tpu7x:2x2x1
jax: 0.10.0
libtpu: 0.0.40
codegen_flags: <defaults>
</compile_context>

<pallas_src>
import math

import jax
import jax.numpy as jnp
from jax.experimental import pallas as pl
from jax.experimental.pallas import tpu as pltpu


# ---------------------------------------------------------------------------
# fused nearest-2x upsample + 3x3 "same" conv   (use_conv=True path)
# ---------------------------------------------------------------------------

def _upsample_conv_kernel(xp_ref, k_ref, b_ref, o_ref):
    # xp_ref: (H+2, W+2, C)   zero-padded NHWC input, one batch element
    # k_ref : (16, C, C)      parity-combined 2x2 tap weights (see _phase_weights)
    # b_ref : (1, C)          bias (float32)
    # o_ref : (4, H, W, C)    parity planes: o[2*py+px, h, w, :] = out[2h+py, 2w+px, :]
    _, H, W, C = o_ref.shape

    # Load the 9 shifted (H, W, C) windows once, flattened to (H*W, C) so each
    # conv tap is a single big lane-dense MXU matmul.
    wins = [[xp_ref[r:r + H, c:c + W, :].reshape(H * W, C) for c in range(3)]
            for r in range(3)]
    bias = b_ref[...]                                           # (1, C) f32

    for py in range(2):
        for px in range(2):
            acc = jnp.zeros((H * W, C), jnp.float32)
            for ta in range(2):
                for tb in range(2):
                    k = k_ref[((py * 2 + px) * 2 + ta) * 2 + tb]   # (C, C)
                    acc = acc + jnp.dot(wins[py + ta][px + tb], k,
                                        preferred_element_type=jnp.float32)
            acc = acc + bias
            o_ref[py * 2 + px] = acc.reshape(H, W, C).astype(o_ref.dtype)


def _phase_weights(w_oihw):
    """(C,C,3,3) torch-layout conv weight -> (16, Cin, Cout) parity-summed 2x2 taps."""
    w = jnp.transpose(w_oihw, (2, 3, 1, 0))          # (3, 3, Cin, Cout)  HWIO
    # parity 0: taps at offsets {-1}, {0} combine kernel rows {0}, {1,2}
    # parity 1: taps at offsets {0}, {+1} combine kernel rows {0,1}, {2}
    groups = (((0,), (1, 2)), ((0, 1), (2,)))
    taps = []
    for py in range(2):
        for px in range(2):
            for ta in range(2):
                for tb in range(2):
                    acc = None
                    for ky in groups[py][ta]:
                        for kx in groups[px][tb]:
                            acc = w[ky, kx] if acc is None else acc + w[ky, kx]
                    taps.append(acc)
    return jnp.stack(taps, axis=0)                    # (16, Cin, Cout)


@jax.jit
def upsample_conv2x(x, conv_w, conv_b):
    """x: (B,C,H,W); conv_w: (C,C,3,3) torch OIHW; conv_b: (C,). -> (B,C,2H,2W)."""
    B, C, H, W = x.shape
    x_nhwc = jnp.transpose(x, (0, 2, 3, 1))
    xp = jnp.pad(x_nhwc, ((0, 0), (1, 1), (1, 1), (0, 0)))
    keff = _phase_weights(conv_w).astype(x.dtype)     # (16, C, C), VMEM-resident
    b2d = conv_b.reshape(1, C).astype(jnp.float32)

    out_ph = pl.pallas_call(
        _upsample_conv_kernel,
        out_shape=jax.ShapeDtypeStruct((B, 4, H, W, C), x.dtype),
        grid_spec=pltpu.PrefetchScalarGridSpec(
            num_scalar_prefetch=0,
            grid=(B,),
            in_specs=[
                pl.BlockSpec((None, H + 2, W + 2, C), lambda i: (i, 0, 0, 0)),
                pl.BlockSpec((16, C, C), lambda i: (0, 0, 0)),   # stays resident
                pl.BlockSpec((1, C), lambda i: (0, 0)),          # stays resident
            ],
            out_specs=pl.BlockSpec((None, 4, H, W, C),
                                   lambda i: (i, 0, 0, 0, 0)),
        ),
        compiler_params=pltpu.CompilerParams(
            dimension_semantics=("parallel",),
        ),
    )(xp, keff, b2d)

    # Interleave parity planes back:  (B,4,H,W,C) -> (B,2H,2W,C) -> NCHW.
    out = out_ph.reshape(B, 2, 2, H, W, C)
    out = jnp.transpose(out, (0, 3, 1, 4, 2, 5)).reshape(B, 2 * H, 2 * W, C)
    return jnp.transpose(out, (0, 3, 1, 2))


# ---------------------------------------------------------------------------
# pure nearest-neighbor 2x upsample   (use_conv=False path)
# ---------------------------------------------------------------------------

def _upsample_nearest_kernel(x_ref, o_ref):
    v = x_ref[...]
    for p in range(4):          # 4 parity planes, all copies of the input tile
        o_ref[p] = v


def _pick_row_tile(m, limit=1024):
    if m <= limit:
        return m
    for t in (1024, 512, 256, 128, 64, 32, 16, 8):
        if m % t == 0:
            return t
    return m                    # fall back: single full-extent block


@jax.jit
def upsample_nearest2x(x):
    """x: (B,C,H,W) -> nearest-neighbor 2x upsample, (B,C,2H,2W)."""
    B, C, H, W = x.shape
    m = B * C * H
    tm = _pick_row_tile(m)
    x2d = x.reshape(m, W)
    out = pl.pallas_call(
        _upsample_nearest_kernel,
        out_shape=jax.ShapeDtypeStruct((4, m, W), x.dtype),
        grid_spec=pltpu.PrefetchScalarGridSpec(
            num_scalar_prefetch=0,
            grid=(m // tm,),
            in_specs=[pl.BlockSpec((tm, W), lambda i: (i, 0))],
            out_specs=pl.BlockSpec((4, tm, W), lambda i: (0, i, 0)),
        ),
        compiler_params=pltpu.CompilerParams(
            dimension_semantics=("parallel",),
        ),
    )(x2d)
    out = out.reshape(2, 2, B, C, H, W)
    out = jnp.transpose(out, (2, 3, 4, 0, 5, 1))      # (B, C, H, 2, W, 2)
    return out.reshape(B, C, 2 * H, 2 * W)


# ---------------------------------------------------------------------------
# module-level forward (mirrors Upsample.forward)
# ---------------------------------------------------------------------------

def upsample_forward(x, channels, use_conv, dims=2, conv_w=None, conv_b=None):
    assert x.shape[1] == channels
    if dims != 2:
        # TODO(synk): dims=1 and dims=3 (Conv1d/Conv3d) variants are not implemented.
        raise NotImplementedError("only dims=2 is implemented")
    if use_conv:
        return upsample_conv2x(x, conv_w, conv_b)
    return upsample_nearest2x(x)


# ---------------------------------------------------------------------------
# pure-JAX references + demo
# ---------------------------------------------------------------------------

def _ref_upsample(x):
    return jnp.repeat(jnp.repeat(x, 2, axis=2), 2, axis=3)


def _ref_forward(x, use_conv, conv_w=None, conv_b=None):
    y = _ref_upsample(x)
    if not use_conv:
        return y
    y_nhwc = jnp.transpose(y, (0, 2, 3, 1))
    w_hwio = jnp.transpose(conv_w, (2, 3, 1, 0))
    o = jax.lax.conv_general_dilated(
        y_nhwc, w_hwio, window_strides=(1, 1), padding=((1, 1), (1, 1)),
        dimension_numbers=("NHWC", "HWIO", "NHWC"),
        precision=jax.lax.Precision.HIGHEST)
    o = o + conv_b.reshape(1, 1, 1, -1)
    return jnp.transpose(o, (0, 3, 1, 2))


if __name__ == "__main__":
    B, C, H, W = 2, 32, 16, 16

    key = jax.random.PRNGKey(0)
    kx, kw, kb = jax.random.split(key, 3)

    x = jax.random.normal(kx, (B, C, H, W), dtype=jnp.float32)
    # Conv2d(C, C, 3) default init bounds: U(-1/sqrt(fan_in), 1/sqrt(fan_in))
    bound = 1.0 / math.sqrt(C * 3 * 3)
    conv_w = jax.random.uniform(kw, (C, C, 3, 3), jnp.float32, -bound, bound)
    conv_b = jax.random.uniform(kb, (C,), jnp.float32, -bound, bound)

    # use_conv=True: fused upsample + 3x3 conv kernel
    out = upsample_forward(x, C, True, 2, conv_w, conv_b)
    out = jax.block_until_ready(out)
    ref = _ref_forward(x, True, conv_w, conv_b)
    assert out.shape == (B, C, 2 * H, 2 * W)
    assert jnp.allclose(out, ref, atol=1e-4, rtol=1e-4), "conv path mismatch"

    # use_conv=False: pure nearest-neighbor upsample kernel
    out_nc = jax.block_until_ready(upsample_forward(x, C, False))
    assert out_nc.shape == (B, C, 2 * H, 2 * W)
    assert jnp.array_equal(out_nc, _ref_upsample(x)), "nearest path mismatch"

    print("KERNEL_OK")
</pallas_src>

<mosaic_0001>
module attributes {stable_mosaic.version = 11 : i64} {
  func.func @_upsample_conv_kernel(%arg0: i32, %arg1: memref<1x18x18x32xf32, #tpu.memory_space<vmem>>, %arg2: memref<16x32x32xf32, #tpu.memory_space<vmem>>, %arg3: memref<1x32xf32, #tpu.memory_space<vmem>>, %arg4: memref<1x4x16x16x32xf32, #tpu.memory_space<vmem>>) attributes {dimension_semantics = [#tpu.dimension_semantics<parallel>], iteration_bounds = array<i64: 2>, scalar_prefetch = 0 : i64, scratch_operands = 0 : i64, tpu.core_type = #tpu.core_type<tc>, window_params = [{transform_indices = @transform_0, window_bounds = array<i64: 1, 18, 18, 32>}, {pipeline_mode = #tpu.pipeline_mode<synchronous>, transform_indices = @transform_1, window_bounds = array<i64: 16, 32, 32>}, {pipeline_mode = #tpu.pipeline_mode<synchronous>, transform_indices = @transform_2, window_bounds = array<i64: 1, 32>}, {transform_indices = @transform_3, window_bounds = array<i64: 1, 4, 16, 16, 32>}]} {
    %c0 = arith.constant 0 : index
    %c0_0 = arith.constant 0 : index
    %c0_1 = arith.constant 0 : index
    %c0_2 = arith.constant 0 : index
    %0 = vector.load %arg1[%c0, %c0_0, %c0_1, %c0_2] : memref<1x18x18x32xf32, #tpu.memory_space<vmem>>, vector<1x16x16x32xf32>
    %1 = vector.shape_cast %0 : vector<1x16x16x32xf32> to vector<16x16x32xf32>
    %2 = vector.shape_cast %1 : vector<16x16x32xf32> to vector<256x32xf32>
    %c0_3 = arith.constant 0 : index
    %c0_4 = arith.constant 0 : index
    %c1 = arith.constant 1 : index
    %c0_5 = arith.constant 0 : index
    %3 = vector.load %arg1[%c0_3, %c0_4, %c1, %c0_5] : memref<1x18x18x32xf32, #tpu.memory_space<vmem>>, vector<1x16x16x32xf32>
    %4 = vector.shape_cast %3 : vector<1x16x16x32xf32> to vector<16x16x32xf32>
    %5 = vector.shape_cast %4 : vector<16x16x32xf32> to vector<256x32xf32>
    %c0_6 = arith.constant 0 : index
    %c0_7 = arith.constant 0 : index
    %c2 = arith.constant 2 : index
    %c0_8 = arith.constant 0 : index
    %6 = vector.load %arg1[%c0_6, %c0_7, %c2, %c0_8] : memref<1x18x18x32xf32, #tpu.memory_space<vmem>>, vector<1x16x16x32xf32>
    %7 = vector.shape_cast %6 : vector<1x16x16x32xf32> to vector<16x16x32xf32>
    %8 = vector.shape_cast %7 : vector<16x16x32xf32> to vector<256x32xf32>
    %c0_9 = arith.constant 0 : index
    %c1_10 = arith.constant 1 : index
    %c0_11 = arith.constant 0 : index
    %c0_12 = arith.constant 0 : index
    %9 = vector.load %arg1[%c0_9, %c1_10, %c0_11, %c0_12] : memref<1x18x18x32xf32, #tpu.memory_space<vmem>>, vector<1x16x16x32xf32>
    %10 = vector.shape_cast %9 : vector<1x16x16x32xf32> to vector<16x16x32xf32>
    %11 = vector.shape_cast %10 : vector<16x16x32xf32> to vector<256x32xf32>
    %c0_13 = arith.constant 0 : index
    %c1_14 = arith.constant 1 : index
    %c1_15 = arith.constant 1 : index
    %c0_16 = arith.constant 0 : index
    %12 = vector.load %arg1[%c0_13, %c1_14, %c1_15, %c0_16] : memref<1x18x18x32xf32, #tpu.memory_space<vmem>>, vector<1x16x16x32xf32>
    %13 = vector.shape_cast %12 : vector<1x16x16x32xf32> to vector<16x16x32xf32>
    %14 = vector.shape_cast %13 : vector<16x16x32xf32> to vector<256x32xf32>
    %c0_17 = arith.constant 0 : index
    %c1_18 = arith.constant 1 : index
    %c2_19 = arith.constant 2 : index
    %c0_20 = arith.constant 0 : index
    %15 = vector.load %arg1[%c0_17, %c1_18, %c2_19, %c0_20] : memref<1x18x18x32xf32, #tpu.memory_space<vmem>>, vector<1x16x16x32xf32>
    %16 = vector.shape_cast %15 : vector<1x16x16x32xf32> to vector<16x16x32xf32>
    %17 = vector.shape_cast %16 : vector<16x16x32xf32> to vector<256x32xf32>
    %c0_21 = arith.constant 0 : index
    %c2_22 = arith.constant 2 : index
    %c0_23 = arith.constant 0 : index
    %c0_24 = arith.constant 0 : index
    %18 = vector.load %arg1[%c0_21, %c2_22, %c0_23, %c0_24] : memref<1x18x18x32xf32, #tpu.memory_space<vmem>>, vector<1x16x16x32xf32>
    %19 = vector.shape_cast %18 : vector<1x16x16x32xf32> to vector<16x16x32xf32>
    %20 = vector.shape_cast %19 : vector<16x16x32xf32> to vector<256x32xf32>
    %c0_25 = arith.constant 0 : index
    %c2_26 = arith.constant 2 : index
    %c1_27 = arith.constant 1 : index
    %c0_28 = arith.constant 0 : index
    %21 = vector.load %arg1[%c0_25, %c2_26, %c1_27, %c0_28] : memref<1x18x18x32xf32, #tpu.memory_space<vmem>>, vector<1x16x16x32xf32>
    %22 = vector.shape_cast %21 : vector<1x16x16x32xf32> to vector<16x16x32xf32>
    %23 = vector.shape_cast %22 : vector<16x16x32xf32> to vector<256x32xf32>
    %c0_29 = arith.constant 0 : index
    %c2_30 = arith.constant 2 : index
    %c2_31 = arith.constant 2 : index
    %c0_32 = arith.constant 0 : index
    %24 = vector.load %arg1[%c0_29, %c2_30, %c2_31, %c0_32] : memref<1x18x18x32xf32, #tpu.memory_space<vmem>>, vector<1x16x16x32xf32>
    %25 = vector.shape_cast %24 : vector<1x16x16x32xf32> to vector<16x16x32xf32>
    %26 = vector.shape_cast %25 : vector<16x16x32xf32> to vector<256x32xf32>
    %c0_33 = arith.constant 0 : index
    %c0_34 = arith.constant 0 : index
    %27 = vector.load %arg3[%c0_33, %c0_34] : memref<1x32xf32, #tpu.memory_space<vmem>>, vector<1x32xf32>
    %cst = arith.constant 0.000000e+00 : f32
    %28 = vector.broadcast %cst : f32 to vector<256x32xf32>
    %c0_35 = arith.constant 0 : index
    %c0_36 = arith.constant 0 : index
    %c0_37 = arith.constant 0 : index
    %29 = vector.load %arg2[%c0_35, %c0_36, %c0_37] : memref<16x32x32xf32, #tpu.memory_space<vmem>>, vector<1x32x32xf32>
    %30 = vector.shape_cast %29 : vector<1x32x32xf32> to vector<32x32xf32>
    %cst_38 = arith.constant dense<0.000000e+00> : vector<256x32xf32>
    %31 = tpu.matmul %2, %30, %cst_38 {dimension_numbers = #tpu.dot_dimension_numbers<[1], [0], [0], [1], [0, 0, 1, 1], [], []>} : vector<256x32xf32>, vector<32x32xf32>, vector<256x32xf32> -> vector<256x32xf32>
    %32 = arith.addf %28, %31 : vector<256x32xf32>
    %c1_39 = arith.constant 1 : index
    %c0_40 = arith.constant 0 : index
    %c0_41 = arith.constant 0 : index
    %33 = vector.load %arg2[%c1_39, %c0_40, %c0_41] : memref<16x32x32xf32, #tpu.memory_space<vmem>>, vector<1x32x32xf32>
    %34 = vector.shape_cast %33 : vector<1x32x32xf32> to vector<32x32xf32>
    %cst_42 = arith.constant dense<0.000000e+00> : vector<256x32xf32>
    %35 = tpu.matmul %5, %34, %cst_42 {dimension_numbers = #tpu.dot_dimension_numbers<[1], [0], [0], [1], [0, 0, 1, 1], [], []>} : vector<256x32xf32>, vector<32x32xf32>, vector<256x32xf32> -> vector<256x32xf32>
    %36 = arith.addf %32, %35 : vector<256x32xf32>
    %c2_43 = arith.constant 2 : index
    %c0_44 = arith.constant 0 : index
    %c0_45 = arith.constant 0 : index
    %37 = vector.load %arg2[%c2_43, %c0_44, %c0_45] : memref<16x32x32xf32, #tpu.memory_space<vmem>>, vector<1x32x32xf32>
    %38 = vector.shape_cast %37 : vector<1x32x32xf32> to vector<32x32xf32>
    %cst_46 = arith.constant dense<0.000000e+00> : vector<256x32xf32>
    %39 = tpu.matmul %11, %38, %cst_46 {dimension_numbers = #tpu.dot_dimension_numbers<[1], [0], [0], [1], [0, 0, 1, 1], [], []>} : vector<256x32xf32>, vector<32x32xf32>, vector<256x32xf32> -> vector<256x32xf32>
    %40 = arith.addf %36, %39 : vector<256x32xf32>
    %c3 = arith.constant 3 : index
    %c0_47 = arith.constant 0 : index
    %c0_48 = arith.constant 0 : index
    %41 = vector.load %arg2[%c3, %c0_47, %c0_48] : memref<16x32x32xf32, #tpu.memory_space<vmem>>, vector<1x32x32xf32>
    %42 = vector.shape_cast %41 : vector<1x32x32xf32> to vector<32x32xf32>
    %cst_49 = arith.constant dense<0.000000e+00> : vector<256x32xf32>
    %43 = tpu.matmul %14, %42, %cst_49 {dimension_numbers = #tpu.dot_dimension_numbers<[1], [0], [0], [1], [0, 0, 1, 1], [], []>} : vector<256x32xf32>, vector<32x32xf32>, vector<256x32xf32> -> vector<256x32xf32>
    %44 = arith.addf %40, %43 : vector<256x32xf32>
    %45 = vector.broadcast %27 : vector<1x32xf32> to vector<256x32xf32>
    %46 = arith.addf %44, %45 : vector<256x32xf32>
    %47 = vector.shape_cast %46 : vector<256x32xf32> to vector<16x16x32xf32>
    %c0_50 = arith.constant 0 : index
    %c0_51 = arith.constant 0 : index
    %c0_52 = arith.constant 0 : index
    %c0_53 = arith.constant 0 : index
    %c0_54 = arith.constant 0 : index
    %48 = vector.load %arg4[%c0_50, %c0_51, %c0_52, %c0_53, %c0_54] : memref<1x4x16x16x32xf32, #tpu.memory_space<vmem>>, vector<1x1x16x16x32xf32>
    %49 = vector.shape_cast %48 : vector<1x1x16x16x32xf32> to vector<16x16x32xf32>
    %50 = vector.shape_cast %47 : vector<16x16x32xf32> to vector<1x1x16x16x32xf32>
    tpu.vector_store %arg4[%c0_50, %c0_51, %c0_52, %c0_53, %c0_54], %50 {strides = array<i32>} : memref<1x4x16x16x32xf32, #tpu.memory_space<vmem>>, vector<1x1x16x16x32xf32>,
    %cst_55 = arith.constant 0.000000e+00 : f32
    %51 = vector.broadcast %cst_55 : f32 to vector<256x32xf32>
    %c4 = arith.constant 4 : index
    %c0_56 = arith.constant 0 : index
    %c0_57 = arith.constant 0 : index
    %52 = vector.load %arg2[%c4, %c0_56, %c0_57] : memref<16x32x32xf32, #tpu.memory_space<vmem>>, vector<1x32x32xf32>
    %53 = vector.shape_cast %52 : vector<1x32x32xf32> to vector<32x32xf32>
    %cst_58 = arith.constant dense<0.000000e+00> : vector<256x32xf32>
    %54 = tpu.matmul %5, %53, %cst_58 {dimension_numbers = #tpu.dot_dimension_numbers<[1], [0], [0], [1], [0, 0, 1, 1], [], []>} : vector<256x32xf32>, vector<32x32xf32>, vector<256x32xf32> -> vector<256x32xf32>
    %55 = arith.addf %51, %54 : vector<256x32xf32>
    %c5 = arith.constant 5 : index
    %c0_59 = arith.constant 0 : index
    %c0_60 = arith.constant 0 : index
    %56 = vector.load %arg2[%c5, %c0_59, %c0_60] : memref<16x32x32xf32, #tpu.memory_space<vmem>>, vector<1x32x32xf32>
    %57 = vector.shape_cast %56 : vector<1x32x32xf32> to vector<32x32xf32>
    %cst_61 = arith.constant dense<0.000000e+00> : vector<256x32xf32>
    %58 = tpu.matmul %8, %57, %cst_61 {dimension_numbers = #tpu.dot_dimension_numbers<[1], [0], [0], [1], [0, 0, 1, 1], [], []>} : vector<256x32xf32>, vector<32x32xf32>, vector<256x32xf32> -> vector<256x32xf32>
    %59 = arith.addf %55, %58 : vector<256x32xf32>
    %c6 = arith.constant 6 : index
    %c0_62 = arith.constant 0 : index
    %c0_63 = arith.constant 0 : index
    %60 = vector.load %arg2[%c6, %c0_62, %c0_63] : memref<16x32x32xf32, #tpu.memory_space<vmem>>, vector<1x32x32xf32>
    %61 = vector.shape_cast %60 : vector<1x32x32xf32> to vector<32x32xf32>
    %cst_64 = arith.constant dense<0.000000e+00> : vector<256x32xf32>
    %62 = tpu.matmul %14, %61, %cst_64 {dimension_numbers = #tpu.dot_dimension_numbers<[1], [0], [0], [1], [0, 0, 1, 1], [], []>} : vector<256x32xf32>, vector<32x32xf32>, vector<256x32xf32> -> vector<256x32xf32>
    %63 = arith.addf %59, %62 : vector<256x32xf32>
    %c7 = arith.constant 7 : index
    %c0_65 = arith.constant 0 : index
    %c0_66 = arith.constant 0 : index
    %64 = vector.load %arg2[%c7, %c0_65, %c0_66] : memref<16x32x32xf32, #tpu.memory_space<vmem>>, vector<1x32x32xf32>
    %65 = vector.shape_cast %64 : vector<1x32x32xf32> to vector<32x32xf32>
    %cst_67 = arith.constant dense<0.000000e+00> : vector<256x32xf32>
    %66 = tpu.matmul %17, %65, %cst_67 {dimension_numbers = #tpu.dot_dimension_numbers<[1], [0], [0], [1], [0, 0, 1, 1], [], []>} : vector<256x32xf32>, vector<32x32xf32>, vector<256x32xf32> -> vector<256x32xf32>
    %67 = arith.addf %63, %66 : vector<256x32xf32>
    %68 = vector.broadcast %27 : vector<1x32xf32> to vector<256x32xf32>
    %69 = arith.addf %67, %68 : vector<256x32xf32>
    %70 = vector.shape_cast %69 : vector<256x32xf32> to vector<16x16x32xf32>
    %c0_68 = arith.constant 0 : index
    %c1_69 = arith.constant 1 : index
    %c0_70 = arith.constant 0 : index
    %c0_71 = arith.constant 0 : index
    %c0_72 = arith.constant 0 : index
    %71 = vector.load %arg4[%c0_68, %c1_69, %c0_70, %c0_71, %c0_72] : memref<1x4x16x16x32xf32, #tpu.memory_space<vmem>>, vector<1x1x16x16x32xf32>
    %72 = vector.shape_cast %71 : vector<1x1x16x16x32xf32> to vector<16x16x32xf32>
    %73 = vector.shape_cast %70 : vector<16x16x32xf32> to vector<1x1x16x16x32xf32>
    tpu.vector_store %arg4[%c0_68, %c1_69, %c0_70, %c0_71, %c0_72], %73 {strides = array<i32>} : memref<1x4x16x16x32xf32, #tpu.memory_space<vmem>>, vector<1x1x16x16x32xf32>,
    %cst_73 = arith.constant 0.000000e+00 : f32
    %74 = vector.broadcast %cst_73 : f32 to vector<256x32xf32>
    %c8 = arith.constant 8 : index
    %c0_74 = arith.constant 0 : index
    %c0_75 = arith.constant 0 : index
    %75 = vector.load %arg2[%c8, %c0_74, %c0_75] : memref<16x32x32xf32, #tpu.memory_space<vmem>>, vector<1x32x32xf32>
    %76 = vector.shape_cast %75 : vector<1x32x32xf32> to vector<32x32xf32>
    %cst_76 = arith.constant dense<0.000000e+00> : vector<256x32xf32>
    %77 = tpu.matmul %11, %76, %cst_76 {dimension_numbers = #tpu.dot_dimension_numbers<[1], [0], [0], [1], [0, 0, 1, 1], [], []>} : vector<256x32xf32>, vector<32x32xf32>, vector<256x32xf32> -> vector<256x32xf32>
    %78 = arith.addf %74, %77 : vector<256x32xf32>
    %c9 = arith.constant 9 : index
    %c0_77 = arith.constant 0 : index
    %c0_78 = arith.constant 0 : index
    %79 = vector.load %arg2[%c9, %c0_77, %c0_78] : memref<16x32x32xf32, #tpu.memory_space<vmem>>, vector<1x32x32xf32>
    %80 = vector.shape_cast %79 : vector<1x32x32xf32> to vector<32x32xf32>
    %cst_79 = arith.constant dense<0.000000e+00> : vector<256x32xf32>
    %81 = tpu.matmul %14, %80, %cst_79 {dimension_numbers = #tpu.dot_dimension_numbers<[1], [0], [0], [1], [0, 0, 1, 1], [], []>} : vector<256x32xf32>, vector<32x32xf32>, vector<256x32xf32> -> vector<256x32xf32>
    %82 = arith.addf %78, %81 : vector<256x32xf32>
    %c10 = arith.constant 10 : index
    %c0_80 = arith.constant 0 : index
    %c0_81 = arith.constant 0 : index
    %83 = vector.load %arg2[%c10, %c0_80, %c0_81] : memref<16x32x32xf32, #tpu.memory_space<vmem>>, vector<1x32x32xf32>
    %84 = vector.shape_cast %83 : vector<1x32x32xf32> to vector<32x32xf32>
    %cst_82 = arith.constant dense<0.000000e+00> : vector<256x32xf32>
    %85 = tpu.matmul %20, %84, %cst_82 {dimension_numbers = #tpu.dot_dimension_numbers<[1], [0], [0], [1], [0, 0, 1, 1], [], []>} : vector<256x32xf32>, vector<32x32xf32>, vector<256x32xf32> -> vector<256x32xf32>
    %86 = arith.addf %82, %85 : vector<256x32xf32>
    %c11 = arith.constant 11 : index
    %c0_83 = arith.constant 0 : index
    %c0_84 = arith.constant 0 : index
    %87 = vector.load %arg2[%c11, %c0_83, %c0_84] : memref<16x32x32xf32, #tpu.memory_space<vmem>>, vector<1x32x32xf32>
    %88 = vector.shape_cast %87 : vector<1x32x32xf32> to vector<32x32xf32>
    %cst_85 = arith.constant dense<0.000000e+00> : vector<256x32xf32>
    %89 = tpu.matmul %23, %88, %cst_85 {dimension_numbers = #tpu.dot_dimension_numbers<[1], [0], [0], [1], [0, 0, 1, 1], [], []>} : vector<256x32xf32>, vector<32x32xf32>, vector<256x32xf32> -> vector<256x32xf32>
    %90 = arith.addf %86, %89 : vector<256x32xf32>
    %91 = vector.broadcast %27 : vector<1x32xf32> to vector<256x32xf32>
    %92 = arith.addf %90, %91 : vector<256x32xf32>
    %93 = vector.shape_cast %92 : vector<256x32xf32> to vector<16x16x32xf32>
    %c0_86 = arith.constant 0 : index
    %c2_87 = arith.constant 2 : index
    %c0_88 = arith.constant 0 : index
    %c0_89 = arith.constant 0 : index
    %c0_90 = arith.constant 0 : index
    %94 = vector.load %arg4[%c0_86, %c2_87, %c0_88, %c0_89, %c0_90] : memref<1x4x16x16x32xf32, #tpu.memory_space<vmem>>, vector<1x1x16x16x32xf32>
    %95 = vector.shape_cast %94 : vector<1x1x16x16x32xf32> to vector<16x16x32xf32>
    %96 = vector.shape_cast %93 : vector<16x16x32xf32> to vector<1x1x16x16x32xf32>
    tpu.vector_store %arg4[%c0_86, %c2_87, %c0_88, %c0_89, %c0_90], %96 {strides = array<i32>} : memref<1x4x16x16x32xf32, #tpu.memory_space<vmem>>, vector<1x1x16x16x32xf32>,
    %cst_91 = arith.constant 0.000000e+00 : f32
    %97 = vector.broadcast %cst_91 : f32 to vector<256x32xf32>
    %c12 = arith.constant 12 : index
    %c0_92 = arith.constant 0 : index
    %c0_93 = arith.constant 0 : index
    %98 = vector.load %arg2[%c12, %c0_92, %c0_93] : memref<16x32x32xf32, #tpu.memory_space<vmem>>, vector<1x32x32xf32>
    %99 = vector.shape_cast %98 : vector<1x32x32xf32> to vector<32x32xf32>
    %cst_94 = arith.constant dense<0.000000e+00> : vector<256x32xf32>
    %100 = tpu.matmul %14, %99, %cst_94 {dimension_numbers = #tpu.dot_dimension_numbers<[1], [0], [0], [1], [0, 0, 1, 1], [], []>} : vector<256x32xf32>, vector<32x32xf32>, vector<256x32xf32> -> vector<256x32xf32>
    %101 = arith.addf %97, %100 : vector<256x32xf32>
    %c13 = arith.constant 13 : index
    %c0_95 = arith.constant 0 : index
    %c0_96 = arith.constant 0 : index
    %102 = vector.load %arg2[%c13, %c0_95, %c0_96] : memref<16x32x32xf32, #tpu.memory_space<vmem>>, vector<1x32x32xf32>
    %103 = vector.shape_cast %102 : vector<1x32x32xf32> to vector<32x32xf32>
    %cst_97 = arith.constant dense<0.000000e+00> : vector<256x32xf32>
    %104 = tpu.matmul %17, %103, %cst_97 {dimension_numbers = #tpu.dot_dimension_numbers<[1], [0], [0], [1], [0, 0, 1, 1], [], []>} : vector<256x32xf32>, vector<32x32xf32>, vector<256x32xf32> -> vector<256x32xf32>
    %105 = arith.addf %101, %104 : vector<256x32xf32>
    %c14 = arith.constant 14 : index
    %c0_98 = arith.constant 0 : index
    %c0_99 = arith.constant 0 : index
    %106 = vector.load %arg2[%c14, %c0_98, %c0_99] : memref<16x32x32xf32, #tpu.memory_space<vmem>>, vector<1x32x32xf32>
    %107 = vector.shape_cast %106 : vector<1x32x32xf32> to vector<32x32xf32>
    %cst_100 = arith.constant dense<0.000000e+00> : vector<256x32xf32>
    %108 = tpu.matmul %23, %107, %cst_100 {dimension_numbers = #tpu.dot_dimension_numbers<[1], [0], [0], [1], [0, 0, 1, 1], [], []>} : vector<256x32xf32>, vector<32x32xf32>, vector<256x32xf32> -> vector<256x32xf32>
    %109 = arith.addf %105, %108 : vector<256x32xf32>
    %c15 = arith.constant 15 : index
    %c0_101 = arith.constant 0 : index
    %c0_102 = arith.constant 0 : index
    %110 = vector.load %arg2[%c15, %c0_101, %c0_102] : memref<16x32x32xf32, #tpu.memory_space<vmem>>, vector<1x32x32xf32>
    %111 = vector.shape_cast %110 : vector<1x32x32xf32> to vector<32x32xf32>
    %cst_103 = arith.constant dense<0.000000e+00> : vector<256x32xf32>
    %112 = tpu.matmul %26, %111, %cst_103 {dimension_numbers = #tpu.dot_dimension_numbers<[1], [0], [0], [1], [0, 0, 1, 1], [], []>} : vector<256x32xf32>, vector<32x32xf32>, vector<256x32xf32> -> vector<256x32xf32>
    %113 = arith.addf %109, %112 : vector<256x32xf32>
    %114 = vector.broadcast %27 : vector<1x32xf32> to vector<256x32xf32>
    %115 = arith.addf %113, %114 : vector<256x32xf32>
    %116 = vector.shape_cast %115 : vector<256x32xf32> to vector<16x16x32xf32>
    %c0_104 = arith.constant 0 : index
    %c3_105 = arith.constant 3 : index
    %c0_106 = arith.constant 0 : index
    %c0_107 = arith.constant 0 : index
    %c0_108 = arith.constant 0 : index
    %117 = vector.load %arg4[%c0_104, %c3_105, %c0_106, %c0_107, %c0_108] : memref<1x4x16x16x32xf32, #tpu.memory_space<vmem>>, vector<1x1x16x16x32xf32>
    %118 = vector.shape_cast %117 : vector<1x1x16x16x32xf32> to vector<16x16x32xf32>
    %119 = vector.shape_cast %116 : vector<16x16x32xf32> to vector<1x1x16x16x32xf32>
    tpu.vector_store %arg4[%c0_104, %c3_105, %c0_106, %c0_107, %c0_108], %119 {strides = array<i32>} : memref<1x4x16x16x32xf32, #tpu.memory_space<vmem>>, vector<1x1x16x16x32xf32>,
    return
  }
  func.func @transform_0(%arg0: i32) -> (i32, i32, i32, i32) {
    %c0_i32 = arith.constant 0 : i32
    %c0_i32_0 = arith.constant 0 : i32
    %c0_i32_1 = arith.constant 0 : i32
    %c0_i32_2 = arith.constant 0 : i32
    return %arg0, %c0_i32, %c0_i32_0, %c0_i32_1 : i32, i32, i32, i32
  }
  func.func @transform_1(%arg0: i32) -> (i32, i32, i32) {
    %c0_i32 = arith.constant 0 : i32
    %c0_i32_0 = arith.constant 0 : i32
    %c0_i32_1 = arith.constant 0 : i32
    %c0_i32_2 = arith.constant 0 : i32
    return %c0_i32, %c0_i32_0, %c0_i32_1 : i32, i32, i32
  }
  func.func @transform_2(%arg0: i32) -> (i32, i32) {
    %c0_i32 = arith.constant 0 : i32
    %c0_i32_0 = arith.constant 0 : i32
    %c0_i32_1 = arith.constant 0 : i32
    return %c0_i32, %c0_i32_0 : i32, i32
  }
  func.func @transform_3(%arg0: i32) -> (i32, i32, i32, i32, i32) {
    %c0_i32 = arith.constant 0 : i32
    %c0_i32_0 = arith.constant 0 : i32
    %c0_i32_1 = arith.constant 0 : i32
    %c0_i32_2 = arith.constant 0 : i32
    %c0_i32_3 = arith.constant 0 : i32
    return %arg0, %c0_i32, %c0_i32_0, %c0_i32_1, %c0_i32_2 : i32, i32, i32, i32, i32
  }
}

</mosaic_0001>

<llo_original>
// kernel: upsample_conv2x.1
$region0: #{upsample_conv2x.1}
  #allocation0 [shape = 'u32[]', space=smem, size = 0x4, offset = 0x4, fixed_abs, tag = 'smem constant byte address 0x4 - core index']
  #allocation1 [shape = 'u32[144,128]{1,0:T(1,128)}', space=vmem, size = 0x12000, scoped, tag = 'internal scratch']
  %s0 = inlined_call_operand.vmem [shape: f32[2,18,18,32], index: 0, kind: input, shape index: {}]
  %s1 = inlined_call_operand.vmem [shape: f32[16,32,32], index: 1, kind: input, shape index: {}]
  %s2 = inlined_call_operand.vmem [shape: f32[1,32], index: 2, kind: input, shape index: {}]
  %s3 = inlined_call_operand.vmem [shape: f32[2,4,16,16,32], index: 3, kind: output, shape index: {}]
  %s4 = sld [smem:[#allocation0]]
  $region45: #{upsample_conv2x.1} parent=0
    _
  %s6 = ssub.s32 1, %s4
  %s7 = scalar_select 0, %s6, %s4
  loop: start=0, step=1, limit=4
  $region2: #{upsample_conv2x.1} parent=0 // loop_pre_header
    _
  $region3: #{upsample_conv2x.1} parent=0 // loop_header
    %s9 = sphi 0, %s13
    %p10 = scmp.ge.s32.totalorder %s9, 4
    %s19 = sphi 0, %s21
    %s22 = sphi 0, %s19
    %s23 = sphi 0, %s22
    %s39 = sphi 0, %s23
    %s43 = sphi 0, %s43
    %s45 = sphi 0, %s43
    %s46 = sphi 0, %s45
    %s60 = sphi 0, %s46
    %s64 = sphi 0, %s64
    %s66 = sphi 0, %s64
    %s67 = sphi 0, %s66
    %s81 = sphi 0, %s67
    %s87 = sphi 0, %s89
    %s90 = sphi 0, %s87
    %s91 = sphi 0, %s90
    %s107 = sphi 0, %s91
  $region4: #{upsample_conv2x.1} parent=0 // loop_header_branch
    %12 = sbr.rel (%p10) target = $region8
  $region5: #{upsample_conv2x.1} parent=0 // loop_body
    %s14 = ssub.s32 %s9, 1
    %s15 = ssub.s32 %s9, 2
    %s16 = sadd.s32 %s9, 1
    %s17 = ssub.s32 %s9, %s16
    %p18 = scmp.eq.s32.totalorder %s17, 0
    %s20 = sadd.s32 %s19, 1
    %s21 = scalar_select %p18, %s19, %s20
    %p24 = pneg %p18
    %p25 = scmp.eq.s32.totalorder %s9, 1
    %p26 = por %p24, %p25
    %p27 = scmp.ne.s32.totalorder %s19, %s22
    %p28 = scmp.eq.s32.totalorder %s9, 0
    %p29 = por %p27, %p28
    %p30 = scmp.ne.s32.totalorder %s19, %s22
    %p31 = scmp.eq.s32.totalorder %s14, 1
    %p32 = por %p30, %p31
    %p33 = scmp.ne.s32.totalorder %s22, %s23
    %p34 = scmp.eq.s32.totalorder %s14, 0
    %p35 = por %p33, %p34
    %p36 = scmp.ne.s32.totalorder %s22, %s23
    %p37 = scmp.eq.s32.totalorder %s15, 1
    %p38 = por %p36, %p37
    %p40 = scmp.ne.s32.totalorder %s23, %s39
    %p41 = scmp.eq.s32.totalorder %s15, 0
    %p42 = por %p40, %p41
    %s44 = sadd.s32 %s43, 1
    %p47 = scmp.eq.s32.totalorder %s9, 1
    %p48 = scmp.ne.s32.totalorder %s43, %s45
    %p49 = scmp.eq.s32.totalorder %s9, 0
    %p50 = por %p48, %p49
    %p51 = scmp.ne.s32.totalorder %s43, %s45
    %p52 = scmp.eq.s32.totalorder %s14, 1
    %p53 = por %p51, %p52
    %p54 = scmp.ne.s32.totalorder %s45, %s46
    %p55 = scmp.eq.s32.totalorder %s14, 0
    %p56 = por %p54, %p55
    %p57 = scmp.ne.s32.totalorder %s45, %s46
    %p58 = scmp.eq.s32.totalorder %s15, 1
    %p59 = por %p57, %p58
    %p61 = scmp.ne.s32.totalorder %s46, %s60
    %p62 = scmp.eq.s32.totalorder %s15, 0
    %p63 = por %p61, %p62
    %s65 = sadd.s32 %s64, 1
    %p68 = scmp.eq.s32.totalorder %s9, 1
    %p69 = scmp.ne.s32.totalorder %s64, %s66
    %p70 = scmp.eq.s32.totalorder %s9, 0
    %p71 = por %p69, %p70
    %p72 = scmp.ne.s32.totalorder %s64, %s66
    %p73 = scmp.eq.s32.totalorder %s14, 1
    %p74 = por %p72, %p73
    %p75 = scmp.ne.s32.totalorder %s66, %s67
    %p76 = scmp.eq.s32.totalorder %s14, 0
    %p77 = por %p75, %p76
    %p78 = scmp.ne.s32.totalorder %s66, %s67
    %p79 = scmp.eq.s32.totalorder %s15, 1
    %p80 = por %p78, %p79
    %p82 = scmp.ne.s32.totalorder %s67, %s81
    %p83 = scmp.eq.s32.totalorder %s15, 0
    %p84 = por %p82, %p83
    %s85 = ssub.s32 %s9, %s16
    %p86 = scmp.eq.s32.totalorder %s85, 0
    %s88 = sadd.s32 %s87, 1
    %s89 = scalar_select %p86, %s87, %s88
    %p92 = pneg %p86
    %p93 = scmp.eq.s32.totalorder %s9, 1
    %p94 = por %p92, %p93
    %p95 = scmp.ne.s32.totalorder %s87, %s90
    %p96 = scmp.eq.s32.totalorder %s9, 0
    %p97 = por %p95, %p96
    %p98 = scmp.ne.s32.totalorder %s87, %s90
    %p99 = scmp.eq.s32.totalorder %s14, 1
    %p100 = por %p98, %p99
    %p101 = scmp.ne.s32.totalorder %s90, %s91
    %p102 = scmp.eq.s32.totalorder %s14, 0
    %p103 = por %p101, %p102
    %p104 = scmp.ne.s32.totalorder %s90, %s91
    %p105 = scmp.eq.s32.totalorder %s15, 1
    %p106 = por %p104, %p105
    %p108 = scmp.ne.s32.totalorder %s91, %s107
    %p109 = scmp.eq.s32.totalorder %s15, 0
    %p110 = por %p108, %p109
    %p111 = scmp.le.s32.totalorder 1, %s9
    %p112 = scmp.lt.s32.totalorder %s9, 3
    %p113 = pnand %p111, %p112
    %p114 = pneg %p113
    // Predicated region
    $region9: #{upsample_conv2x.1} parent=5 // pred_check
      _
    $region10: #{upsample_conv2x.1} parent=5 // pred_check_branch
      %116 = sbr.rel (%p113) target = $region12
    $region11: #{upsample_conv2x.1} parent=5 // pred_region
      %s117 = ssub.s32 %s9, 1
      // Predicated region
      $region13: #{upsample_conv2x.1} parent=11 // pred_check
        %p118 = pneg %p56
      $region14: #{upsample_conv2x.1} parent=11 // pred_check_branch
        %120 = sbr.rel (%p118) target = $region16
      $region15: #{upsample_conv2x.1} parent=11 // pred_region
        _
      $region16: #{upsample_conv2x.1} parent=11 // pred_fallthru
        _
      // Predicated region
      $region17: #{upsample_conv2x.1} parent=11 // pred_check
        %p121 = pneg %p77
      $region18: #{upsample_conv2x.1} parent=11 // pred_check_branch
        %123 = sbr.rel (%p121) target = $region20
      $region19: #{upsample_conv2x.1} parent=11 // pred_region
        _
      $region20: #{upsample_conv2x.1} parent=11 // pred_fallthru
        _
    $region12: #{upsample_conv2x.1} parent=5 // pred_fallthru
      _
    %p124 = scmp.lt.s32.totalorder %s9, 2
    // Predicated region
    $region21: #{upsample_conv2x.1} parent=5 // pred_check
      %p125 = pneg %p124
    $region22: #{upsample_conv2x.1} parent=5 // pred_check_branch
      %127 = sbr.rel (%p125) target = $region24
    $region23: #{upsample_conv2x.1} parent=5 // pred_region
      // Predicated region
      $region25: #{upsample_conv2x.1} parent=23 // pred_check
        %p128 = pneg %p29
      $region26: #{upsample_conv2x.1} parent=23 // pred_check_branch
        %130 = sbr.rel (%p128) target = $region28
      $region27: #{upsample_conv2x.1} parent=23 // pred_region
        %p131 = scmp.lt.s32.totalorder %s9, 1
        %s132 = scalar_select %p131, %s9, 1
        %s133 = smul.addr %s132, 54
        %s134 = smul.addr %s133, 8
        %s135 = scalar_lea.vmem %s0, %s134
      $region28: #{upsample_conv2x.1} parent=23 // pred_fallthru
        _
    $region24: #{upsample_conv2x.1} parent=5 // pred_fallthru
      _
    %p136 = scmp.le.s32.totalorder 1, %s9
    %p137 = scmp.lt.s32.totalorder %s9, 3
    %p138 = pnand %p136, %p137
    %p139 = pneg %p138
    // Predicated region
    $region29: #{upsample_conv2x.1} parent=5 // pred_check
      _
    $region30: #{upsample_conv2x.1} parent=5 // pred_check_branch
      %141 = sbr.rel (%p138) target = $region32
    $region31: #{upsample_conv2x.1} parent=5 // pred_region
      %s142 = ssub.s32 %s9, 1
      %p143 = scmp.lt.s32.totalorder %s14, 1
      %s144 = scalar_select %p143, %s14, 1
      %s145 = smul.addr %s144, 54
      %s146 = smul.addr %s145, 8
      %s147 = scalar_lea.vmem %s0, %s146
      %p148 = pneg %p35
      %p149 = pneg %p32
      %p150 = pneg %p56
      %p151 = pneg %p53
      %p152 = pneg %p77
      %p153 = pneg %p74
      %p154 = pneg %p103
      %p155 = pneg %p100
      %p156 = scmp.lt.s32.totalorder %s14, 1
      %s157 = scalar_select %p156, %s14, 1
      %s158 = smul.addr %s157, 128
      %s159 = smul.addr %s158, 8
      %s160 = scalar_lea.vmem %s3, %s159
      %p161 = scmp.lt.s32.totalorder %s14, 1
      %s162 = scalar_select %p161, %s14, 1
      %s163 = smul.addr %s162, 54
      %s164 = smul.addr %s163, 8
      %s165 = scalar_lea.vmem %s0, %s164
      %p166 = scmp.lt.s32.totalorder %s14, 1
      %s167 = scalar_select %p166, %s14, 1
      %s168 = smul.addr %s167, 128
      %s169 = smul.addr %s168, 8
      %s170 = scalar_lea.vmem %s3, %s169
      %v171 = vld [vmem:[%s165] sm:$0xff]
      %v172 = vld [vmem:[%s165 + $0x8] sm:$0xff]
      %v173 = vld [vmem:[%s165 + $0x18] sm:$0xff]
      %v174 = vld [vmem:[%s165 + $0x20] sm:$0xff]
      %v175 = vld [vmem:[%s165 + $0x30] sm:$0xff]
      %v176 = vld [vmem:[%s165 + $0x38] sm:$0xff]
      %v177 = vld [vmem:[%s165 + $0x48] sm:$0xff]
      %v178 = vld [vmem:[%s165 + $0x50] sm:$0xff]
      %v179 = vld [vmem:[%s165 + $0x60] sm:$0xff]
      %v180 = vld [vmem:[%s165 + $0x68] sm:$0xff]
      %v181 = vld [vmem:[%s165 + $0x78] sm:$0xff]
      %v182 = vld [vmem:[%s165 + $0x80] sm:$0xff]
      %v183 = vld [vmem:[%s165 + $0x90] sm:$0xff]
      %v184 = vld [vmem:[%s165 + $0x98] sm:$0xff]
      %v185 = vld [vmem:[%s165 + $0xa8] sm:$0xff]
      %v186 = vld [vmem:[%s165 + $0xb0] sm:$0xff]
      %v187 = vld [vmem:[%s165 + $0xc0] sm:$0xff]
      %v188 = vld [vmem:[%s165 + $0xc8] sm:$0xff]
      %v189 = vld [vmem:[%s165 + $0xd8] sm:$0xff]
      %v190 = vld [vmem:[%s165 + $0xe0] sm:$0xff]
      %v191 = vld [vmem:[%s165 + $0xf0] sm:$0xff]
      %v192 = vld [vmem:[%s165 + $0xf8] sm:$0xff]
      %v193 = vld [vmem:[%s165 + $0x108] sm:$0xff]
      %v194 = vld [vmem:[%s165 + $0x110] sm:$0xff]
      %v195 = vld [vmem:[%s165 + $0x120] sm:$0xff]
      %v196 = vld [vmem:[%s165 + $0x128] sm:$0xff]
      %v197 = vld [vmem:[%s165 + $0x138] sm:$0xff]
      %v198 = vld [vmem:[%s165 + $0x140] sm:$0xff]
      %v199 = vld [vmem:[%s165 + $0x150] sm:$0xff]
      %v200 = vld [vmem:[%s165 + $0x158] sm:$0xff]
      %v201 = vld [vmem:[%s165 + $0x168] sm:$0xff]
      %v202 = vld [vmem:[%s165 + $0x170] sm:$0xff]
      %v203 = vld [vmem:[%s165 + $0x1] sm:$0xff]
      %v204 = vld [vmem:[%s165 + $0x9] sm:$0xff]
      %v205 = vld [vmem:[%s165 + $0x19] sm:$0xff]
      %v206 = vld [vmem:[%s165 + $0x21] sm:$0xff]
      %v207 = vld [vmem:[%s165 + $0x31] sm:$0xff]
      %v208 = vld [vmem:[%s165 + $0x39] sm:$0xff]
      %v209 = vld [vmem:[%s165 + $0x49] sm:$0xff]
      %v210 = vld [vmem:[%s165 + $0x51] sm:$0xff]
      %v211 = vld [vmem:[%s165 + $0x61] sm:$0xff]
      %v212 = vld [vmem:[%s165 + $0x69] sm:$0xff]
      %v213 = vld [vmem:[%s165 + $0x79] sm:$0xff]
      %v214 = vld [vmem:[%s165 + $0x81] sm:$0xff]
      %v215 = vld [vmem:[%s165 + $0x91] sm:$0xff]
      %v216 = vld [vmem:[%s165 + $0x99] sm:$0xff]
      %v217 = vld [vmem:[%s165 + $0xa9] sm:$0xff]
      %v218 = vld [vmem:[%s165 + $0xb1] sm:$0xff]
      %v219 = vld [vmem:[%s165 + $0xc1] sm:$0xff]
      %v220 = vld [vmem:[%s165 + $0xc9] sm:$0xff]
      %v221 = vld [vmem:[%s165 + $0xd9] sm:$0xff]
      %v222 = vld [vmem:[%s165 + $0xe1] sm:$0xff]
      %v223 = vld [vmem:[%s165 + $0xf1] sm:$0xff]
      %v224 = vld [vmem:[%s165 + $0xf9] sm:$0xff]
      %v225 = vld [vmem:[%s165 + $0x109] sm:$0xff]
      %v226 = vld [vmem:[%s165 + $0x111] sm:$0xff]
      %v227 = vld [vmem:[%s165 + $0x121] sm:$0xff]
      %v228 = vld [vmem:[%s165 + $0x129] sm:$0xff]
      %v229 = vld [vmem:[%s165 + $0x139] sm:$0xff]
      %v230 = vld [vmem:[%s165 + $0x141] sm:$0xff]
      %v231 = vld [vmem:[%s165 + $0x151] sm:$0xff]
      %v232 = vld [vmem:[%s165 + $0x159] sm:$0xff]
      %v233 = vld [vmem:[%s165 + $0x169] sm:$0xff]
      %v234 = vld [vmem:[%s165 + $0x171] sm:$0xff]
      %v235 = vld [vmem:[%s165 + $0x2] sm:$0xff]
      %v236 = vld [vmem:[%s165 + $0xa] sm:$0xff]
      %v237 = vld [vmem:[%s165 + $0x1a] sm:$0xff]
      %v238 = vld [vmem:[%s165 + $0x22] sm:$0xff]
      %v239 = vld [vmem:[%s165 + $0x32] sm:$0xff]
      %v240 = vld [vmem:[%s165 + $0x3a] sm:$0xff]
      %v241 = vld [vmem:[%s165 + $0x4a] sm:$0xff]
      %v242 = vld [vmem:[%s165 + $0x52] sm:$0xff]
      %v243 = vld [vmem:[%s165 + $0x62] sm:$0xff]
      %v244 = vld [vmem:[%s165 + $0x6a] sm:$0xff]
      %v245 = vld [vmem:[%s165 + $0x7a] sm:$0xff]
      %v246 = vld [vmem:[%s165 + $0x82] sm:$0xff]
      %v247 = vld [vmem:[%s165 + $0x92] sm:$0xff]
      %v248 = vld [vmem:[%s165 + $0x9a] sm:$0xff]
      %v249 = vld [vmem:[%s165 + $0xaa] sm:$0xff]
      %v250 = vld [vmem:[%s165 + $0xb2] sm:$0xff]
      %v251 = vld [vmem:[%s165 + $0xc2] sm:$0xff]
      %v252 = vld [vmem:[%s165 + $0xca] sm:$0xff]
      %v253 = vld [vmem:[%s165 + $0xda] sm:$0xff]
      %v254 = vld [vmem:[%s165 + $0xe2] sm:$0xff]
      %v255 = vld [vmem:[%s165 + $0xf2] sm:$0xff]
      %v256 = vld [vmem:[%s165 + $0xfa] sm:$0xff]
      %v257 = vld [vmem:[%s165 + $0x10a] sm:$0xff]
      %v258 = vld [vmem:[%s165 + $0x112] sm:$0xff]
      %v259 = vld [vmem:[%s165 + $0x122] sm:$0xff]
      %v260 = vld [vmem:[%s165 + $0x12a] sm:$0xff]
      %v261 = vld [vmem:[%s165 + $0x13a] sm:$0xff]
      %v262 = vld [vmem:[%s165 + $0x142] sm:$0xff]
      %v263 = vld [vmem:[%s165 + $0x152] sm:$0xff]
      %v264 = vld [vmem:[%s165 + $0x15a] sm:$0xff]
      %v265 = vld [vmem:[%s165 + $0x16a] sm:$0xff]
      %v266 = vld [vmem:[%s165 + $0x172] sm:$0xff]
      %s267 = scalar_lea.vmem %s165, 24
      %v268 = vld [vmem:[%s267] sm:$0xff]
      %v269 = vld [vmem:[%s267 + $0x8] sm:$0xff]
      %v270 = vld [vmem:[%s267 + $0x18] sm:$0xff]
      %v271 = vld [vmem:[%s267 + $0x20] sm:$0xff]
      %v272 = vld [vmem:[%s267 + $0x30] sm:$0xff]
      %v273 = vld [vmem:[%s267 + $0x38] sm:$0xff]
      %v274 = vld [vmem:[%s267 + $0x48] sm:$0xff]
      %v275 = vld [vmem:[%s267 + $0x50] sm:$0xff]
      %v276 = vld [vmem:[%s267 + $0x60] sm:$0xff]
      %v277 = vld [vmem:[%s267 + $0x68] sm:$0xff]
      %v278 = vld [vmem:[%s267 + $0x78] sm:$0xff]
      %v279 = vld [vmem:[%s267 + $0x80] sm:$0xff]
      %v280 = vld [vmem:[%s267 + $0x90] sm:$0xff]
      %v281 = vld [vmem:[%s267 + $0x98] sm:$0xff]
      %v282 = vld [vmem:[%s267 + $0xa8] sm:$0xff]
      %v283 = vld [vmem:[%s267 + $0xb0] sm:$0xff]
      %v284 = vld [vmem:[%s267 + $0xc0] sm:$0xff]
      %v285 = vld [vmem:[%s267 + $0xc8] sm:$0xff]
      %v286 = vld [vmem:[%s267 + $0xd8] sm:$0xff]
      %v287 = vld [vmem:[%s267 + $0xe0] sm:$0xff]
      %v288 = vld [vmem:[%s267 + $0xf0] sm:$0xff]
      %v289 = vld [vmem:[%s267 + $0xf8] sm:$0xff]
      %v290 = vld [vmem:[%s267 + $0x108] sm:$0xff]
      %v291 = vld [vmem:[%s267 + $0x110] sm:$0xff]
      %v292 = vld [vmem:[%s267 + $0x120] sm:$0xff]
      %v293 = vld [vmem:[%s267 + $0x128] sm:$0xff]
      %v294 = vld [vmem:[%s267 + $0x138] sm:$0xff]
      %v295 = vld [vmem:[%s267 + $0x140] sm:$0xff]
      %v296 = vld [vmem:[%s267 + $0x150] sm:$0xff]
      %v297 = vld [vmem:[%s267 + $0x158] sm:$0xff]
      %v298 = vld [vmem:[%s267 + $0x168] sm:$0xff]
      %v299 = vld [vmem:[%s267 + $0x170] sm:$0xff]
      %v300 = vld [vmem:[%s267 + $0x1] sm:$0xff]
      %v301 = vld [vmem:[%s267 + $0x9] sm:$0xff]
      %v302 = vld [vmem:[%s267 + $0x19] sm:$0xff]
      %v303 = vld [vmem:[%s267 + $0x21] sm:$0xff]
      %v304 = vld [vmem:[%s267 + $0x31] sm:$0xff]
      %v305 = vld [vmem:[%s267 + $0x39] sm:$0xff]
      %v306 = vld [vmem:[%s267 + $0x49] sm:$0xff]
      %v307 = vld [vmem:[%s267 + $0x51] sm:$0xff]
      %v308 = vld [vmem:[%s267 + $0x61] sm:$0xff]
      %v309 = vld [vmem:[%s267 + $0x69] sm:$0xff]
      %v310 = vld [vmem:[%s267 + $0x79] sm:$0xff]
      %v311 = vld [vmem:[%s267 + $0x81] sm:$0xff]
      %v312 = vld [vmem:[%s267 + $0x91] sm:$0xff]
      %v313 = vld [vmem:[%s267 + $0x99] sm:$0xff]
      %v314 = vld [vmem:[%s267 + $0xa9] sm:$0xff]
      %v315 = vld [vmem:[%s267 + $0xb1] sm:$0xff]
      %v316 = vld [vmem:[%s267 + $0xc1] sm:$0xff]
      %v317 = vld [vmem:[%s267 + $0xc9] sm:$0xff]
      %v318 = vld [vmem:[%s267 + $0xd9] sm:$0xff]
      %v319 = vld [vmem:[%s267 + $0xe1] sm:$0xff]
      %v320 = vld [vmem:[%s267 + $0xf1] sm:$0xff]
      %v321 = vld [vmem:[%s267 + $0xf9] sm:$0xff]
      %v322 = vld [vmem:[%s267 + $0x109] sm:$0xff]
      %v323 = vld [vmem:[%s267 + $0x111] sm:$0xff]
      %v324 = vld [vmem:[%s267 + $0x121] sm:$0xff]
      %v325 = vld [vmem:[%s267 + $0x129] sm:$0xff]
      %v326 = vld [vmem:[%s267 + $0x139] sm:$0xff]
      %v327 = vld [vmem:[%s267 + $0x141] sm:$0xff]
      %v328 = vld [vmem:[%s267 + $0x151] sm:$0xff]
      %v329 = vld [vmem:[%s267 + $0x159] sm:$0xff]
      %v330 = vld [vmem:[%s267 + $0x169] sm:$0xff]
      %v331 = vld [vmem:[%s267 + $0x171] sm:$0xff]
      %v332 = vld [vmem:[%s267 + $0x2] sm:$0xff]
      %v333 = vld [vmem:[%s267 + $0xa] sm:$0xff]
      %v334 = vld [vmem:[%s267 + $0x1a] sm:$0xff]
      %v335 = vld [vmem:[%s267 + $0x22] sm:$0xff]
      %v336 = vld [vmem:[%s267 + $0x32] sm:$0xff]
      %v337 = vld [vmem:[%s267 + $0x3a] sm:$0xff]
      %v338 = vld [vmem:[%s267 + $0x4a] sm:$0xff]
      %v339 = vld [vmem:[%s267 + $0x52] sm:$0xff]
      %v340 = vld [vmem:[%s267 + $0x62] sm:$0xff]
      %v341 = vld [vmem:[%s267 + $0x6a] sm:$0xff]
      %v342 = vld [vmem:[%s267 + $0x7a] sm:$0xff]
      %v343 = vld [vmem:[%s267 + $0x82] sm:$0xff]
      %v344 = vld [vmem:[%s267 + $0x92] sm:$0xff]
      %v345 = vld [vmem:[%s267 + $0x9a] sm:$0xff]
      %v346 = vld [vmem:[%s267 + $0xaa] sm:$0xff]
      %v347 = vld [vmem:[%s267 + $0xb2] sm:$0xff]
      %v348 = vld [vmem:[%s267 + $0xc2] sm:$0xff]
      %v349 = vld [vmem:[%s267 + $0xca] sm:$0xff]
      %v350 = vld [vmem:[%s267 + $0xda] sm:$0xff]
      %v351 = vld [vmem:[%s267 + $0xe2] sm:$0xff]
      %v352 = vld [vmem:[%s267 + $0xf2] sm:$0xff]
      %v353 = vld [vmem:[%s267 + $0xfa] sm:$0xff]
      %v354 = vld [vmem:[%s267 + $0x10a] sm:$0xff]
      %v355 = vld [vmem:[%s267 + $0x112] sm:$0xff]
      %v356 = vld [vmem:[%s267 + $0x122] sm:$0xff]
      %v357 = vld [vmem:[%s267 + $0x12a] sm:$0xff]
      %v358 = vld [vmem:[%s267 + $0x13a] sm:$0xff]
      %v359 = vld [vmem:[%s267 + $0x142] sm:$0xff]
      %v360 = vld [vmem:[%s267 + $0x152] sm:$0xff]
      %v361 = vld [vmem:[%s267 + $0x15a] sm:$0xff]
      %v362 = vld [vmem:[%s267 + $0x16a] sm:$0xff]
      %v363 = vld [vmem:[%s267 + $0x172] sm:$0xff]
      %s364 = scalar_lea.vmem %s165, 48
      %v365 = vld [vmem:[%s364] sm:$0xff]
      %v366 = vld [vmem:[%s364 + $0x8] sm:$0xff]
      %v367 = vld [vmem:[%s364 + $0x18] sm:$0xff]
      %v368 = vld [vmem:[%s364 + $0x20] sm:$0xff]
      %v369 = vld [vmem:[%s364 + $0x30] sm:$0xff]
      %v370 = vld [vmem:[%s364 + $0x38] sm:$0xff]
      %v371 = vld [vmem:[%s364 + $0x48] sm:$0xff]
      %v372 = vld [vmem:[%s364 + $0x50] sm:$0xff]
      %v373 = vld [vmem:[%s364 + $0x60] sm:$0xff]
      %v374 = vld [vmem:[%s364 + $0x68] sm:$0xff]
      %v375 = vld [vmem:[%s364 + $0x78] sm:$0xff]
      %v376 = vld [vmem:[%s364 + $0x80] sm:$0xff]
      %v377 = vld [vmem:[%s364 + $0x90] sm:$0xff]
      %v378 = vld [vmem:[%s364 + $0x98] sm:$0xff]
      %v379 = vld [vmem:[%s364 + $0xa8] sm:$0xff]
      %v380 = vld [vmem:[%s364 + $0xb0] sm:$0xff]
      %v381 = vld [vmem:[%s364 + $0xc0] sm:$0xff]
      %v382 = vld [vmem:[%s364 + $0xc8] sm:$0xff]
      %v383 = vld [vmem:[%s364 + $0xd8] sm:$0xff]
      %v384 = vld [vmem:[%s364 + $0xe0] sm:$0xff]
      %v385 = vld [vmem:[%s364 + $0xf0] sm:$0xff]
      %v386 = vld [vmem:[%s364 + $0xf8] sm:$0xff]
      %v387 = vld [vmem:[%s364 + $0x108] sm:$0xff]
      %v388 = vld [vmem:[%s364 + $0x110] sm:$0xff]
      %v389 = vld [vmem:[%s364 + $0x120] sm:$0xff]
      %v390 = vld [vmem:[%s364 + $0x128] sm:$0xff]
      %v391 = vld [vmem:[%s364 + $0x138] sm:$0xff]
      %v392 = vld [vmem:[%s364 + $0x140] sm:$0xff]
      %v393 = vld [vmem:[%s364 + $0x150] sm:$0xff]
      %v394 = vld [vmem:[%s364 + $0x158] sm:$0xff]
      %v395 = vld [vmem:[%s364 + $0x168] sm:$0xff]
      %v396 = vld [vmem:[%s364 + $0x170] sm:$0xff]
      %v397 = vld [vmem:[%s364 + $0x1] sm:$0xff]
      %v398 = vld [vmem:[%s364 + $0x9] sm:$0xff]
      %v399 = vld [vmem:[%s364 + $0x19] sm:$0xff]
      %v400 = vld [vmem:[%s364 + $0x21] sm:$0xff]
      %v401 = vld [vmem:[%s364 + $0x31] sm:$0xff]
      %v402 = vld [vmem:[%s364 + $0x39] sm:$0xff]
      %v403 = vld [vmem:[%s364 + $0x49] sm:$0xff]
      %v404 = vld [vmem:[%s364 + $0x51] sm:$0xff]
      %v405 = vld [vmem:[%s364 + $0x61] sm:$0xff]
      %v406 = vld [vmem:[%s364 + $0x69] sm:$0xff]
      %v407 = vld [vmem:[%s364 + $0x79] sm:$0xff]
      %v408 = vld [vmem:[%s364 + $0x81] sm:$0xff]
      %v409 = vld [vmem:[%s364 + $0x91] sm:$0xff]
      %v410 = vld [vmem:[%s364 + $0x99] sm:$0xff]
      %v411 = vld [vmem:[%s364 + $0xa9] sm:$0xff]
      %v412 = vld [vmem:[%s364 + $0xb1] sm:$0xff]
      %v413 = vld [vmem:[%s364 + $0xc1] sm:$0xff]
      %v414 = vld [vmem:[%s364 + $0xc9] sm:$0xff]
      %v415 = vld [vmem:[%s364 + $0xd9] sm:$0xff]
      %v416 = vld [vmem:[%s364 + $0xe1] sm:$0xff]
      %v417 = vld [vmem:[%s364 + $0xf1] sm:$0xff]
      %v418 = vld [vmem:[%s364 + $0xf9] sm:$0xff]
      %v419 = vld [vmem:[%s364 + $0x109] sm:$0xff]
      %v420 = vld [vmem:[%s364 + $0x111] sm:$0xff]
      %v421 = vld [vmem:[%s364 + $0x121] sm:$0xff]
      %v422 = vld [vmem:[%s364 + $0x129] sm:$0xff]
      %v423 = vld [vmem:[%s364 + $0x139] sm:$0xff]
      %v424 = vld [vmem:[%s364 + $0x141] sm:$0xff]
      %v425 = vld [vmem:[%s364 + $0x151] sm:$0xff]
      %v426 = vld [vmem:[%s364 + $0x159] sm:$0xff]
      %v427 = vld [vmem:[%s364 + $0x169] sm:$0xff]
      %v428 = vld [vmem:[%s364 + $0x171] sm:$0xff]
      %v429 = vld [vmem:[%s364 + $0x2] sm:$0xff]
      %v430 = vld [vmem:[%s364 + $0xa] sm:$0xff]
      %v431 = vld [vmem:[%s364 + $0x1a] sm:$0xff]
      %v432 = vld [vmem:[%s364 + $0x22] sm:$0xff]
      %v433 = vld [vmem:[%s364 + $0x32] sm:$0xff]
      %v434 = vld [vmem:[%s364 + $0x3a] sm:$0xff]
      %v435 = vld [vmem:[%s364 + $0x4a] sm:$0xff]
      %v436 = vld [vmem:[%s364 + $0x52] sm:$0xff]
      %v437 = vld [vmem:[%s364 + $0x62] sm:$0xff]
      %v438 = vld [vmem:[%s364 + $0x6a] sm:$0xff]
      %v439 = vld [vmem:[%s364 + $0x7a] sm:$0xff]
      %v440 = vld [vmem:[%s364 + $0x82] sm:$0xff]
      %v441 = vld [vmem:[%s364 + $0x92] sm:$0xff]
      %v442 = vld [vmem:[%s364 + $0x9a] sm:$0xff]
      %v443 = vld [vmem:[%s364 + $0xaa] sm:$0xff]
      %v444 = vld [vmem:[%s364 + $0xb2] sm:$0xff]
      %v445 = vld [vmem:[%s364 + $0xc2] sm:$0xff]
      %v446 = vld [vmem:[%s364 + $0xca] sm:$0xff]
      %v447 = vld [vmem:[%s364 + $0xda] sm:$0xff]
      %v448 = vld [vmem:[%s364 + $0xe2] sm:$0xff]
      %v449 = vld [vmem:[%s364 + $0xf2] sm:$0xff]
      %v450 = vld [vmem:[%s364 + $0xfa] sm:$0xff]
      %v451 = vld [vmem:[%s364 + $0x10a] sm:$0xff]
      %v452 = vld [vmem:[%s364 + $0x112] sm:$0xff]
      %v453 = vld [vmem:[%s364 + $0x122] sm:$0xff]
      %v454 = vld [vmem:[%s364 + $0x12a] sm:$0xff]
      %v455 = vld [vmem:[%s364 + $0x13a] sm:$0xff]
      %v456 = vld [vmem:[%s364 + $0x142] sm:$0xff]
      %v457 = vld [vmem:[%s364 + $0x152] sm:$0xff]
      %v458 = vld [vmem:[%s364 + $0x15a] sm:$0xff]
      %v459 = vld [vmem:[%s364 + $0x16a] sm:$0xff]
      %v460 = vld [vmem:[%s364 + $0x172] sm:$0xff]
      %v461 = vld [vmem:[%s2] sm:$0x1]
      %v462 = vld [vmem:[%s1] sm:$0xff]
      %v463 = vld [vmem:[%s1 + $0x8] sm:$0xff]
      %v464 = vld [vmem:[%s1 + $0x10] sm:$0xff]
      %v465 = vld [vmem:[%s1 + $0x18] sm:$0xff]
      %s466 = scalar_lea.vmem %s1, 32
      %v467 = vld [vmem:[%s466] sm:$0xff]
      %v468 = vld [vmem:[%s466 + $0x8] sm:$0xff]
      %v469 = vld [vmem:[%s466 + $0x10] sm:$0xff]
      %v470 = vld [vmem:[%s466 + $0x18] sm:$0xff]
      %vm471 = vcmask 261120
      %v473 = vsel %vm471, %v203, 0
      %v476 = vsel %vm471, %v204, 0
      %v479 = vsel %vm471, %v205, 0
      %v482 = vsel %vm471, %v206, 0
      %v485 = vsel %vm471, %v207, 0
      %v488 = vsel %vm471, %v208, 0
      %v491 = vsel %vm471, %v209, 0
      %v494 = vsel %vm471, %v210, 0
      %v497 = vsel %vm471, %v211, 0
      %v500 = vsel %vm471, %v212, 0
      %v503 = vsel %vm471, %v213, 0
      %v506 = vsel %vm471, %v214, 0
      %v509 = vsel %vm471, %v215, 0
      %v512 = vsel %vm471, %v216, 0
      %v515 = vsel %vm471, %v217, 0
      %v518 = vsel %vm471, %v218, 0
      %v521 = vsel %vm471, %v219, 0
      %v524 = vsel %vm471, %v220, 0
      %v527 = vsel %vm471, %v221, 0
      %v530 = vsel %vm471, %v222, 0
      %v533 = vsel %vm471, %v223, 0
      %v536 = vsel %vm471, %v224, 0
      %v539 = vsel %vm471, %v225, 0
      %v542 = vsel %vm471, %v226, 0
      %v545 = vsel %vm471, %v227, 0
      %v548 = vsel %vm471, %v228, 0
      %v551 = vsel %vm471, %v229, 0
      %v554 = vsel %vm471, %v230, 0
      %v557 = vsel %vm471, %v231, 0
      %v560 = vsel %vm471, %v232, 0
      %v563 = vsel %vm471, %v233, 0
      %v566 = vsel %vm471, %v234, 0
      %568 = vmatprep.subr.mxu0 0.0
      %569 = vmatpush1.msra.mxu0 %v467
      %570 = vmatprep.subr.mxu0 0.0
      %571 = vmatpush1.msra.mxu0 %v468
      %572 = vmatprep.subr.mxu0 0.0
      %573 = vmatpush1.msra.mxu0 %v469
      %574 = vmatprep.subr.mxu0 0.0
      %575 = vmatpush1.msra.mxu0 %v470
      %576 = vmatprep.subr.mxu0 0.0
      %577 = vmatpush1.msra.mxu0 0.0
      %578 = vmatprep.subr.mxu0 0.0
      %579 = vmatpush1.msra.mxu0 0.0
      %580 = vmatprep.subr.mxu0 0.0
      %581 = vmatpush1.msra.mxu0 0.0
      %582 = vmatprep.subr.mxu0 0.0
      %583 = vmatpush1.msra.mxu0 0.0
      %584 = vmatprep.subr.mxu0 0.0
      %585 = vmatpush1.msra.mxu0 0.0
      %586 = vmatprep.subr.mxu0 0.0
      %587 = vmatpush1.msra.mxu0 0.0
      %588 = vmatprep.subr.mxu0 0.0
      %589 = vmatpush1.msra.mxu0 0.0
      %590 = vmatprep.subr.mxu0 0.0
      %591 = vmatpush1.msra.mxu0 0.0
      %592 = vmatprep.subr.mxu0 0.0
      %593 = vmatpush1.msra.mxu0 0.0
      %594 = vmatprep.subr.mxu0 0.0
      %595 = vmatpush1.msra.mxu0 0.0
      %596 = vmatprep.subr.mxu0 0.0
      %597 = vmatpush1.msra.mxu0 0.0
      %598 = vmatprep.subr.mxu0 0.0
      %599 = vmatpush1.msra.mxu0 0.0
      %600 = vmatprep.subr.mxu0 0.0
      %601 = vmatpush1.msra.mxu0 0.0
      %602 = vmatprep.subr.mxu0 0.0
      %603 = vmatpush1.msra.mxu0 0.0
      %604 = vmatprep.subr.mxu0 0.0
      %605 = vmatpush1.msra.mxu0 0.0
      %606 = vmatprep.subr.mxu0 0.0
      %607 = vmatpush1.msra.mxu0 0.0
      %608 = vmatprep.subr.mxu0 0.0
      %609 = vmatpush1.msra.mxu0 0.0
      %610 = vmatprep.subr.mxu0 0.0
      %611 = vmatpush1.msra.mxu0 0.0
      %612 = vmatprep.subr.mxu0 0.0
      %613 = vmatpush1.msra.mxu0 0.0
      %614 = vmatprep.subr.mxu0 0.0
      %615 = vmatpush1.msra.mxu0 0.0
      %616 = vmatprep.subr.mxu0 0.0
      %617 = vmatpush1.msra.mxu0 0.0
      %618 = vmatprep.subr.mxu0 0.0
      %619 = vmatpush1.msra.mxu0 0.0
      %620 = vmatprep.subr.mxu0 0.0
      %621 = vmatpush1.msra.mxu0 0.0
      %622 = vmatprep.subr.mxu0 0.0
      %623 = vmatpush1.msra.mxu0 0.0
      %624 = vmatprep.subr.mxu0 0.0
      %625 = vmatpush1.msra.mxu0 0.0
      %626 = vmatprep.subr.mxu0 0.0
      %627 = vmatpush1.msra.mxu0 0.0
      %628 = vmatprep.subr.mxu0 0.0
      %629 = vmatpush1.msra.mxu0 0.0
      %630 = vmatprep.subr.mxu0 0.0
      %631 = vmatpush1.msra.mxu0 0.0
      %632 = vmatprep.mubr.f32.mxu0 0.0
      %633 = vmatmul.mubr.f32.gmra.mrb[0].mxu0 %v473
      %v634 = vpop.f32.mrb[0].mxu0
      %v635 = vadd.f32 0.0, %v634
      %v636 = vpop.f32.mrb[0].mxu0
      %637 = vmatprep.mubr.f32.mxu0 0.0
      %638 = vmatmul.mubr.f32.gmra.mrb[0].mxu0 %v476
      %v639 = vpop.f32.mrb[0].mxu0
      %v640 = vadd.f32 0.0, %v639
      %v641 = vpop.f32.mrb[0].mxu0
      %642 = vmatprep.mubr.f32.mxu0 0.0
      %643 = vmatmul.mubr.f32.gmra.mrb[0].mxu0 %v479
      %v644 = vpop.f32.mrb[0].mxu0
      %v645 = vadd.f32 0.0, %v644
      %v646 = vpop.f32.mrb[0].mxu0
      %647 = vmatprep.mubr.f32.mxu0 0.0
      %648 = vmatmul.mubr.f32.gmra.mrb[0].mxu0 %v482
      %v649 = vpop.f32.mrb[0].mxu0
      %v650 = vadd.f32 0.0, %v649
      %v651 = vpop.f32.mrb[0].mxu0
      %652 = vmatprep.mubr.f32.mxu0 0.0
      %653 = vmatmul.mubr.f32.gmra.mrb[0].mxu0 %v485
      %v654 = vpop.f32.mrb[0].mxu0
      %v655 = vadd.f32 0.0, %v654
      %v656 = vpop.f32.mrb[0].mxu0
      %657 = vmatprep.mubr.f32.mxu0 0.0
      %658 = vmatmul.mubr.f32.gmra.mrb[0].mxu0 %v488
      %v659 = vpop.f32.mrb[0].mxu0
      %v660 = vadd.f32 0.0, %v659
      %v661 = vpop.f32.mrb[0].mxu0
      %662 = vmatprep.mubr.f32.mxu0 0.0
      %663 = vmatmul.mubr.f32.gmra.mrb[0].mxu0 %v491
      %v664 = vpop.f32.mrb[0].mxu0
      %v665 = vadd.f32 0.0, %v664
      %v666 = vpop.f32.mrb[0].mxu0
      %667 = vmatprep.mubr.f32.mxu0 0.0
      %668 = vmatmul.mubr.f32.gmra.mrb[0].mxu0 %v494
      %v669 = vpop.f32.mrb[0].mxu0
      %v670 = vadd.f32 0.0, %v669
      %v671 = vpop.f32.mrb[0].mxu0
      %672 = vmatprep.mubr.f32.mxu0 0.0
      %673 = vmatmul.mubr.f32.gmra.mrb[0].mxu0 %v497
      %v674 = vpop.f32.mrb[0].mxu0
      %v675 = vadd.f32 0.0, %v674
      %v676 = vpop.f32.mrb[0].mxu0
      %677 = vmatprep.mubr.f32.mxu0 0.0
      %678 = vmatmul.mubr.f32.gmra.mrb[0].mxu0 %v500
      %v679 = vpop.f32.mrb[0].mxu0
      %v680 = vadd.f32 0.0, %v679
      %v681 = vpop.f32.mrb[0].mxu0
      %682 = vmatprep.mubr.f32.mxu0 0.0
      %683 = vmatmul.mubr.f32.gmra.mrb[0].mxu0 %v503
      %v684 = vpop.f32.mrb[0].mxu0
      %v685 = vadd.f32 0.0, %v684
      %v686 = vpop.f32.mrb[0].mxu0
      %687 = vmatprep.mubr.f32.mxu0 0.0
      %688 = vmatmul.mubr.f32.gmra.mrb[0].mxu0 %v506
      %v689 = vpop.f32.mrb[0].mxu0
      %v690 = vadd.f32 0.0, %v689
      %v691 = vpop.f32.mrb[0].mxu0
      %692 = vmatprep.mubr.f32.mxu0 0.0
      %693 = vmatmul.mubr.f32.gmra.mrb[0].mxu0 %v509
      %v694 = vpop.f32.mrb[0].mxu0
      %v695 = vadd.f32 0.0, %v694
      %v696 = vpop.f32.mrb[0].mxu0
      %697 = vmatprep.mubr.f32.mxu0 0.0
      %698 = vmatmul.mubr.f32.gmra.mrb[0].mxu0 %v512
      %v699 = vpop.f32.mrb[0].mxu0
      %v700 = vadd.f32 0.0, %v699
      %v701 = vpop.f32.mrb[0].mxu0
      %702 = vmatprep.mubr.f32.mxu0 0.0
      %703 = vmatmul.mubr.f32.gmra.mrb[0].mxu0 %v515
      %v704 = vpop.f32.mrb[0].mxu0
      %v705 = vadd.f32 0.0, %v704
      %v706 = vpop.f32.mrb[0].mxu0
      %707 = vmatprep.mubr.f32.mxu0 0.0
      %708 = vmatmul.mubr.f32.gmra.mrb[0].mxu0 %v518
      %v709 = vpop.f32.mrb[0].mxu0
      %v710 = vadd.f32 0.0, %v709
      %v711 = vpop.f32.mrb[0].mxu0
      %712 = vmatprep.mubr.f32.mxu0 0.0
      %713 = vmatmul.mubr.f32.gmra.mrb[0].mxu0 %v521
      %v714 = vpop.f32.mrb[0].mxu0
      %v715 = vadd.f32 0.0, %v714
      %v716 = vpop.f32.mrb[0].mxu0
      %717 = vmatprep.mubr.f32.mxu0 0.0
      %718 = vmatmul.mubr.f32.gmra.mrb[0].mxu0 %v524
      %v719 = vpop.f32.mrb[0].mxu0
      %v720 = vadd.f32 0.0, %v719
      %v721 = vpop.f32.mrb[0].mxu0
      %722 = vmatprep.mubr.f32.mxu0 0.0
      %723 = vmatmul.mubr.f32.gmra.mrb[0].mxu0 %v527
      %v724 = vpop.f32.mrb[0].mxu0
      %v725 = vadd.f32 0.0, %v724
      %v726 = vpop.f32.mrb[0].mxu0
      %727 = vmatprep.mubr.f32.mxu0 0.0
      %728 = vmatmul.mubr.f32.gmra.mrb[0].mxu0 %v530
      %v729 = vpop.f32.mrb[0].mxu0
      %v730 = vadd.f32 0.0, %v729
      %v731 = vpop.f32.mrb[0].mxu0
      %732 = vmatprep.mubr.f32.mxu0 0.0
      %733 = vmatmul.mubr.f32.gmra.mrb[0].mxu0 %v533
      %v734 = vpop.f32.mrb[0].mxu0
      %v735 = vadd.f32 0.0, %v734
      %v736 = vpop.f32.mrb[0].mxu0
      %737 = vmatprep.mubr.f32.mxu0 0.0
      %738 = vmatmul.mubr.f32.gmra.mrb[0].mxu0 %v536
      %v739 = vpop.f32.mrb[0].mxu0
      %v740 = vadd.f32 0.0, %v739
      %v741 = vpop.f32.mrb[0].mxu0
      %742 = vmatprep.mubr.f32.mxu0 0.0
      %743 = vmatmul.mubr.f32.gmra.mrb[0].mxu0 %v539
      %v744 = vpop.f32.mrb[0].mxu0
      %v745 = vadd.f32 0.0, %v744
      %v746 = vpop.f32.mrb[0].mxu0
      %747 = vmatprep.mubr.f32.mxu0 0.0
      %748 = vmatmul.mubr.f32.gmra.mrb[0].mxu0 %v542
      %v749 = vpop.f32.mrb[0].mxu0
      %v750 = vadd.f32 0.0, %v749
      %v751 = vpop.f32.mrb[0].mxu0
      %752 = vmatprep.mubr.f32.mxu0 0.0
      %753 = vmatmul.mubr.f32.gmra.mrb[0].mxu0 %v545
      %v754 = vpop.f32.mrb[0].mxu0
      %v755 = vadd.f32 0.0, %v754
      %v756 = vpop.f32.mrb[0].mxu0
      %757 = vmatprep.mubr.f32.mxu0 0.0
      %758 = vmatmul.mubr.f32.gmra.mrb[0].mxu0 %v548
      %v759 = vpop.f32.mrb[0].mxu0
      %v760 = vadd.f32 0.0, %v759
      %v761 = vpop.f32.mrb[0].mxu0
      %762 = vmatprep.mubr.f32.mxu0 0.0
      %763 = vmatmul.mubr.f32.gmra.mrb[0].mxu0 %v551
      %v764 = vpop.f32.mrb[0].mxu0
      %v765 = vadd.f32 0.0, %v764
      %v766 = vpop.f32.mrb[0].mxu0
      %767 = vmatprep.mubr.f32.mxu0 0.0
      %768 = vmatmul.mubr.f32.gmra.mrb[0].mxu0 %v554
      %v769 = vpop.f32.mrb[0].mxu0
      %v770 = vadd.f32 0.0, %v769
      %v771 = vpop.f32.mrb[0].mxu0
      %772 = vmatprep.mubr.f32.mxu0 0.0
      %773 = vmatmul.mubr.f32.gmra.mrb[0].mxu0 %v557
      %v774 = vpop.f32.mrb[0].mxu0
      %v775 = vadd.f32 0.0, %v774
      %v776 = vpop.f32.mrb[0].mxu0
      %777 = vmatprep.mubr.f32.mxu0 0.0
      %778 = vmatmul.mubr.f32.gmra.mrb[0].mxu0 %v560
      %v779 = vpop.f32.mrb[0].mxu0
      %v780 = vadd.f32 0.0, %v779
      %v781 = vpop.f32.mrb[0].mxu0
      %782 = vmatprep.mubr.f32.mxu0 0.0
      %783 = vmatmul.mubr.f32.gmra.mrb[0].mxu0 %v563
      %v784 = vpop.f32.mrb[0].mxu0
      %v785 = vadd.f32 0.0, %v784
      %v786 = vpop.f32.mrb[0].mxu0
      %787 = vmatprep.mubr.f32.mxu0 0.0
      %788 = vmatmul.mubr.f32.gmra.mrb[0].mxu0 %v566
      %v789 = vpop.f32.mrb[0].mxu0
      %v790 = vadd.f32 0.0, %v789
      %v791 = vpop.f32.mrb[0].mxu0
      %792 = vdwg.mxu0
      %v794 = vsel %vm471, %v171, 0
      %v797 = vsel %vm471, %v172, 0
      %v800 = vsel %vm471, %v173, 0
      %v803 = vsel %vm471, %v174, 0
      %v806 = vsel %vm471, %v175, 0
      %v809 = vsel %vm471, %v176, 0
      %v812 = vsel %vm471, %v177, 0
      %v815 = vsel %vm471, %v178, 0
      %v818 = vsel %vm471, %v179, 0
      %v821 = vsel %vm471, %v180, 0
      %v824 = vsel %vm471, %v181, 0
      %v827 = vsel %vm471, %v182, 0
      %v830 = vsel %vm471, %v183, 0
      %v833 = vsel %vm471, %v184, 0
      %v836 = vsel %vm471, %v185, 0
      %v839 = vsel %vm471, %v186, 0
      %v842 = vsel %vm471, %v187, 0
      %v845 = vsel %vm471, %v188, 0
      %v848 = vsel %vm471, %v189, 0
      %v851 = vsel %vm471, %v190, 0
      %v854 = vsel %vm471, %v191, 0
      %v857 = vsel %vm471, %v192, 0
      %v860 = vsel %vm471, %v193, 0
      %v863 = vsel %vm471, %v194, 0
      %v866 = vsel %vm471, %v195, 0
      %v869 = vsel %vm471, %v196, 0
      %v872 = vsel %vm471, %v197, 0
      %v875 = vsel %vm471, %v198, 0
      %v878 = vsel %vm471, %v199, 0
      %v881 = vsel %vm471, %v200, 0
      %v884 = vsel %vm471, %v201, 0
      %v887 = vsel %vm471, %v202, 0
      %889 = vmatprep.subr.mxu0 0.0
      %890 = vmatpush1.msra.mxu0 %v462
      %891 = vmatprep.subr.mxu0 0.0
      %892 = vmatpush1.msra.mxu0 %v463
      %893 = vmatprep.subr.mxu0 0.0
      %894 = vmatpush1.msra.mxu0 %v464
      %895 = vmatprep.subr.mxu0 0.0
      %896 = vmatpush1.msra.mxu0 %v465
      %897 = vmatprep.subr.mxu0 0.0
      %898 = vmatpush1.msra.mxu0 0.0
      %899 = vmatprep.subr.mxu0 0.0
      %900 = vmatpush1.msra.mxu0 0.0
      %901 = vmatprep.subr.mxu0 0.0
      %902 = vmatpush1.msra.mxu0 0.0
      %903 = vmatprep.subr.mxu0 0.0
      %904 = vmatpush1.msra.mxu0 0.0
      %905 = vmatprep.subr.mxu0 0.0
      %906 = vmatpush1.msra.mxu0 0.0
      %907 = vmatprep.subr.mxu0 0.0
      %908 = vmatpush1.msra.mxu0 0.0
      %909 = vmatprep.subr.mxu0 0.0
      %910 = vmatpush1.msra.mxu0 0.0
      %911 = vmatprep.subr.mxu0 0.0
      %912 = vmatpush1.msra.mxu0 0.0
      %913 = vmatprep.subr.mxu0 0.0
      %914 = vmatpush1.msra.mxu0 0.0
      %915 = vmatprep.subr.mxu0 0.0
      %916 = vmatpush1.msra.mxu0 0.0
      %917 = vmatprep.subr.mxu0 0.0
      %918 = vmatpush1.msra.mxu0 0.0
      %919 = vmatprep.subr.mxu0 0.0
      %920 = vmatpush1.msra.mxu0 0.0
      %921 = vmatprep.subr.mxu0 0.0
      %922 = vmatpush1.msra.mxu0 0.0
      %923 = vmatprep.subr.mxu0 0.0
      %924 = vmatpush1.msra.mxu0 0.0
      %925 = vmatprep.subr.mxu0 0.0
      %926 = vmatpush1.msra.mxu0 0.0
      %927 = vmatprep.subr.mxu0 0.0
      %928 = vmatpush1.msra.mxu0 0.0
      %929 = vmatprep.subr.mxu0 0.0
      %930 = vmatpush1.msra.mxu0 0.0
      %931 = vmatprep.subr.mxu0 0.0
      %932 = vmatpush1.msra.mxu0 0.0
      %933 = vmatprep.subr.mxu0 0.0
      %934 = vmatpush1.msra.mxu0 0.0
      %935 = vmatprep.subr.mxu0 0.0
      %936 = vmatpush1.msra.mxu0 0.0
      %937 = vmatprep.subr.mxu0 0.0
      %938 = vmatpush1.msra.mxu0 0.0
      %939 = vmatprep.subr.mxu0 0.0
      %940 = vmatpush1.msra.mxu0 0.0
      %941 = vmatprep.subr.mxu0 0.0
      %942 = vmatpush1.msra.mxu0 0.0
      %943 = vmatprep.subr.mxu0 0.0
      %944 = vmatpush1.msra.mxu0 0.0
      %945 = vmatprep.subr.mxu0 0.0
      %946 = vmatpush1.msra.mxu0 0.0
      %947 = vmatprep.subr.mxu0 0.0
      %948 = vmatpush1.msra.mxu0 0.0
      %949 = vmatprep.subr.mxu0 0.0
      %950 = vmatpush1.msra.mxu0 0.0
      %951 = vmatprep.subr.mxu0 0.0
      %952 = vmatpush1.msra.mxu0 0.0
      %953 = vmatprep.mubr.f32.mxu0 0.0
      %954 = vmatmul.mubr.f32.gmra.mrb[0].mxu0 %v794
      %v955 = vpop.f32.mrb[0].mxu0
      %v956 = vadd.f32 %v635, %v955
      %v957 = vpop.f32.mrb[0].mxu0
      %958 = vmatprep.mubr.f32.mxu0 0.0
      %959 = vmatmul.mubr.f32.gmra.mrb[0].mxu0 %v797
      %v960 = vpop.f32.mrb[0].mxu0
      %v961 = vadd.f32 %v640, %v960
      %v962 = vpop.f32.mrb[0].mxu0
      %963 = vmatprep.mubr.f32.mxu0 0.0
      %964 = vmatmul.mubr.f32.gmra.mrb[0].mxu0 %v800
      %v965 = vpop.f32.mrb[0].mxu0
      %v966 = vadd.f32 %v645, %v965
      %v967 = vpop.f32.mrb[0].mxu0
      %968 = vmatprep.mubr.f32.mxu0 0.0
      %969 = vmatmul.mubr.f32.gmra.mrb[0].mxu0 %v803
      %v970 = vpop.f32.mrb[0].mxu0
      %v971 = vadd.f32 %v650, %v970
      %v972 = vpop.f32.mrb[0].mxu0
      %973 = vmatprep.mubr.f32.mxu0 0.0
      %974 = vmatmul.mubr.f32.gmra.mrb[0].mxu0 %v806
      %v975 = vpop.f32.mrb[0].mxu0
      %v976 = vadd.f32 %v655, %v975
      %v977 = vpop.f32.mrb[0].mxu0
      %978 = vmatprep.mubr.f32.mxu0 0.0
      %979 = vmatmul.mubr.f32.gmra.mrb[0].mxu0 %v809
      %v980 = vpop.f32.mrb[0].mxu0
      %v981 = vadd.f32 %v660, %v980
      %v982 = vpop.f32.mrb[0].mxu0
      %983 = vmatprep.mubr.f32.mxu0 0.0
      %984 = vmatmul.mubr.f32.gmra.mrb[0].mxu0 %v812
      %v985 = vpop.f32.mrb[0].mxu0
      %v986 = vadd.f32 %v665, %v985
      %v987 = vpop.f32.mrb[0].mxu0
      %988 = vmatprep.mubr.f32.mxu0 0.0
      %989 = vmatmul.mubr.f32.gmra.mrb[0].mxu0 %v815
      %v990 = vpop.f32.mrb[0].mxu0
      %v991 = vadd.f32 %v670, %v990
      %v992 = vpop.f32.mrb[0].mxu0
      %993 = vmatprep.mubr.f32.mxu0 0.0
      %994 = vmatmul.mubr.f32.gmra.mrb[0].mxu0 %v818
      %v995 = vpop.f32.mrb[0].mxu0
      %v996 = vadd.f32 %v675, %v995
      %v997 = vpop.f32.mrb[0].mxu0
      %998 = vmatprep.mubr.f32.mxu0 0.0
      %999 = vmatmul.mubr.f32.gmra.mrb[0].mxu0 %v821
      %v1000 = vpop.f32.mrb[0].mxu0
      %v1001 = vadd.f32 %v680, %v1000
      %v1002 = vpop.f32.mrb[0].mxu0
      %1003 = vmatprep.mubr.f32.mxu0 0.0
      %1004 = vmatmul.mubr.f32.gmra.mrb[0].mxu0 %v824
      %v1005 = vpop.f32.mrb[0].mxu0
      %v1006 = vadd.f32 %v685, %v1005
      %v1007 = vpop.f32.mrb[0].mxu0
      %1008 = vmatprep.mubr.f32.mxu0 0.0
      %1009 = vmatmul.mubr.f32.gmra.mrb[0].mxu0 %v827
      %v1010 = vpop.f32.mrb[0].mxu0
      %v1011 = vadd.f32 %v690, %v1010
      %v1012 = vpop.f32.mrb[0].mxu0
      %1013 = vmatprep.mubr.f32.mxu0 0.0
      %1014 = vmatmul.mubr.f32.gmra.mrb[0].mxu0 %v830
      %v1015 = vpop.f32.mrb[0].mxu0
      %v1016 = vadd.f32 %v695, %v1015
      %v1017 = vpop.f32.mrb[0].mxu0
      %1018 = vmatprep.mubr.f32.mxu0 0.0
      %1019 = vmatmul.mubr.f32.gmra.mrb[0].mxu0 %v833
      %v1020 = vpop.f32.mrb[0].mxu0
      %v1021 = vadd.f32 %v700, %v1020
      %v1022 = vpop.f32.mrb[0].mxu0
      %1023 = vmatprep.mubr.f32.mxu0 0.0
      %1024 = vmatmul.mubr.f32.gmra.mrb[0].mxu0 %v836
      %v1025 = vpop.f32.mrb[0].mxu0
      %v1026 = vadd.f32 %v705, %v1025
      %v1027 = vpop.f32.mrb[0].mxu0
      %1028 = vmatprep.mubr.f32.mxu0 0.0
      %1029 = vmatmul.mubr.f32.gmra.mrb[0].mxu0 %v839
      %v1030 = vpop.f32.mrb[0].mxu0
      %v1031 = vadd.f32 %v710, %v1030
      %v1032 = vpop.f32.mrb[0].mxu0
      %1033 = vmatprep.mubr.f32.mxu0 0.0
      %1034 = vmatmul.mubr.f32.gmra.mrb[0].mxu0 %v842
      %v1035 = vpop.f32.mrb[0].mxu0
      %v1036 = vadd.f32 %v715, %v1035
      %v1037 = vpop.f32.mrb[0].mxu0
      %1038 = vmatprep.mubr.f32.mxu0 0.0
      %1039 = vmatmul.mubr.f32.gmra.mrb[0].mxu0 %v845
      %v1040 = vpop.f32.mrb[0].mxu0
      %v1041 = vadd.f32 %v720, %v1040
      %v1042 = vpop.f32.mrb[0].mxu0
      %1043 = vmatprep.mubr.f32.mxu0 0.0
      %1044 = vmatmul.mubr.f32.gmra.mrb[0].mxu0 %v848
      %v1045 = vpop.f32.mrb[0].mxu0
      %v1046 = vadd.f32 %v725, %v1045
      %v1047 = vpop.f32.mrb[0].mxu0
      %1048 = vmatprep.mubr.f32.mxu0 0.0
      %1049 = vmatmul.mubr.f32.gmra.mrb[0].mxu0 %v851
      %v1050 = vpop.f32.mrb[0].mxu0
      %v1051 = vadd.f32 %v730, %v1050
      %v1052 = vpop.f32.mrb[0].mxu0
      %1053 = vmatprep.mubr.f32.mxu0 0.0
      %1054 = vmatmul.mubr.f32.gmra.mrb[0].mxu0 %v854
      %v1055 = vpop.f32.mrb[0].mxu0
      %v1056 = vadd.f32 %v735, %v1055
      %v1057 = vpop.f32.mrb[0].mxu0
      %1058 = vmatprep.mubr.f32.mxu0 0.0
      %1059 = vmatmul.mubr.f32.gmra.mrb[0].mxu0 %v857
      %v1060 = vpop.f32.mrb[0].mxu0
      %v1061 = vadd.f32 %v740, %v1060
      %v1062 = vpop.f32.mrb[0].mxu0
      %1063 = vmatprep.mubr.f32.mxu0 0.0
      %1064 = vmatmul.mubr.f32.gmra.mrb[0].mxu0 %v860
      %v1065 = vpop.f32.mrb[0].mxu0
      %v1066 = vadd.f32 %v745, %v1065
      %v1067 = vpop.f32.mrb[0].mxu0
      %1068 = vmatprep.mubr.f32.mxu0 0.0
      %1069 = vmatmul.mubr.f32.gmra.mrb[0].mxu0 %v863
      %v1070 = vpop.f32.mrb[0].mxu0
      %v1071 = vadd.f32 %v750, %v1070
      %v1072 = vpop.f32.mrb[0].mxu0
      %1073 = vmatprep.mubr.f32.mxu0 0.0
      %1074 = vmatmul.mubr.f32.gmra.mrb[0].mxu0 %v866
      %v1075 = vpop.f32.mrb[0].mxu0
      %v1076 = vadd.f32 %v755, %v1075
      %v1077 = vpop.f32.mrb[0].mxu0
      %1078 = vmatprep.mubr.f32.mxu0 0.0
      %1079 = vmatmul.mubr.f32.gmra.mrb[0].mxu0 %v869
      %v1080 = vpop.f32.mrb[0].mxu0
      %v1081 = vadd.f32 %v760, %v1080
      %v1082 = vpop.f32.mrb[0].mxu0
      %1083 = vmatprep.mubr.f32.mxu0 0.0
      %1084 = vmatmul.mubr.f32.gmra.mrb[0].mxu0 %v872
      %v1085 = vpop.f32.mrb[0].mxu0
      %v1086 = vadd.f32 %v765, %v1085
      %v1087 = vpop.f32.mrb[0].mxu0
      %1088 = vmatprep.mubr.f32.mxu0 0.0
      %1089 = vmatmul.mubr.f32.gmra.mrb[0].mxu0 %v875
      %v1090 = vpop.f32.mrb[0].mxu0
      %v1091 = vadd.f32 %v770, %v1090
      %v1092 = vpop.f32.mrb[0].mxu0
      %1093 = vmatprep.mubr.f32.mxu0 0.0
      %1094 = vmatmul.mubr.f32.gmra.mrb[0].mxu0 %v878
      %v1095 = vpop.f32.mrb[0].mxu0
      %v1096 = vadd.f32 %v775, %v1095
      %v1097 = vpop.f32.mrb[0].mxu0
      %1098 = vmatprep.mubr.f32.mxu0 0.0
      %1099 = vmatmul.mubr.f32.gmra.mrb[0].mxu0 %v881
      %v1100 = vpop.f32.mrb[0].mxu0
      %v1101 = vadd.f32 %v780, %v1100
      %v1102 = vpop.f32.mrb[0].mxu0
      %1103 = vmatprep.mubr.f32.mxu0 0.0
      %1104 = vmatmul.mubr.f32.gmra.mrb[0].mxu0 %v884
      %v1105 = vpop.f32.mrb[0].mxu0
      %v1106 = vadd.f32 %v785, %v1105
      %v1107 = vpop.f32.mrb[0].mxu0
      %1108 = vmatprep.mubr.f32.mxu0 0.0
      %1109 = vmatmul.mubr.f32.gmra.mrb[0].mxu0 %v887
      %v1110 = vpop.f32.mrb[0].mxu0
      %v1111 = vadd.f32 %v790, %v1110
      %v1112 = vpop.f32.mrb[0].mxu0
      %1113 = vdwg.mxu0
      %s1114 = scalar_lea.vmem %s1, 64
      %v1115 = vld [vmem:[%s1114] sm:$0xff]
      %v1116 = vld [vmem:[%s1114 + $0x8] sm:$0xff]
      %v1117 = vld [vmem:[%s1114 + $0x10] sm:$0xff]
      %v1118 = vld [vmem:[%s1114 + $0x18] sm:$0xff]
      %v1120 = vsel %vm471, %v268, 0
      %v1123 = vsel %vm471, %v269, 0
      %v1126 = vsel %vm471, %v270, 0
      %v1129 = vsel %vm471, %v271, 0
      %v1132 = vsel %vm471, %v272, 0
      %v1135 = vsel %vm471, %v273, 0
      %v1138 = vsel %vm471, %v274, 0
      %v1141 = vsel %vm471, %v275, 0
      %v1144 = vsel %vm471, %v276, 0
      %v1147 = vsel %vm471, %v277, 0
      %v1150 = vsel %vm471, %v278, 0
      %v1153 = vsel %vm471, %v279, 0
      %v1156 = vsel %vm471, %v280, 0
      %v1159 = vsel %vm471, %v281, 0
      %v1162 = vsel %vm471, %v282, 0
      %v1165 = vsel %vm471, %v283, 0
      %v1168 = vsel %vm471, %v284, 0
      %v1171 = vsel %vm471, %v285, 0
      %v1174 = vsel %vm471, %v286, 0
      %v1177 = vsel %vm471, %v287, 0
      %v1180 = vsel %vm471, %v288, 0
      %v1183 = vsel %vm471, %v289, 0
      %v1186 = vsel %vm471, %v290, 0
      %v1189 = vsel %vm471, %v291, 0
      %v1192 = vsel %vm471, %v292, 0
      %v1195 = vsel %vm471, %v293, 0
      %v1198 = vsel %vm471, %v294, 0
      %v1201 = vsel %vm471, %v295, 0
      %v1204 = vsel %vm471, %v296, 0
      %v1207 = vsel %vm471, %v297, 0
      %v1210 = vsel %vm471, %v298, 0
      %v1213 = vsel %vm471, %v299, 0
      %1215 = vmatprep.subr.mxu0 0.0
      %1216 = vmatpush1.msra.mxu0 %v1115
      %1217 = vmatprep.subr.mxu0 0.0
      %1218 = vmatpush1.msra.mxu0 %v1116
      %1219 = vmatprep.subr.mxu0 0.0
      %1220 = vmatpush1.msra.mxu0 %v1117
      %1221 = vmatprep.subr.mxu0 0.0
      %1222 = vmatpush1.msra.mxu0 %v1118
      %1223 = vmatprep.subr.mxu0 0.0
      %1224 = vmatpush1.msra.mxu0 0.0
      %1225 = vmatprep.subr.mxu0 0.0
      %1226 = vmatpush1.msra.mxu0 0.0
      %1227 = vmatprep.subr.mxu0 0.0
      %1228 = vmatpush1.msra.mxu0 0.0
      %1229 = vmatprep.subr.mxu0 0.0
      %1230 = vmatpush1.msra.mxu0 0.0
      %1231 = vmatprep.subr.mxu0 0.0
      %1232 = vmatpush1.msra.mxu0 0.0
      %1233 = vmatprep.subr.mxu0 0.0
      %1234 = vmatpush1.msra.mxu0 0.0
      %1235 = vmatprep.subr.mxu0 0.0
      %1236 = vmatpush1.msra.mxu0 0.0
      %1237 = vmatprep.subr.mxu0 0.0
      %1238 = vmatpush1.msra.mxu0 0.0
      %1239 = vmatprep.subr.mxu0 0.0
      %1240 = vmatpush1.msra.mxu0 0.0
      %1241 = vmatprep.subr.mxu0 0.0
      %1242 = vmatpush1.msra.mxu0 0.0
      %1243 = vmatprep.subr.mxu0 0.0
      %1244 = vmatpush1.msra.mxu0 0.0
      %1245 = vmatprep.subr.mxu0 0.0
      %1246 = vmatpush1.msra.mxu0 0.0
      %1247 = vmatprep.subr.mxu0 0.0
      %1248 = vmatpush1.msra.mxu0 0.0
      %1249 = vmatprep.subr.mxu0 0.0
      %1250 = vmatpush1.msra.mxu0 0.0
      %1251 = vmatprep.subr.mxu0 0.0
      %1252 = vmatpush1.msra.mxu0 0.0
      %1253 = vmatprep.subr.mxu0 0.0
      %1254 = vmatpush1.msra.mxu0 0.0
      %1255 = vmatprep.subr.mxu0 0.0
      %1256 = vmatpush1.msra.mxu0 0.0
      %1257 = vmatprep.subr.mxu0 0.0
      %1258 = vmatpush1.msra.mxu0 0.0
      %1259 = vmatprep.subr.mxu0 0.0
      %1260 = vmatpush1.msra.mxu0 0.0
      %1261 = vmatprep.subr.mxu0 0.0
      %1262 = vmatpush1.msra.mxu0 0.0
      %1263 = vmatprep.subr.mxu0 0.0
      %1264 = vmatpush1.msra.mxu0 0.0
      %1265 = vmatprep.subr.mxu0 0.0
      %1266 = vmatpush1.msra.mxu0 0.0
      %1267 = vmatprep.subr.mxu0 0.0
      %1268 = vmatpush1.msra.mxu0 0.0
      %1269 = vmatprep.subr.mxu0 0.0
      %1270 = vmatpush1.msra.mxu0 0.0
      %1271 = vmatprep.subr.mxu0 0.0
      %1272 = vmatpush1.msra.mxu0 0.0
      %1273 = vmatprep.subr.mxu0 0.0
      %1274 = vmatpush1.msra.mxu0 0.0
      %1275 = vmatprep.subr.mxu0 0.0
      %1276 = vmatpush1.msra.mxu0 0.0
      %1277 = vmatprep.subr.mxu0 0.0
      %1278 = vmatpush1.msra.mxu0 0.0
      %1279 = vmatprep.mubr.f32.mxu0 0.0
      %1280 = vmatmul.mubr.f32.gmra.mrb[0].mxu0 %v1120
      %v1281 = vpop.f32.mrb[0].mxu0
      %v1282 = vadd.f32 0.0, %v1281
      %v1283 = vpop.f32.mrb[0].mxu0
      %1284 = vmatprep.mubr.f32.mxu0 0.0
      %1285 = vmatmul.mubr.f32.gmra.mrb[0].mxu0 %v1123
      %v1286 = vpop.f32.mrb[0].mxu0
      %v1287 = vadd.f32 0.0, %v1286
      %v1288 = vpop.f32.mrb[0].mxu0
      %1289 = vmatprep.mubr.f32.mxu0 0.0
      %1290 = vmatmul.mubr.f32.gmra.mrb[0].mxu0 %v1126
      %v1291 = vpop.f32.mrb[0].mxu0
      %v1292 = vadd.f32 0.0, %v1291
      %v1293 = vpop.f32.mrb[0].mxu0
      %1294 = vmatprep.mubr.f32.mxu0 0.0
      %1295 = vmatmul.mubr.f32.gmra.mrb[0].mxu0 %v1129
      %v1296 = vpop.f32.mrb[0].mxu0
      %v1297 = vadd.f32 0.0, %v1296
      %v1298 = vpop.f32.mrb[0].mxu0
      %1299 = vmatprep.mubr.f32.mxu0 0.0
      %1300 = vmatmul.mubr.f32.gmra.mrb[0].mxu0 %v1132
      %v1301 = vpop.f32.mrb[0].mxu0
      %v1302 = vadd.f32 0.0, %v1301
      %v1303 = vpop.f32.mrb[0].mxu0
      %1304 = vmatprep.mubr.f32.mxu0 0.0
      %1305 = vmatmul.mubr.f32.gmra.mrb[0].mxu0 %v1135
      %v1306 = vpop.f32.mrb[0].mxu0
      %v1307 = vadd.f32 0.0, %v1306
      %v1308 = vpop.f32.mrb[0].mxu0
      %1309 = vmatprep.mubr.f32.mxu0 0.0
      %1310 = vmatmul.mubr.f32.gmra.mrb[0].mxu0 %v1138
      %v1311 = vpop.f32.mrb[0].mxu0
      %v1312 = vadd.f32 0.0, %v1311
      %v1313 = vpop.f32.mrb[0].mxu0
      %1314 = vmatprep.mubr.f32.mxu0 0.0
      %1315 = vmatmul.mubr.f32.gmra.mrb[0].mxu0 %v1141
      %v1316 = vpop.f32.mrb[0].mxu0
      %v1317 = vadd.f32 0.0, %v1316
      %v1318 = vpop.f32.mrb[0].mxu0
      %1319 = vmatprep.mubr.f32.mxu0 0.0
      %1320 = vmatmul.mubr.f32.gmra.mrb[0].mxu0 %v1144
      %v1321 = vpop.f32.mrb[0].mxu0
      %v1322 = vadd.f32 0.0, %v1321
      %v1323 = vpop.f32.mrb[0].mxu0
      %1324 = vmatprep.mubr.f32.mxu0 0.0
      %1325 = vmatmul.mubr.f32.gmra.mrb[0].mxu0 %v1147
      %v1326 = vpop.f32.mrb[0].mxu0
      %v1327 = vadd.f32 0.0, %v1326
      %v1328 = vpop.f32.mrb[0].mxu0
      %1329 = vmatprep.mubr.f32.mxu0 0.0
      %1330 = vmatmul.mubr.f32.gmra.mrb[0].mxu0 %v1150
      %v1331 = vpop.f32.mrb[0].mxu0
      %v1332 = vadd.f32 0.0, %v1331
      %v1333 = vpop.f32.mrb[0].mxu0
      %1334 = vmatprep.mubr.f32.mxu0 0.0
      %1335 = vmatmul.mubr.f32.gmra.mrb[0].mxu0 %v1153
      %v1336 = vpop.f32.mrb[0].mxu0
      %v1337 = vadd.f32 0.0, %v1336
      %v1338 = vpop.f32.mrb[0].mxu0
      %1339 = vmatprep.mubr.f32.mxu0 0.0
      %1340 = vmatmul.mubr.f32.gmra.mrb[0].mxu0 %v1156
      %v1341 = vpop.f32.mrb[0].mxu0
      %v1342 = vadd.f32 0.0, %v1341
      %v1343 = vpop.f32.mrb[0].mxu0
      %1344 = vmatprep.mubr.f32.mxu0 0.0
      %1345 = vmatmul.mubr.f32.gmra.mrb[0].mxu0 %v1159
      %v1346 = vpop.f32.mrb[0].mxu0
      %v1347 = vadd.f32 0.0, %v1346
      %v1348 = vpop.f32.mrb[0].mxu0
      %1349 = vmatprep.mubr.f32.mxu0 0.0
      %1350 = vmatmul.mubr.f32.gmra.mrb[0].mxu0 %v1162
      %v1351 = vpop.f32.mrb[0].mxu0
      %v1352 = vadd.f32 0.0, %v1351
      %v1353 = vpop.f32.mrb[0].mxu0
      %1354 = vmatprep.mubr.f32.mxu0 0.0
      %1355 = vmatmul.mubr.f32.gmra.mrb[0].mxu0 %v1165
      %v1356 = vpop.f32.mrb[0].mxu0
      %v1357 = vadd.f32 0.0, %v1356
      %v1358 = vpop.f32.mrb[0].mxu0
      %1359 = vmatprep.mubr.f32.mxu0 0.0
      %1360 = vmatmul.mubr.f32.gmra.mrb[0].mxu0 %v1168
      %v1361 = vpop.f32.mrb[0].mxu0
      %v1362 = vadd.f32 0.0, %v1361
      %v1363 = vpop.f32.mrb[0].mxu0
      %1364 = vmatprep.mubr.f32.mxu0 0.0
      %1365 = vmatmul.mubr.f32.gmra.mrb[0].mxu0 %v1171
      %v1366 = vpop.f32.mrb[0].mxu0
      %v1367 = vadd.f32 0.0, %v1366
      %v1368 = vpop.f32.mrb[0].mxu0
      %1369 = vmatprep.mubr.f32.mxu0 0.0
      %1370 = vmatmul.mubr.f32.gmra.mrb[0].mxu0 %v1174
      %v1371 = vpop.f32.mrb[0].mxu0
      %v1372 = vadd.f32 0.0, %v1371
      %v1373 = vpop.f32.mrb[0].mxu0
      %1374 = vmatprep.mubr.f32.mxu0 0.0
      %1375 = vmatmul.mubr.f32.gmra.mrb[0].mxu0 %v1177
      %v1376 = vpop.f32.mrb[0].mxu0
      %v1377 = vadd.f32 0.0, %v1376
      %v1378 = vpop.f32.mrb[0].mxu0
      %1379 = vmatprep.mubr.f32.mxu0 0.0
      %1380 = vmatmul.mubr.f32.gmra.mrb[0].mxu0 %v1180
      %v1381 = vpop.f32.mrb[0].mxu0
      %v1382 = vadd.f32 0.0, %v1381
      %v1383 = vpop.f32.mrb[0].mxu0
      %1384 = vmatprep.mubr.f32.mxu0 0.0
      %1385 = vmatmul.mubr.f32.gmra.mrb[0].mxu0 %v1183
      %v1386 = vpop.f32.mrb[0].mxu0
      %v1387 = vadd.f32 0.0, %v1386
      %v1388 = vpop.f32.mrb[0].mxu0
      %1389 = vmatprep.mubr.f32.mxu0 0.0
      %1390 = vmatmul.mubr.f32.gmra.mrb[0].mxu0 %v1186
      %v1391 = vpop.f32.mrb[0].mxu0
      %v1392 = vadd.f32 0.0, %v1391
      %v1393 = vpop.f32.mrb[0].mxu0
      %1394 = vmatprep.mubr.f32.mxu0 0.0
      %1395 = vmatmul.mubr.f32.gmra.mrb[0].mxu0 %v1189
      %v1396 = vpop.f32.mrb[0].mxu0
      %v1397 = vadd.f32 0.0, %v1396
      %v1398 = vpop.f32.mrb[0].mxu0
      %1399 = vmatprep.mubr.f32.mxu0 0.0
      %1400 = vmatmul.mubr.f32.gmra.mrb[0].mxu0 %v1192
      %v1401 = vpop.f32.mrb[0].mxu0
      %v1402 = vadd.f32 0.0, %v1401
      %v1403 = vpop.f32.mrb[0].mxu0
      %1404 = vmatprep.mubr.f32.mxu0 0.0
      %1405 = vmatmul.mubr.f32.gmra.mrb[0].mxu0 %v1195
      %v1406 = vpop.f32.mrb[0].mxu0
      %v1407 = vadd.f32 0.0, %v1406
      %v1408 = vpop.f32.mrb[0].mxu0
      %1409 = vmatprep.mubr.f32.mxu0 0.0
      %1410 = vmatmul.mubr.f32.gmra.mrb[0].mxu0 %v1198
      %v1411 = vpop.f32.mrb[0].mxu0
      %v1412 = vadd.f32 0.0, %v1411
      %v1413 = vpop.f32.mrb[0].mxu0
      %1414 = vmatprep.mubr.f32.mxu0 0.0
      %1415 = vmatmul.mubr.f32.gmra.mrb[0].mxu0 %v1201
      %v1416 = vpop.f32.mrb[0].mxu0
      %v1417 = vadd.f32 0.0, %v1416
      %v1418 = vpop.f32.mrb[0].mxu0
      %1419 = vmatprep.mubr.f32.mxu0 0.0
      %1420 = vmatmul.mubr.f32.gmra.mrb[0].mxu0 %v1204
      %v1421 = vpop.f32.mrb[0].mxu0
      %v1422 = vadd.f32 0.0, %v1421
      %v1423 = vpop.f32.mrb[0].mxu0
      %1424 = vmatprep.mubr.f32.mxu0 0.0
      %1425 = vmatmul.mubr.f32.gmra.mrb[0].mxu0 %v1207
      %v1426 = vpop.f32.mrb[0].mxu0
      %v1427 = vadd.f32 0.0, %v1426
      %v1428 = vpop.f32.mrb[0].mxu0
      %1429 = vmatprep.mubr.f32.mxu0 0.0
      %1430 = vmatmul.mubr.f32.gmra.mrb[0].mxu0 %v1210
      %v1431 = vpop.f32.mrb[0].mxu0
      %v1432 = vadd.f32 0.0, %v1431
      %v1433 = vpop.f32.mrb[0].mxu0
      %1434 = vmatprep.mubr.f32.mxu0 0.0
      %1435 = vmatmul.mubr.f32.gmra.mrb[0].mxu0 %v1213
      %v1436 = vpop.f32.mrb[0].mxu0
      %v1437 = vadd.f32 0.0, %v1436
      %v1438 = vpop.f32.mrb[0].mxu0
      %1439 = vdwg.mxu0
      %v1440 = vadd.f32 %v956, %v1282
      %v1441 = vadd.f32 %v961, %v1287
      %v1442 = vadd.f32 %v966, %v1292
      %v1443 = vadd.f32 %v971, %v1297
      %v1444 = vadd.f32 %v976, %v1302
      %v1445 = vadd.f32 %v981, %v1307
      %v1446 = vadd.f32 %v986, %v1312
      %v1447 = vadd.f32 %v991, %v1317
      %v1448 = vadd.f32 %v996, %v1322
      %v1449 = vadd.f32 %v1001, %v1327
      %v1450 = vadd.f32 %v1006, %v1332
      %v1451 = vadd.f32 %v1011, %v1337
      %v1452 = vadd.f32 %v1016, %v1342
      %v1453 = vadd.f32 %v1021, %v1347
      %v1454 = vadd.f32 %v1026, %v1352
      %v1455 = vadd.f32 %v1031, %v1357
      %v1456 = vadd.f32 %v1036, %v1362
      %v1457 = vadd.f32 %v1041, %v1367
      %v1458 = vadd.f32 %v1046, %v1372
      %v1459 = vadd.f32 %v1051, %v1377
      %v1460 = vadd.f32 %v1056, %v1382
      %v1461 = vadd.f32 %v1061, %v1387
      %v1462 = vadd.f32 %v1066, %v1392
      %v1463 = vadd.f32 %v1071, %v1397
      %v1464 = vadd.f32 %v1076, %v1402
      %v1465 = vadd.f32 %v1081, %v1407
      %v1466 = vadd.f32 %v1086, %v1412
      %v1467 = vadd.f32 %v1091, %v1417
      %v1468 = vadd.f32 %v1096, %v1422
      %v1469 = vadd.f32 %v1101, %v1427
      %v1470 = vadd.f32 %v1106, %v1432
      %v1471 = vadd.f32 %v1111, %v1437
      %s1472 = scalar_lea.vmem %s1, 96
      %v1473 = vld [vmem:[%s1472] sm:$0xff]
      %v1474 = vld [vmem:[%s1472 + $0x8] sm:$0xff]
      %v1475 = vld [vmem:[%s1472 + $0x10] sm:$0xff]
      %v1476 = vld [vmem:[%s1472 + $0x18] sm:$0xff]
      %v1478 = vsel %vm471, %v300, 0
      %v1481 = vsel %vm471, %v301, 0
      %v1484 = vsel %vm471, %v302, 0
      %v1487 = vsel %vm471, %v303, 0
      %v1490 = vsel %vm471, %v304, 0
      %v1493 = vsel %vm471, %v305, 0
      %v1496 = vsel %vm471, %v306, 0
      %v1499 = vsel %vm471, %v307, 0
      %v1502 = vsel %vm471, %v308, 0
      %v1505 = vsel %vm471, %v309, 0
      %v1508 = vsel %vm471, %v310, 0
      %v1511 = vsel %vm471, %v311, 0
      %v1514 = vsel %vm471, %v312, 0
      %v1517 = vsel %vm471, %v313, 0
      %v1520 = vsel %vm471, %v314, 0
      %v1523 = vsel %vm471, %v315, 0
      %v1526 = vsel %vm471, %v316, 0
      %v1529 = vsel %vm471, %v317, 0
      %v1532 = vsel %vm471, %v318, 0
      %v1535 = vsel %vm471, %v319, 0
      %v1538 = vsel %vm471, %v320, 0
      %v1541 = vsel %vm471, %v321, 0
      %v1544 = vsel %vm471, %v322, 0
      %v1547 = vsel %vm471, %v323, 0
      %v1550 = vsel %vm471, %v324, 0
      %v1553 = vsel %vm471, %v325, 0
      %v1556 = vsel %vm471, %v326, 0
      %v1559 = vsel %vm471, %v327, 0
      %v1562 = vsel %vm471, %v328, 0
      %v1565 = vsel %vm471, %v329, 0
      %v1568 = vsel %vm471, %v330, 0
      %v1571 = vsel %vm471, %v331, 0
      %1573 = vmatprep.subr.mxu0 0.0
      %1574 = vmatpush1.msra.mxu0 %v1473
      %1575 = vmatprep.subr.mxu0 0.0
      %1576 = vmatpush1.msra.mxu0 %v1474
      %1577 = vmatprep.subr.mxu0 0.0
      %1578 = vmatpush1.msra.mxu0 %v1475
      %1579 = vmatprep.subr.mxu0 0.0
      %1580 = vmatpush1.msra.mxu0 %v1476
      %1581 = vmatprep.subr.mxu0 0.0
      %1582 = vmatpush1.msra.mxu0 0.0
      %1583 = vmatprep.subr.mxu0 0.0
      %1584 = vmatpush1.msra.mxu0 0.0
      %1585 = vmatprep.subr.mxu0 0.0
      %1586 = vmatpush1.msra.mxu0 0.0
      %1587 = vmatprep.subr.mxu0 0.0
      %1588 = vmatpush1.msra.mxu0 0.0
      %1589 = vmatprep.subr.mxu0 0.0
      %1590 = vmatpush1.msra.mxu0 0.0
      %1591 = vmatprep.subr.mxu0 0.0
      %1592 = vmatpush1.msra.mxu0 0.0
      %1593 = vmatprep.subr.mxu0 0.0
      %1594 = vmatpush1.msra.mxu0 0.0
      %1595 = vmatprep.subr.mxu0 0.0
      %1596 = vmatpush1.msra.mxu0 0.0
      %1597 = vmatprep.subr.mxu0 0.0
      %1598 = vmatpush1.msra.mxu0 0.0
      %1599 = vmatprep.subr.mxu0 0.0
      %1600 = vmatpush1.msra.mxu0 0.0
      %1601 = vmatprep.subr.mxu0 0.0
      %1602 = vmatpush1.msra.mxu0 0.0
      %1603 = vmatprep.subr.mxu0 0.0
      %1604 = vmatpush1.msra.mxu0 0.0
      %1605 = vmatprep.subr.mxu0 0.0
      %1606 = vmatpush1.msra.mxu0 0.0
      %1607 = vmatprep.subr.mxu0 0.0
      %1608 = vmatpush1.msra.mxu0 0.0
      %1609 = vmatprep.subr.mxu0 0.0
      %1610 = vmatpush1.msra.mxu0 0.0
      %1611 = vmatprep.subr.mxu0 0.0
      %1612 = vmatpush1.msra.mxu0 0.0
      %1613 = vmatprep.subr.mxu0 0.0
      %1614 = vmatpush1.msra.mxu0 0.0
      %1615 = vmatprep.subr.mxu0 0.0
      %1616 = vmatpush1.msra.mxu0 0.0
      %1617 = vmatprep.subr.mxu0 0.0
      %1618 = vmatpush1.msra.mxu0 0.0
      %1619 = vmatprep.subr.mxu0 0.0
      %1620 = vmatpush1.msra.mxu0 0.0
      %1621 = vmatprep.subr.mxu0 0.0
      %1622 = vmatpush1.msra.mxu0 0.0
      %1623 = vmatprep.subr.mxu0 0.0
      %1624 = vmatpush1.msra.mxu0 0.0
      %1625 = vmatprep.subr.mxu0 0.0
      %1626 = vmatpush1.msra.mxu0 0.0
      %1627 = vmatprep.subr.mxu0 0.0
      %1628 = vmatpush1.msra.mxu0 0.0
      %1629 = vmatprep.subr.mxu0 0.0
      %1630 = vmatpush1.msra.mxu0 0.0
      %1631 = vmatprep.subr.mxu0 0.0
      %1632 = vmatpush1.msra.mxu0 0.0
      %1633 = vmatprep.subr.mxu0 0.0
      %1634 = vmatpush1.msra.mxu0 0.0
      %1635 = vmatprep.subr.mxu0 0.0
      %1636 = vmatpush1.msra.mxu0 0.0
      %1637 = vmatprep.mubr.f32.mxu0 0.0
      %1638 = vmatmul.mubr.f32.gmra.mrb[0].mxu0 %v1478
      %v1639 = vpop.f32.mrb[0].mxu0
      %v1640 = vadd.f32 0.0, %v1639
      %v1641 = vpop.f32.mrb[0].mxu0
      %1642 = vmatprep.mubr.f32.mxu0 0.0
      %1643 = vmatmul.mubr.f32.gmra.mrb[0].mxu0 %v1481
      %v1644 = vpop.f32.mrb[0].mxu0
      %v1645 = vadd.f32 0.0, %v1644
      %v1646 = vpop.f32.mrb[0].mxu0
      %1647 = vmatprep.mubr.f32.mxu0 0.0
      %1648 = vmatmul.mubr.f32.gmra.mrb[0].mxu0 %v1484
      %v1649 = vpop.f32.mrb[0].mxu0
      %v1650 = vadd.f32 0.0, %v1649
      %v1651 = vpop.f32.mrb[0].mxu0
      %1652 = vmatprep.mubr.f32.mxu0 0.0
      %1653 = vmatmul.mubr.f32.gmra.mrb[0].mxu0 %v1487
      %v1654 = vpop.f32.mrb[0].mxu0
      %v1655 = vadd.f32 0.0, %v1654
      %v1656 = vpop.f32.mrb[0].mxu0
      %1657 = vmatprep.mubr.f32.mxu0 0.0
      %1658 = vmatmul.mubr.f32.gmra.mrb[0].mxu0 %v1490
      %v1659 = vpop.f32.mrb[0].mxu0
      %v1660 = vadd.f32 0.0, %v1659
      %v1661 = vpop.f32.mrb[0].mxu0
      %1662 = vmatprep.mubr.f32.mxu0 0.0
      %1663 = vmatmul.mubr.f32.gmra.mrb[0].mxu0 %v1493
      %v1664 = vpop.f32.mrb[0].mxu0
      %v1665 = vadd.f32 0.0, %v1664
      %v1666 = vpop.f32.mrb[0].mxu0
      %1667 = vmatprep.mubr.f32.mxu0 0.0
      %1668 = vmatmul.mubr.f32.gmra.mrb[0].mxu0 %v1496
      %v1669 = vpop.f32.mrb[0].mxu0
      %v1670 = vadd.f32 0.0, %v1669
      %v1671 = vpop.f32.mrb[0].mxu0
      %1672 = vmatprep.mubr.f32.mxu0 0.0
      %1673 = vmatmul.mubr.f32.gmra.mrb[0].mxu0 %v1499
      %v1674 = vpop.f32.mrb[0].mxu0
      %v1675 = vadd.f32 0.0, %v1674
      %v1676 = vpop.f32.mrb[0].mxu0
      %1677 = vmatprep.mubr.f32.mxu0 0.0
      %1678 = vmatmul.mubr.f32.gmra.mrb[0].mxu0 %v1502
      %v1679 = vpop.f32.mrb[0].mxu0
      %v1680 = vadd.f32 0.0, %v1679
      %v1681 = vpop.f32.mrb[0].mxu0
      %1682 = vmatprep.mubr.f32.mxu0 0.0
      %1683 = vmatmul.mubr.f32.gmra.mrb[0].mxu0 %v1505
      %v1684 = vpop.f32.mrb[0].mxu0
      %v1685 = vadd.f32 0.0, %v1684
      %v1686 = vpop.f32.mrb[0].mxu0
      %1687 = vmatprep.mubr.f32.mxu0 0.0
      %1688 = vmatmul.mubr.f32.gmra.mrb[0].mxu0 %v1508
      %v1689 = vpop.f32.mrb[0].mxu0
      %v1690 = vadd.f32 0.0, %v1689
      %v1691 = vpop.f32.mrb[0].mxu0
      %1692 = vmatprep.mubr.f32.mxu0 0.0
      %1693 = vmatmul.mubr.f32.gmra.mrb[0].mxu0 %v1511
      %v1694 = vpop.f32.mrb[0].mxu0
      %v1695 = vadd.f32 0.0, %v1694
      %v1696 = vpop.f32.mrb[0].mxu0
      %1697 = vmatprep.mubr.f32.mxu0 0.0
      %1698 = vmatmul.mubr.f32.gmra.mrb[0].mxu0 %v1514
      %v1699 = vpop.f32.mrb[0].mxu0
      %v1700 = vadd.f32 0.0, %v1699
      %v1701 = vpop.f32.mrb[0].mxu0
      %1702 = vmatprep.mubr.f32.mxu0 0.0
      %1703 = vmatmul.mubr.f32.gmra.mrb[0].mxu0 %v1517
      %v1704 = vpop.f32.mrb[0].mxu0
      %v1705 = vadd.f32 0.0, %v1704
      %v1706 = vpop.f32.mrb[0].mxu0
      %1707 = vmatprep.mubr.f32.mxu0 0.0
      %1708 = vmatmul.mubr.f32.gmra.mrb[0].mxu0 %v1520
      %v1709 = vpop.f32.mrb[0].mxu0
      %v1710 = vadd.f32 0.0, %v1709
      %v1711 = vpop.f32.mrb[0].mxu0
      %1712 = vmatprep.mubr.f32.mxu0 0.0
      %1713 = vmatmul.mubr.f32.gmra.mrb[0].mxu0 %v1523
      %v1714 = vpop.f32.mrb[0].mxu0
      %v1715 = vadd.f32 0.0, %v1714
      %v1716 = vpop.f32.mrb[0].mxu0
      %1717 = vmatprep.mubr.f32.mxu0 0.0
      %1718 = vmatmul.mubr.f32.gmra.mrb[0].mxu0 %v1526
      %v1719 = vpop.f32.mrb[0].mxu0
      %v1720 = vadd.f32 0.0, %v1719
      %v1721 = vpop.f32.mrb[0].mxu0
      %1722 = vmatprep.mubr.f32.mxu0 0.0
      %1723 = vmatmul.mubr.f32.gmra.mrb[0].mxu0 %v1529
      %v1724 = vpop.f32.mrb[0].mxu0
      %v1725 = vadd.f32 0.0, %v1724
      %v1726 = vpop.f32.mrb[0].mxu0
      %1727 = vmatprep.mubr.f32.mxu0 0.0
      %1728 = vmatmul.mubr.f32.gmra.mrb[0].mxu0 %v1532
      %v1729 = vpop.f32.mrb[0].mxu0
      %v1730 = vadd.f32 0.0, %v1729
      %v1731 = vpop.f32.mrb[0].mxu0
      %1732 = vmatprep.mubr.f32.mxu0 0.0
      %1733 = vmatmul.mubr.f32.gmra.mrb[0].mxu0 %v1535
      %v1734 = vpop.f32.mrb[0].mxu0
      %v1735 = vadd.f32 0.0, %v1734
      %v1736 = vpop.f32.mrb[0].mxu0
      %1737 = vmatprep.mubr.f32.mxu0 0.0
      %1738 = vmatmul.mubr.f32.gmra.mrb[0].mxu0 %v1538
      %v1739 = vpop.f32.mrb[0].mxu0
      %v1740 = vadd.f32 0.0, %v1739
      %v1741 = vpop.f32.mrb[0].mxu0
      %1742 = vmatprep.mubr.f32.mxu0 0.0
      %1743 = vmatmul.mubr.f32.gmra.mrb[0].mxu0 %v1541
      %v1744 = vpop.f32.mrb[0].mxu0
      %v1745 = vadd.f32 0.0, %v1744
      %v1746 = vpop.f32.mrb[0].mxu0
      %1747 = vmatprep.mubr.f32.mxu0 0.0
      %1748 = vmatmul.mubr.f32.gmra.mrb[0].mxu0 %v1544
      %v1749 = vpop.f32.mrb[0].mxu0
      %v1750 = vadd.f32 0.0, %v1749
      %v1751 = vpop.f32.mrb[0].mxu0
      %1752 = vmatprep.mubr.f32.mxu0 0.0
      %1753 = vmatmul.mubr.f32.gmra.mrb[0].mxu0 %v1547
      %v1754 = vpop.f32.mrb[0].mxu0
      %v1755 = vadd.f32 0.0, %v1754
      %v1756 = vpop.f32.mrb[0].mxu0
      %1757 = vmatprep.mubr.f32.mxu0 0.0
      %1758 = vmatmul.mubr.f32.gmra.mrb[0].mxu0 %v1550
      %v1759 = vpop.f32.mrb[0].mxu0
      %v1760 = vadd.f32 0.0, %v1759
      %v1761 = vpop.f32.mrb[0].mxu0
      %1762 = vmatprep.mubr.f32.mxu0 0.0
      %1763 = vmatmul.mubr.f32.gmra.mrb[0].mxu0 %v1553
      %v1764 = vpop.f32.mrb[0].mxu0
      %v1765 = vadd.f32 0.0, %v1764
      %v1766 = vpop.f32.mrb[0].mxu0
      %1767 = vmatprep.mubr.f32.mxu0 0.0
      %1768 = vmatmul.mubr.f32.gmra.mrb[0].mxu0 %v1556
      %v1769 = vpop.f32.mrb[0].mxu0
      %v1770 = vadd.f32 0.0, %v1769
      %v1771 = vpop.f32.mrb[0].mxu0
      %1772 = vmatprep.mubr.f32.mxu0 0.0
      %1773 = vmatmul.mubr.f32.gmra.mrb[0].mxu0 %v1559
      %v1774 = vpop.f32.mrb[0].mxu0
      %v1775 = vadd.f32 0.0, %v1774
      %v1776 = vpop.f32.mrb[0].mxu0
      %1777 = vmatprep.mubr.f32.mxu0 0.0
      %1778 = vmatmul.mubr.f32.gmra.mrb[0].mxu0 %v1562
      %v1779 = vpop.f32.mrb[0].mxu0
      %v1780 = vadd.f32 0.0, %v1779
      %v1781 = vpop.f32.mrb[0].mxu0
      %1782 = vmatprep.mubr.f32.mxu0 0.0
      %1783 = vmatmul.mubr.f32.gmra.mrb[0].mxu0 %v1565
      %v1784 = vpop.f32.mrb[0].mxu0
      %v1785 = vadd.f32 0.0, %v1784
      %v1786 = vpop.f32.mrb[0].mxu0
      %1787 = vmatprep.mubr.f32.mxu0 0.0
      %1788 = vmatmul.mubr.f32.gmra.mrb[0].mxu0 %v1568
      %v1789 = vpop.f32.mrb[0].mxu0
      %v1790 = vadd.f32 0.0, %v1789
      %v1791 = vpop.f32.mrb[0].mxu0
      %1792 = vmatprep.mubr.f32.mxu0 0.0
      %1793 = vmatmul.mubr.f32.gmra.mrb[0].mxu0 %v1571
      %v1794 = vpop.f32.mrb[0].mxu0
      %v1795 = vadd.f32 0.0, %v1794
      %v1796 = vpop.f32.mrb[0].mxu0
      %1797 = vdwg.mxu0
      %v1798 = vadd.f32 %v1440, %v1640
      %v1799 = vadd.f32 %v1441, %v1645
      %v1800 = vadd.f32 %v1442, %v1650
      %v1801 = vadd.f32 %v1443, %v1655
      %v1802 = vadd.f32 %v1444, %v1660
      %v1803 = vadd.f32 %v1445, %v1665
      %v1804 = vadd.f32 %v1446, %v1670
      %v1805 = vadd.f32 %v1447, %v1675
      %v1806 = vadd.f32 %v1448, %v1680
      %v1807 = vadd.f32 %v1449, %v1685
      %v1808 = vadd.f32 %v1450, %v1690
      %v1809 = vadd.f32 %v1451, %v1695
      %v1810 = vadd.f32 %v1452, %v1700
      %v1811 = vadd.f32 %v1453, %v1705
      %v1812 = vadd.f32 %v1454, %v1710
      %v1813 = vadd.f32 %v1455, %v1715
      %v1814 = vadd.f32 %v1456, %v1720
      %v1815 = vadd.f32 %v1457, %v1725
      %v1816 = vadd.f32 %v1458, %v1730
      %v1817 = vadd.f32 %v1459, %v1735
      %v1818 = vadd.f32 %v1460, %v1740
      %v1819 = vadd.f32 %v1461, %v1745
      %v1820 = vadd.f32 %v1462, %v1750
      %v1821 = vadd.f32 %v1463, %v1755
      %v1822 = vadd.f32 %v1464, %v1760
      %v1823 = vadd.f32 %v1465, %v1765
      %v1824 = vadd.f32 %v1466, %v1770
      %v1825 = vadd.f32 %v1467, %v1775
      %v1826 = vadd.f32 %v1468, %v1780
      %v1827 = vadd.f32 %v1469, %v1785
      %v1828 = vadd.f32 %v1470, %v1790
      %v1829 = vadd.f32 %v1471, %v1795
      %v1831 = vlaneseq
      %v1832 = vshrl.u32 %v1831, 7
      %v1833 = vsub.s32 0, %v1832
      %v1834 = vrot.slane %v461, %v1833
      %v1836 = vadd.f32 %v1798, %v1834
      %v1837 = vadd.f32 %v1799, %v1834
      %v1838 = vadd.f32 %v1800, %v1834
      %v1839 = vadd.f32 %v1801, %v1834
      %v1840 = vadd.f32 %v1802, %v1834
      %v1841 = vadd.f32 %v1803, %v1834
      %v1842 = vadd.f32 %v1804, %v1834
      %v1843 = vadd.f32 %v1805, %v1834
      %v1844 = vadd.f32 %v1806, %v1834
      %v1845 = vadd.f32 %v1807, %v1834
      %v1846 = vadd.f32 %v1808, %v1834
      %v1847 = vadd.f32 %v1809, %v1834
      %v1848 = vadd.f32 %v1810, %v1834
      %v1849 = vadd.f32 %v1811, %v1834
      %v1850 = vadd.f32 %v1812, %v1834
      %v1851 = vadd.f32 %v1813, %v1834
      %v1852 = vadd.f32 %v1814, %v1834
      %v1853 = vadd.f32 %v1815, %v1834
      %v1854 = vadd.f32 %v1816, %v1834
      %v1855 = vadd.f32 %v1817, %v1834
      %v1856 = vadd.f32 %v1818, %v1834
      %v1857 = vadd.f32 %v1819, %v1834
      %v1858 = vadd.f32 %v1820, %v1834
      %v1859 = vadd.f32 %v1821, %v1834
      %v1860 = vadd.f32 %v1822, %v1834
      %v1861 = vadd.f32 %v1823, %v1834
      %v1862 = vadd.f32 %v1824, %v1834
      %v1863 = vadd.f32 %v1825, %v1834
      %v1864 = vadd.f32 %v1826, %v1834
      %v1865 = vadd.f32 %v1827, %v1834
      %v1866 = vadd.f32 %v1828, %v1834
      %v1867 = vadd.f32 %v1829, %v1834
      %1868 = vst.msk [vmem:[%s170] sm:$0xff] %vm471, %v1836
      %1869 = vst.msk [vmem:[%s170 + $0x8] sm:$0xff] %vm471, %v1837
      %1870 = vst.msk [vmem:[%s170 + $0x10] sm:$0xff] %vm471, %v1838
      %1871 = vst.msk [vmem:[%s170 + $0x18] sm:$0xff] %vm471, %v1839
      %1872 = vst.msk [vmem:[%s170 + $0x20] sm:$0xff] %vm471, %v1840
      %1873 = vst.msk [vmem:[%s170 + $0x28] sm:$0xff] %vm471, %v1841
      %1874 = vst.msk [vmem:[%s170 + $0x30] sm:$0xff] %vm471, %v1842
      %1875 = vst.msk [vmem:[%s170 + $0x38] sm:$0xff] %vm471, %v1843
      %1876 = vst.msk [vmem:[%s170 + $0x40] sm:$0xff] %vm471, %v1844
      %1877 = vst.msk [vmem:[%s170 + $0x48] sm:$0xff] %vm471, %v1845
      %1878 = vst.msk [vmem:[%s170 + $0x50] sm:$0xff] %vm471, %v1846
      %1879 = vst.msk [vmem:[%s170 + $0x58] sm:$0xff] %vm471, %v1847
      %1880 = vst.msk [vmem:[%s170 + $0x60] sm:$0xff] %vm471, %v1848
      %1881 = vst.msk [vmem:[%s170 + $0x68] sm:$0xff] %vm471, %v1849
      %1882 = vst.msk [vmem:[%s170 + $0x70] sm:$0xff] %vm471, %v1850
      %1883 = vst.msk [vmem:[%s170 + $0x78] sm:$0xff] %vm471, %v1851
      %1884 = vst.msk [vmem:[%s170 + $0x80] sm:$0xff] %vm471, %v1852
      %1885 = vst.msk [vmem:[%s170 + $0x88] sm:$0xff] %vm471, %v1853
      %1886 = vst.msk [vmem:[%s170 + $0x90] sm:$0xff] %vm471, %v1854
      %1887 = vst.msk [vmem:[%s170 + $0x98] sm:$0xff] %vm471, %v1855
      %1888 = vst.msk [vmem:[%s170 + $0xa0] sm:$0xff] %vm471, %v1856
      %1889 = vst.msk [vmem:[%s170 + $0xa8] sm:$0xff] %vm471, %v1857
      %1890 = vst.msk [vmem:[%s170 + $0xb0] sm:$0xff] %vm471, %v1858
      %1891 = vst.msk [vmem:[%s170 + $0xb8] sm:$0xff] %vm471, %v1859
      %1892 = vst.msk [vmem:[%s170 + $0xc0] sm:$0xff] %vm471, %v1860
      %1893 = vst.msk [vmem:[%s170 + $0xc8] sm:$0xff] %vm471, %v1861
      %1894 = vst.msk [vmem:[%s170 + $0xd0] sm:$0xff] %vm471, %v1862
      %1895 = vst.msk [vmem:[%s170 + $0xd8] sm:$0xff] %vm471, %v1863
      %1896 = vst.msk [vmem:[%s170 + $0xe0] sm:$0xff] %vm471, %v1864
      %1897 = vst.msk [vmem:[%s170 + $0xe8] sm:$0xff] %vm471, %v1865
      %1898 = vst.msk [vmem:[%s170 + $0xf0] sm:$0xff] %vm471, %v1866
      %1899 = vst.msk [vmem:[%s170 + $0xf8] sm:$0xff] %vm471, %v1867
      %s1900 = scalar_lea.vmem %s1, 128
      %v1901 = vld [vmem:[%s1900] sm:$0xff]
      %v1902 = vld [vmem:[%s1900 + $0x8] sm:$0xff]
      %v1903 = vld [vmem:[%s1900 + $0x10] sm:$0xff]
      %v1904 = vld [vmem:[%s1900 + $0x18] sm:$0xff]
      %s1905 = scalar_lea.vmem %s1, 160
      %v1906 = vld [vmem:[%s1905] sm:$0xff]
      %v1907 = vld [vmem:[%s1905 + $0x8] sm:$0xff]
      %v1908 = vld [vmem:[%s1905 + $0x10] sm:$0xff]
      %v1909 = vld [vmem:[%s1905 + $0x18] sm:$0xff]
      %v1911 = vsel %vm471, %v235, 0
      %v1914 = vsel %vm471, %v236, 0
      %v1917 = vsel %vm471, %v237, 0
      %v1920 = vsel %vm471, %v238, 0
      %v1923 = vsel %vm471, %v239, 0
      %v1926 = vsel %vm471, %v240, 0
      %v1929 = vsel %vm471, %v241, 0
      %v1932 = vsel %vm471, %v242, 0
      %v1935 = vsel %vm471, %v243, 0
      %v1938 = vsel %vm471, %v244, 0
      %v1941 = vsel %vm471, %v245, 0
      %v1944 = vsel %vm471, %v246, 0
      %v1947 = vsel %vm471, %v247, 0
      %v1950 = vsel %vm471, %v248, 0
      %v1953 = vsel %vm471, %v249, 0
      %v1956 = vsel %vm471, %v250, 0
      %v1959 = vsel %vm471, %v251, 0
      %v1962 = vsel %vm471, %v252, 0
      %v1965 = vsel %vm471, %v253, 0
      %v1968 = vsel %vm471, %v254, 0
      %v1971 = vsel %vm471, %v255, 0
      %v1974 = vsel %vm471, %v256, 0
      %v1977 = vsel %vm471, %v257, 0
      %v1980 = vsel %vm471, %v258, 0
      %v1983 = vsel %vm471, %v259, 0
      %v1986 = vsel %vm471, %v260, 0
      %v1989 = vsel %vm471, %v261, 0
      %v1992 = vsel %vm471, %v262, 0
      %v1995 = vsel %vm471, %v263, 0
      %v1998 = vsel %vm471, %v264, 0
      %v2001 = vsel %vm471, %v265, 0
      %v2004 = vsel %vm471, %v266, 0
      %2006 = vmatprep.subr.mxu0 0.0
      %2007 = vmatpush1.msra.mxu0 %v1906
      %2008 = vmatprep.subr.mxu0 0.0
      %2009 = vmatpush1.msra.mxu0 %v1907
      %2010 = vmatprep.subr.mxu0 0.0
      %2011 = vmatpush1.msra.mxu0 %v1908
      %2012 = vmatprep.subr.mxu0 0.0
      %2013 = vmatpush1.msra.mxu0 %v1909
      %2014 = vmatprep.subr.mxu0 0.0
      %2015 = vmatpush1.msra.mxu0 0.0
      %2016 = vmatprep.subr.mxu0 0.0
      %2017 = vmatpush1.msra.mxu0 0.0
      %2018 = vmatprep.subr.mxu0 0.0
      %2019 = vmatpush1.msra.mxu0 0.0
      %2020 = vmatprep.subr.mxu0 0.0
      %2021 = vmatpush1.msra.mxu0 0.0
      %2022 = vmatprep.subr.mxu0 0.0
      %2023 = vmatpush1.msra.mxu0 0.0
      %2024 = vmatprep.subr.mxu0 0.0
      %2025 = vmatpush1.msra.mxu0 0.0
      %2026 = vmatprep.subr.mxu0 0.0
      %2027 = vmatpush1.msra.mxu0 0.0
      %2028 = vmatprep.subr.mxu0 0.0
      %2029 = vmatpush1.msra.mxu0 0.0
      %2030 = vmatprep.subr.mxu0 0.0
      %2031 = vmatpush1.msra.mxu0 0.0
      %2032 = vmatprep.subr.mxu0 0.0
      %2033 = vmatpush1.msra.mxu0 0.0
      %2034 = vmatprep.subr.mxu0 0.0
      %2035 = vmatpush1.msra.mxu0 0.0
      %2036 = vmatprep.subr.mxu0 0.0
      %2037 = vmatpush1.msra.mxu0 0.0
      %2038 = vmatprep.subr.mxu0 0.0
      %2039 = vmatpush1.msra.mxu0 0.0
      %2040 = vmatprep.subr.mxu0 0.0
      %2041 = vmatpush1.msra.mxu0 0.0
      %2042 = vmatprep.subr.mxu0 0.0
      %2043 = vmatpush1.msra.mxu0 0.0
      %2044 = vmatprep.subr.mxu0 0.0
      %2045 = vmatpush1.msra.mxu0 0.0
      %2046 = vmatprep.subr.mxu0 0.0
      %2047 = vmatpush1.msra.mxu0 0.0
      %2048 = vmatprep.subr.mxu0 0.0
      %2049 = vmatpush1.msra.mxu0 0.0
      %2050 = vmatprep.subr.mxu0 0.0
      %2051 = vmatpush1.msra.mxu0 0.0
      %2052 = vmatprep.subr.mxu0 0.0
      %2053 = vmatpush1.msra.mxu0 0.0
      %2054 = vmatprep.subr.mxu0 0.0
      %2055 = vmatpush1.msra.mxu0 0.0
      %2056 = vmatprep.subr.mxu0 0.0
      %2057 = vmatpush1.msra.mxu0 0.0
      %2058 = vmatprep.subr.mxu0 0.0
      %2059 = vmatpush1.msra.mxu0 0.0
      %2060 = vmatprep.subr.mxu0 0.0
      %2061 = vmatpush1.msra.mxu0 0.0
      %2062 = vmatprep.subr.mxu0 0.0
      %2063 = vmatpush1.msra.mxu0 0.0
      %2064 = vmatprep.subr.mxu0 0.0
      %2065 = vmatpush1.msra.mxu0 0.0
      %2066 = vmatprep.subr.mxu0 0.0
      %2067 = vmatpush1.msra.mxu0 0.0
      %2068 = vmatprep.subr.mxu0 0.0
      %2069 = vmatpush1.msra.mxu0 0.0
      %2070 = vmatprep.mubr.f32.mxu0 0.0
      %2071 = vmatmul.mubr.f32.gmra.mrb[0].mxu0 %v1911
      %v2072 = vpop.f32.mrb[0].mxu0
      %v2073 = vadd.f32 0.0, %v2072
      %v2074 = vpop.f32.mrb[0].mxu0
      %2075 = vmatprep.mubr.f32.mxu0 0.0
      %2076 = vmatmul.mubr.f32.gmra.mrb[0].mxu0 %v1914
      %v2077 = vpop.f32.mrb[0].mxu0
      %v2078 = vadd.f32 0.0, %v2077
      %v2079 = vpop.f32.mrb[0].mxu0
      %2080 = vmatprep.mubr.f32.mxu0 0.0
      %2081 = vmatmul.mubr.f32.gmra.mrb[0].mxu0 %v1917
      %v2082 = vpop.f32.mrb[0].mxu0
      %v2083 = vadd.f32 0.0, %v2082
      %v2084 = vpop.f32.mrb[0].mxu0
      %2085 = vmatprep.mubr.f32.mxu0 0.0
      %2086 = vmatmul.mubr.f32.gmra.mrb[0].mxu0 %v1920
      %v2087 = vpop.f32.mrb[0].mxu0
      %v2088 = vadd.f32 0.0, %v2087
      %v2089 = vpop.f32.mrb[0].mxu0
      %2090 = vmatprep.mubr.f32.mxu0 0.0
      %2091 = vmatmul.mubr.f32.gmra.mrb[0].mxu0 %v1923
      %v2092 = vpop.f32.mrb[0].mxu0
      %v2093 = vadd.f32 0.0, %v2092
      %v2094 = vpop.f32.mrb[0].mxu0
      %2095 = vmatprep.mubr.f32.mxu0 0.0
      %2096 = vmatmul.mubr.f32.gmra.mrb[0].mxu0 %v1926
      %v2097 = vpop.f32.mrb[0].mxu0
      %v2098 = vadd.f32 0.0, %v2097
      %v2099 = vpop.f32.mrb[0].mxu0
      %2100 = vmatprep.mubr.f32.mxu0 0.0
      %2101 = vmatmul.mubr.f32.gmra.mrb[0].mxu0 %v1929
      %v2102 = vpop.f32.mrb[0].mxu0
      %v2103 = vadd.f32 0.0, %v2102
      %v2104 = vpop.f32.mrb[0].mxu0
      %2105 = vmatprep.mubr.f32.mxu0 0.0
      %2106 = vmatmul.mubr.f32.gmra.mrb[0].mxu0 %v1932
      %v2107 = vpop.f32.mrb[0].mxu0
      %v2108 = vadd.f32 0.0, %v2107
      %v2109 = vpop.f32.mrb[0].mxu0
      %2110 = vmatprep.mubr.f32.mxu0 0.0
      %2111 = vmatmul.mubr.f32.gmra.mrb[0].mxu0 %v1935
      %v2112 = vpop.f32.mrb[0].mxu0
      %v2113 = vadd.f32 0.0, %v2112
      %v2114 = vpop.f32.mrb[0].mxu0
      %2115 = vmatprep.mubr.f32.mxu0 0.0
      %2116 = vmatmul.mubr.f32.gmra.mrb[0].mxu0 %v1938
      %v2117 = vpop.f32.mrb[0].mxu0
      %v2118 = vadd.f32 0.0, %v2117
      %v2119 = vpop.f32.mrb[0].mxu0
      %2120 = vmatprep.mubr.f32.mxu0 0.0
      %2121 = vmatmul.mubr.f32.gmra.mrb[0].mxu0 %v1941
      %v2122 = vpop.f32.mrb[0].mxu0
      %v2123 = vadd.f32 0.0, %v2122
      %v2124 = vpop.f32.mrb[0].mxu0
      %2125 = vmatprep.mubr.f32.mxu0 0.0
      %2126 = vmatmul.mubr.f32.gmra.mrb[0].mxu0 %v1944
      %v2127 = vpop.f32.mrb[0].mxu0
      %v2128 = vadd.f32 0.0, %v2127
      %v2129 = vpop.f32.mrb[0].mxu0
      %2130 = vmatprep.mubr.f32.mxu0 0.0
      %2131 = vmatmul.mubr.f32.gmra.mrb[0].mxu0 %v1947
      %v2132 = vpop.f32.mrb[0].mxu0
      %v2133 = vadd.f32 0.0, %v2132
      %v2134 = vpop.f32.mrb[0].mxu0
      %2135 = vmatprep.mubr.f32.mxu0 0.0
      %2136 = vmatmul.mubr.f32.gmra.mrb[0].mxu0 %v1950
      %v2137 = vpop.f32.mrb[0].mxu0
      %v2138 = vadd.f32 0.0, %v2137
      %v2139 = vpop.f32.mrb[0].mxu0
      %2140 = vmatprep.mubr.f32.mxu0 0.0
      %2141 = vmatmul.mubr.f32.gmra.mrb[0].mxu0 %v1953
      %v2142 = vpop.f32.mrb[0].mxu0
      %v2143 = vadd.f32 0.0, %v2142
      %v2144 = vpop.f32.mrb[0].mxu0
      %2145 = vmatprep.mubr.f32.mxu0 0.0
      %2146 = vmatmul.mubr.f32.gmra.mrb[0].mxu0 %v1956
      %v2147 = vpop.f32.mrb[0].mxu0
      %v2148 = vadd.f32 0.0, %v2147
      %v2149 = vpop.f32.mrb[0].mxu0
      %2150 = vmatprep.mubr.f32.mxu0 0.0
      %2151 = vmatmul.mubr.f32.gmra.mrb[0].mxu0 %v1959
      %v2152 = vpop.f32.mrb[0].mxu0
      %v2153 = vadd.f32 0.0, %v2152
      %v2154 = vpop.f32.mrb[0].mxu0
      %2155 = vmatprep.mubr.f32.mxu0 0.0
      %2156 = vmatmul.mubr.f32.gmra.mrb[0].mxu0 %v1962
      %v2157 = vpop.f32.mrb[0].mxu0
      %v2158 = vadd.f32 0.0, %v2157
      %v2159 = vpop.f32.mrb[0].mxu0
      %2160 = vmatprep.mubr.f32.mxu0 0.0
      %2161 = vmatmul.mubr.f32.gmra.mrb[0].mxu0 %v1965
      %v2162 = vpop.f32.mrb[0].mxu0
      %v2163 = vadd.f32 0.0, %v2162
      %v2164 = vpop.f32.mrb[0].mxu0
      %2165 = vmatprep.mubr.f32.mxu0 0.0
      %2166 = vmatmul.mubr.f32.gmra.mrb[0].mxu0 %v1968
      %v2167 = vpop.f32.mrb[0].mxu0
      %v2168 = vadd.f32 0.0, %v2167
      %v2169 = vpop.f32.mrb[0].mxu0
      %2170 = vmatprep.mubr.f32.mxu0 0.0
      %2171 = vmatmul.mubr.f32.gmra.mrb[0].mxu0 %v1971
      %v2172 = vpop.f32.mrb[0].mxu0
      %v2173 = vadd.f32 0.0, %v2172
      %v2174 = vpop.f32.mrb[0].mxu0
      %2175 = vmatprep.mubr.f32.mxu0 0.0
      %2176 = vmatmul.mubr.f32.gmra.mrb[0].mxu0 %v1974
      %v2177 = vpop.f32.mrb[0].mxu0
      %v2178 = vadd.f32 0.0, %v2177
      %v2179 = vpop.f32.mrb[0].mxu0
      %2180 = vmatprep.mubr.f32.mxu0 0.0
      %2181 = vmatmul.mubr.f32.gmra.mrb[0].mxu0 %v1977
      %v2182 = vpop.f32.mrb[0].mxu0
      %v2183 = vadd.f32 0.0, %v2182
      %v2184 = vpop.f32.mrb[0].mxu0
      %2185 = vmatprep.mubr.f32.mxu0 0.0
      %2186 = vmatmul.mubr.f32.gmra.mrb[0].mxu0 %v1980
      %v2187 = vpop.f32.mrb[0].mxu0
      %v2188 = vadd.f32 0.0, %v2187
      %v2189 = vpop.f32.mrb[0].mxu0
      %2190 = vmatprep.mubr.f32.mxu0 0.0
      %2191 = vmatmul.mubr.f32.gmra.mrb[0].mxu0 %v1983
      %v2192 = vpop.f32.mrb[0].mxu0
      %v2193 = vadd.f32 0.0, %v2192
      %v2194 = vpop.f32.mrb[0].mxu0
      %2195 = vmatprep.mubr.f32.mxu0 0.0
      %2196 = vmatmul.mubr.f32.gmra.mrb[0].mxu0 %v1986
      %v2197 = vpop.f32.mrb[0].mxu0
      %v2198 = vadd.f32 0.0, %v2197
      %v2199 = vpop.f32.mrb[0].mxu0
      %2200 = vmatprep.mubr.f32.mxu0 0.0
      %2201 = vmatmul.mubr.f32.gmra.mrb[0].mxu0 %v1989
      %v2202 = vpop.f32.mrb[0].mxu0
      %v2203 = vadd.f32 0.0, %v2202
      %v2204 = vpop.f32.mrb[0].mxu0
      %2205 = vmatprep.mubr.f32.mxu0 0.0
      %2206 = vmatmul.mubr.f32.gmra.mrb[0].mxu0 %v1992
      %v2207 = vpop.f32.mrb[0].mxu0
      %v2208 = vadd.f32 0.0, %v2207
      %v2209 = vpop.f32.mrb[0].mxu0
      %2210 = vmatprep.mubr.f32.mxu0 0.0
      %2211 = vmatmul.mubr.f32.gmra.mrb[0].mxu0 %v1995
      %v2212 = vpop.f32.mrb[0].mxu0
      %v2213 = vadd.f32 0.0, %v2212
      %v2214 = vpop.f32.mrb[0].mxu0
      %2215 = vmatprep.mubr.f32.mxu0 0.0
      %2216 = vmatmul.mubr.f32.gmra.mrb[0].mxu0 %v1998
      %v2217 = vpop.f32.mrb[0].mxu0
      %v2218 = vadd.f32 0.0, %v2217
      %v2219 = vpop.f32.mrb[0].mxu0
      %2220 = vmatprep.mubr.f32.mxu0 0.0
      %2221 = vmatmul.mubr.f32.gmra.mrb[0].mxu0 %v2001
      %v2222 = vpop.f32.mrb[0].mxu0
      %v2223 = vadd.f32 0.0, %v2222
      %v2224 = vpop.f32.mrb[0].mxu0
      %2225 = vmatprep.mubr.f32.mxu0 0.0
      %2226 = vmatmul.mubr.f32.gmra.mrb[0].mxu0 %v2004
      %v2227 = vpop.f32.mrb[0].mxu0
      %v2228 = vadd.f32 0.0, %v2227
      %v2229 = vpop.f32.mrb[0].mxu0
      %2230 = vdwg.mxu0
      %2231 = vmatprep.subr.mxu0 0.0
      %2232 = vmatpush1.msra.mxu0 %v1901
      %2233 = vmatprep.subr.mxu0 0.0
      %2234 = vmatpush1.msra.mxu0 %v1902
      %2235 = vmatprep.subr.mxu0 0.0
      %2236 = vmatpush1.msra.mxu0 %v1903
      %2237 = vmatprep.subr.mxu0 0.0
      %2238 = vmatpush1.msra.mxu0 %v1904
      %2239 = vmatprep.subr.mxu0 0.0
      %2240 = vmatpush1.msra.mxu0 0.0
      %2241 = vmatprep.subr.mxu0 0.0
      %2242 = vmatpush1.msra.mxu0 0.0
      %2243 = vmatprep.subr.mxu0 0.0
      %2244 = vmatpush1.msra.mxu0 0.0
      %2245 = vmatprep.subr.mxu0 0.0
      %2246 = vmatpush1.msra.mxu0 0.0
      %2247 = vmatprep.subr.mxu0 0.0
      %2248 = vmatpush1.msra.mxu0 0.0
      %2249 = vmatprep.subr.mxu0 0.0
      %2250 = vmatpush1.msra.mxu0 0.0
      %2251 = vmatprep.subr.mxu0 0.0
      %2252 = vmatpush1.msra.mxu0 0.0
      %2253 = vmatprep.subr.mxu0 0.0
      %2254 = vmatpush1.msra.mxu0 0.0
      %2255 = vmatprep.subr.mxu0 0.0
      %2256 = vmatpush1.msra.mxu0 0.0
      %2257 = vmatprep.subr.mxu0 0.0
      %2258 = vmatpush1.msra.mxu0 0.0
      %2259 = vmatprep.subr.mxu0 0.0
      %2260 = vmatpush1.msra.mxu0 0.0
      %2261 = vmatprep.subr.mxu0 0.0
      %2262 = vmatpush1.msra.mxu0 0.0
      %2263 = vmatprep.subr.mxu0 0.0
      %2264 = vmatpush1.msra.mxu0 0.0
      %2265 = vmatprep.subr.mxu0 0.0
      %2266 = vmatpush1.msra.mxu0 0.0
      %2267 = vmatprep.subr.mxu0 0.0
      %2268 = vmatpush1.msra.mxu0 0.0
      %2269 = vmatprep.subr.mxu0 0.0
      %2270 = vmatpush1.msra.mxu0 0.0
      %2271 = vmatprep.subr.mxu0 0.0
      %2272 = vmatpush1.msra.mxu0 0.0
      %2273 = vmatprep.subr.mxu0 0.0
      %2274 = vmatpush1.msra.mxu0 0.0
      %2275 = vmatprep.subr.mxu0 0.0
      %2276 = vmatpush1.msra.mxu0 0.0
      %2277 = vmatprep.subr.mxu0 0.0
      %2278 = vmatpush1.msra.mxu0 0.0
      %2279 = vmatprep.subr.mxu0 0.0
      %2280 = vmatpush1.msra.mxu0 0.0
      %2281 = vmatprep.subr.mxu0 0.0
      %2282 = vmatpush1.msra.mxu0 0.0
      %2283 = vmatprep.subr.mxu0 0.0
      %2284 = vmatpush1.msra.mxu0 0.0
      %2285 = vmatprep.subr.mxu0 0.0
      %2286 = vmatpush1.msra.mxu0 0.0
      %2287 = vmatprep.subr.mxu0 0.0
      %2288 = vmatpush1.msra.mxu0 0.0
      %2289 = vmatprep.subr.mxu0 0.0
      %2290 = vmatpush1.msra.mxu0 0.0
      %2291 = vmatprep.subr.mxu0 0.0
      %2292 = vmatpush1.msra.mxu0 0.0
      %2293 = vmatprep.subr.mxu0 0.0
      %2294 = vmatpush1.msra.mxu0 0.0
      %2295 = vmatprep.mubr.f32.mxu0 0.0
      %2296 = vmatmul.mubr.f32.gmra.mrb[0].mxu0 %v473
      %v2297 = vpop.f32.mrb[0].mxu0
      %v2298 = vadd.f32 %v2073, %v2297
      %v2299 = vpop.f32.mrb[0].mxu0
      %2300 = vmatprep.mubr.f32.mxu0 0.0
      %2301 = vmatmul.mubr.f32.gmra.mrb[0].mxu0 %v476
      %v2302 = vpop.f32.mrb[0].mxu0
      %v2303 = vadd.f32 %v2078, %v2302
      %v2304 = vpop.f32.mrb[0].mxu0
      %2305 = vmatprep.mubr.f32.mxu0 0.0
      %2306 = vmatmul.mubr.f32.gmra.mrb[0].mxu0 %v479
      %v2307 = vpop.f32.mrb[0].mxu0
      %v2308 = vadd.f32 %v2083, %v2307
      %v2309 = vpop.f32.mrb[0].mxu0
      %2310 = vmatprep.mubr.f32.mxu0 0.0
      %2311 = vmatmul.mubr.f32.gmra.mrb[0].mxu0 %v482
      %v2312 = vpop.f32.mrb[0].mxu0
      %v2313 = vadd.f32 %v2088, %v2312
      %v2314 = vpop.f32.mrb[0].mxu0
      %2315 = vmatprep.mubr.f32.mxu0 0.0
      %2316 = vmatmul.mubr.f32.gmra.mrb[0].mxu0 %v485
      %v2317 = vpop.f32.mrb[0].mxu0
      %v2318 = vadd.f32 %v2093, %v2317
      %v2319 = vpop.f32.mrb[0].mxu0
      %2320 = vmatprep.mubr.f32.mxu0 0.0
      %2321 = vmatmul.mubr.f32.gmra.mrb[0].mxu0 %v488
      %v2322 = vpop.f32.mrb[0].mxu0
      %v2323 = vadd.f32 %v2098, %v2322
      %v2324 = vpop.f32.mrb[0].mxu0
      %2325 = vmatprep.mubr.f32.mxu0 0.0
      %2326 = vmatmul.mubr.f32.gmra.mrb[0].mxu0 %v491
      %v2327 = vpop.f32.mrb[0].mxu0
      %v2328 = vadd.f32 %v2103, %v2327
      %v2329 = vpop.f32.mrb[0].mxu0
      %2330 = vmatprep.mubr.f32.mxu0 0.0
      %2331 = vmatmul.mubr.f32.gmra.mrb[0].mxu0 %v494
      %v2332 = vpop.f32.mrb[0].mxu0
      %v2333 = vadd.f32 %v2108, %v2332
      %v2334 = vpop.f32.mrb[0].mxu0
      %2335 = vmatprep.mubr.f32.mxu0 0.0
      %2336 = vmatmul.mubr.f32.gmra.mrb[0].mxu0 %v497
      %v2337 = vpop.f32.mrb[0].mxu0
      %v2338 = vadd.f32 %v2113, %v2337
      %v2339 = vpop.f32.mrb[0].mxu0
      %2340 = vmatprep.mubr.f32.mxu0 0.0
      %2341 = vmatmul.mubr.f32.gmra.mrb[0].mxu0 %v500
      %v2342 = vpop.f32.mrb[0].mxu0
      %v2343 = vadd.f32 %v2118, %v2342
      %v2344 = vpop.f32.mrb[0].mxu0
      %2345 = vmatprep.mubr.f32.mxu0 0.0
      %2346 = vmatmul.mubr.f32.gmra.mrb[0].mxu0 %v503
      %v2347 = vpop.f32.mrb[0].mxu0
      %v2348 = vadd.f32 %v2123, %v2347
      %v2349 = vpop.f32.mrb[0].mxu0
      %2350 = vmatprep.mubr.f32.mxu0 0.0
      %2351 = vmatmul.mubr.f32.gmra.mrb[0].mxu0 %v506
      %v2352 = vpop.f32.mrb[0].mxu0
      %v2353 = vadd.f32 %v2128, %v2352
      %v2354 = vpop.f32.mrb[0].mxu0
      %2355 = vmatprep.mubr.f32.mxu0 0.0
      %2356 = vmatmul.mubr.f32.gmra.mrb[0].mxu0 %v509
      %v2357 = vpop.f32.mrb[0].mxu0
      %v2358 = vadd.f32 %v2133, %v2357
      %v2359 = vpop.f32.mrb[0].mxu0
      %2360 = vmatprep.mubr.f32.mxu0 0.0
      %2361 = vmatmul.mubr.f32.gmra.mrb[0].mxu0 %v512
      %v2362 = vpop.f32.mrb[0].mxu0
      %v2363 = vadd.f32 %v2138, %v2362
      %v2364 = vpop.f32.mrb[0].mxu0
      %2365 = vmatprep.mubr.f32.mxu0 0.0
      %2366 = vmatmul.mubr.f32.gmra.mrb[0].mxu0 %v515
      %v2367 = vpop.f32.mrb[0].mxu0
      %v2368 = vadd.f32 %v2143, %v2367
      %v2369 = vpop.f32.mrb[0].mxu0
      %2370 = vmatprep.mubr.f32.mxu0 0.0
      %2371 = vmatmul.mubr.f32.gmra.mrb[0].mxu0 %v518
      %v2372 = vpop.f32.mrb[0].mxu0
      %v2373 = vadd.f32 %v2148, %v2372
      %v2374 = vpop.f32.mrb[0].mxu0
      %2375 = vmatprep.mubr.f32.mxu0 0.0
      %2376 = vmatmul.mubr.f32.gmra.mrb[0].mxu0 %v521
      %v2377 = vpop.f32.mrb[0].mxu0
      %v2378 = vadd.f32 %v2153, %v2377
      %v2379 = vpop.f32.mrb[0].mxu0
      %2380 = vmatprep.mubr.f32.mxu0 0.0
      %2381 = vmatmul.mubr.f32.gmra.mrb[0].mxu0 %v524
      %v2382 = vpop.f32.mrb[0].mxu0
      %v2383 = vadd.f32 %v2158, %v2382
      %v2384 = vpop.f32.mrb[0].mxu0
      %2385 = vmatprep.mubr.f32.mxu0 0.0
      %2386 = vmatmul.mubr.f32.gmra.mrb[0].mxu0 %v527
      %v2387 = vpop.f32.mrb[0].mxu0
      %v2388 = vadd.f32 %v2163, %v2387
      %v2389 = vpop.f32.mrb[0].mxu0
      %2390 = vmatprep.mubr.f32.mxu0 0.0
      %2391 = vmatmul.mubr.f32.gmra.mrb[0].mxu0 %v530
      %v2392 = vpop.f32.mrb[0].mxu0
      %v2393 = vadd.f32 %v2168, %v2392
      %v2394 = vpop.f32.mrb[0].mxu0
      %2395 = vmatprep.mubr.f32.mxu0 0.0
      %2396 = vmatmul.mubr.f32.gmra.mrb[0].mxu0 %v533
      %v2397 = vpop.f32.mrb[0].mxu0
      %v2398 = vadd.f32 %v2173, %v2397
      %v2399 = vpop.f32.mrb[0].mxu0
      %2400 = vmatprep.mubr.f32.mxu0 0.0
      %2401 = vmatmul.mubr.f32.gmra.mrb[0].mxu0 %v536
      %v2402 = vpop.f32.mrb[0].mxu0
      %v2403 = vadd.f32 %v2178, %v2402
      %v2404 = vpop.f32.mrb[0].mxu0
      %2405 = vmatprep.mubr.f32.mxu0 0.0
      %2406 = vmatmul.mubr.f32.gmra.mrb[0].mxu0 %v539
      %v2407 = vpop.f32.mrb[0].mxu0
      %v2408 = vadd.f32 %v2183, %v2407
      %v2409 = vpop.f32.mrb[0].mxu0
      %2410 = vmatprep.mubr.f32.mxu0 0.0
      %2411 = vmatmul.mubr.f32.gmra.mrb[0].mxu0 %v542
      %v2412 = vpop.f32.mrb[0].mxu0
      %v2413 = vadd.f32 %v2188, %v2412
      %v2414 = vpop.f32.mrb[0].mxu0
      %2415 = vmatprep.mubr.f32.mxu0 0.0
      %2416 = vmatmul.mubr.f32.gmra.mrb[0].mxu0 %v545
      %v2417 = vpop.f32.mrb[0].mxu0
      %v2418 = vadd.f32 %v2193, %v2417
      %v2419 = vpop.f32.mrb[0].mxu0
      %2420 = vmatprep.mubr.f32.mxu0 0.0
      %2421 = vmatmul.mubr.f32.gmra.mrb[0].mxu0 %v548
      %v2422 = vpop.f32.mrb[0].mxu0
      %v2423 = vadd.f32 %v2198, %v2422
      %v2424 = vpop.f32.mrb[0].mxu0
      %2425 = vmatprep.mubr.f32.mxu0 0.0
      %2426 = vmatmul.mubr.f32.gmra.mrb[0].mxu0 %v551
      %v2427 = vpop.f32.mrb[0].mxu0
      %v2428 = vadd.f32 %v2203, %v2427
      %v2429 = vpop.f32.mrb[0].mxu0
      %2430 = vmatprep.mubr.f32.mxu0 0.0
      %2431 = vmatmul.mubr.f32.gmra.mrb[0].mxu0 %v554
      %v2432 = vpop.f32.mrb[0].mxu0
      %v2433 = vadd.f32 %v2208, %v2432
      %v2434 = vpop.f32.mrb[0].mxu0
      %2435 = vmatprep.mubr.f32.mxu0 0.0
      %2436 = vmatmul.mubr.f32.gmra.mrb[0].mxu0 %v557
      %v2437 = vpop.f32.mrb[0].mxu0
      %v2438 = vadd.f32 %v2213, %v2437
      %v2439 = vpop.f32.mrb[0].mxu0
      %2440 = vmatprep.mubr.f32.mxu0 0.0
      %2441 = vmatmul.mubr.f32.gmra.mrb[0].mxu0 %v560
      %v2442 = vpop.f32.mrb[0].mxu0
      %v2443 = vadd.f32 %v2218, %v2442
      %v2444 = vpop.f32.mrb[0].mxu0
      %2445 = vmatprep.mubr.f32.mxu0 0.0
      %2446 = vmatmul.mubr.f32.gmra.mrb[0].mxu0 %v563
      %v2447 = vpop.f32.mrb[0].mxu0
      %v2448 = vadd.f32 %v2223, %v2447
      %v2449 = vpop.f32.mrb[0].mxu0
      %2450 = vmatprep.mubr.f32.mxu0 0.0
      %2451 = vmatmul.mubr.f32.gmra.mrb[0].mxu0 %v566
      %v2452 = vpop.f32.mrb[0].mxu0
      %v2453 = vadd.f32 %v2228, %v2452
      %v2454 = vpop.f32.mrb[0].mxu0
      %2455 = vdwg.mxu0
      %s2456 = scalar_lea.vmem %s1, 192
      %v2457 = vld [vmem:[%s2456] sm:$0xff]
      %v2458 = vld [vmem:[%s2456 + $0x8] sm:$0xff]
      %v2459 = vld [vmem:[%s2456 + $0x10] sm:$0xff]
      %v2460 = vld [vmem:[%s2456 + $0x18] sm:$0xff]
      %2461 = vmatprep.subr.mxu0 0.0
      %2462 = vmatpush1.msra.mxu0 %v2457
      %2463 = vmatprep.subr.mxu0 0.0
      %2464 = vmatpush1.msra.mxu0 %v2458
      %2465 = vmatprep.subr.mxu0 0.0
      %2466 = vmatpush1.msra.mxu0 %v2459
      %2467 = vmatprep.subr.mxu0 0.0
      %2468 = vmatpush1.msra.mxu0 %v2460
      %2469 = vmatprep.subr.mxu0 0.0
      %2470 = vmatpush1.msra.mxu0 0.0
      %2471 = vmatprep.subr.mxu0 0.0
      %2472 = vmatpush1.msra.mxu0 0.0
      %2473 = vmatprep.subr.mxu0 0.0
      %2474 = vmatpush1.msra.mxu0 0.0
      %2475 = vmatprep.subr.mxu0 0.0
      %2476 = vmatpush1.msra.mxu0 0.0
      %2477 = vmatprep.subr.mxu0 0.0
      %2478 = vmatpush1.msra.mxu0 0.0
      %2479 = vmatprep.subr.mxu0 0.0
      %2480 = vmatpush1.msra.mxu0 0.0
      %2481 = vmatprep.subr.mxu0 0.0
      %2482 = vmatpush1.msra.mxu0 0.0
      %2483 = vmatprep.subr.mxu0 0.0
      %2484 = vmatpush1.msra.mxu0 0.0
      %2485 = vmatprep.subr.mxu0 0.0
      %2486 = vmatpush1.msra.mxu0 0.0
      %2487 = vmatprep.subr.mxu0 0.0
      %2488 = vmatpush1.msra.mxu0 0.0
      %2489 = vmatprep.subr.mxu0 0.0
      %2490 = vmatpush1.msra.mxu0 0.0
      %2491 = vmatprep.subr.mxu0 0.0
      %2492 = vmatpush1.msra.mxu0 0.0
      %2493 = vmatprep.subr.mxu0 0.0
      %2494 = vmatpush1.msra.mxu0 0.0
      %2495 = vmatprep.subr.mxu0 0.0
      %2496 = vmatpush1.msra.mxu0 0.0
      %2497 = vmatprep.subr.mxu0 0.0
      %2498 = vmatpush1.msra.mxu0 0.0
      %2499 = vmatprep.subr.mxu0 0.0
      %2500 = vmatpush1.msra.mxu0 0.0
      %2501 = vmatprep.subr.mxu0 0.0
      %2502 = vmatpush1.msra.mxu0 0.0
      %2503 = vmatprep.subr.mxu0 0.0
      %2504 = vmatpush1.msra.mxu0 0.0
      %2505 = vmatprep.subr.mxu0 0.0
      %2506 = vmatpush1.msra.mxu0 0.0
      %2507 = vmatprep.subr.mxu0 0.0
      %2508 = vmatpush1.msra.mxu0 0.0
      %2509 = vmatprep.subr.mxu0 0.0
      %2510 = vmatpush1.msra.mxu0 0.0
      %2511 = vmatprep.subr.mxu0 0.0
      %2512 = vmatpush1.msra.mxu0 0.0
      %2513 = vmatprep.subr.mxu0 0.0
      %2514 = vmatpush1.msra.mxu0 0.0
      %2515 = vmatprep.subr.mxu0 0.0
      %2516 = vmatpush1.msra.mxu0 0.0
      %2517 = vmatprep.subr.mxu0 0.0
      %2518 = vmatpush1.msra.mxu0 0.0
      %2519 = vmatprep.subr.mxu0 0.0
      %2520 = vmatpush1.msra.mxu0 0.0
      %2521 = vmatprep.subr.mxu0 0.0
      %2522 = vmatpush1.msra.mxu0 0.0
      %2523 = vmatprep.subr.mxu0 0.0
      %2524 = vmatpush1.msra.mxu0 0.0
      %2525 = vmatprep.mubr.f32.mxu0 0.0
      %2526 = vmatmul.mubr.f32.gmra.mrb[0].mxu0 %v1478
      %v2527 = vpop.f32.mrb[0].mxu0
      %v2528 = vadd.f32 0.0, %v2527
      %v2529 = vpop.f32.mrb[0].mxu0
      %2530 = vmatprep.mubr.f32.mxu0 0.0
      %2531 = vmatmul.mubr.f32.gmra.mrb[0].mxu0 %v1481
      %v2532 = vpop.f32.mrb[0].mxu0
      %v2533 = vadd.f32 0.0, %v2532
      %v2534 = vpop.f32.mrb[0].mxu0
      %2535 = vmatprep.mubr.f32.mxu0 0.0
      %2536 = vmatmul.mubr.f32.gmra.mrb[0].mxu0 %v1484
      %v2537 = vpop.f32.mrb[0].mxu0
      %v2538 = vadd.f32 0.0, %v2537
      %v2539 = vpop.f32.mrb[0].mxu0
      %2540 = vmatprep.mubr.f32.mxu0 0.0
      %2541 = vmatmul.mubr.f32.gmra.mrb[0].mxu0 %v1487
      %v2542 = vpop.f32.mrb[0].mxu0
      %v2543 = vadd.f32 0.0, %v2542
      %v2544 = vpop.f32.mrb[0].mxu0
      %2545 = vmatprep.mubr.f32.mxu0 0.0
      %2546 = vmatmul.mubr.f32.gmra.mrb[0].mxu0 %v1490
      %v2547 = vpop.f32.mrb[0].mxu0
      %v2548 = vadd.f32 0.0, %v2547
      %v2549 = vpop.f32.mrb[0].mxu0
      %2550 = vmatprep.mubr.f32.mxu0 0.0
      %2551 = vmatmul.mubr.f32.gmra.mrb[0].mxu0 %v1493
      %v2552 = vpop.f32.mrb[0].mxu0
      %v2553 = vadd.f32 0.0, %v2552
      %v2554 = vpop.f32.mrb[0].mxu0
      %2555 = vmatprep.mubr.f32.mxu0 0.0
      %2556 = vmatmul.mubr.f32.gmra.mrb[0].mxu0 %v1496
      %v2557 = vpop.f32.mrb[0].mxu0
      %v2558 = vadd.f32 0.0, %v2557
      %v2559 = vpop.f32.mrb[0].mxu0
      %2560 = vmatprep.mubr.f32.mxu0 0.0
      %2561 = vmatmul.mubr.f32.gmra.mrb[0].mxu0 %v1499
      %v2562 = vpop.f32.mrb[0].mxu0
      %v2563 = vadd.f32 0.0, %v2562
      %v2564 = vpop.f32.mrb[0].mxu0
      %2565 = vmatprep.mubr.f32.mxu0 0.0
      %2566 = vmatmul.mubr.f32.gmra.mrb[0].mxu0 %v1502
      %v2567 = vpop.f32.mrb[0].mxu0
      %v2568 = vadd.f32 0.0, %v2567
      %v2569 = vpop.f32.mrb[0].mxu0
      %2570 = vmatprep.mubr.f32.mxu0 0.0
      %2571 = vmatmul.mubr.f32.gmra.mrb[0].mxu0 %v1505
      %v2572 = vpop.f32.mrb[0].mxu0
      %v2573 = vadd.f32 0.0, %v2572
      %v2574 = vpop.f32.mrb[0].mxu0
      %2575 = vmatprep.mubr.f32.mxu0 0.0
      %2576 = vmatmul.mubr.f32.gmra.mrb[0].mxu0 %v1508
      %v2577 = vpop.f32.mrb[0].mxu0
      %v2578 = vadd.f32 0.0, %v2577
      %v2579 = vpop.f32.mrb[0].mxu0
      %2580 = vmatprep.mubr.f32.mxu0 0.0
      %2581 = vmatmul.mubr.f32.gmra.mrb[0].mxu0 %v1511
      %v2582 = vpop.f32.mrb[0].mxu0
      %v2583 = vadd.f32 0.0, %v2582
      %v2584 = vpop.f32.mrb[0].mxu0
      %2585 = vmatprep.mubr.f32.mxu0 0.0
      %2586 = vmatmul.mubr.f32.gmra.mrb[0].mxu0 %v1514
      %v2587 = vpop.f32.mrb[0].mxu0
      %v2588 = vadd.f32 0.0, %v2587
      %v2589 = vpop.f32.mrb[0].mxu0
      %2590 = vmatprep.mubr.f32.mxu0 0.0
      %2591 = vmatmul.mubr.f32.gmra.mrb[0].mxu0 %v1517
      %v2592 = vpop.f32.mrb[0].mxu0
      %v2593 = vadd.f32 0.0, %v2592
      %v2594 = vpop.f32.mrb[0].mxu0
      %2595 = vmatprep.mubr.f32.mxu0 0.0
      %2596 = vmatmul.mubr.f32.gmra.mrb[0].mxu0 %v1520
      %v2597 = vpop.f32.mrb[0].mxu0
      %v2598 = vadd.f32 0.0, %v2597
      %v2599 = vpop.f32.mrb[0].mxu0
      %2600 = vmatprep.mubr.f32.mxu0 0.0
      %2601 = vmatmul.mubr.f32.gmra.mrb[0].mxu0 %v1523
      %v2602 = vpop.f32.mrb[0].mxu0
      %v2603 = vadd.f32 0.0, %v2602
      %v2604 = vpop.f32.mrb[0].mxu0
      %2605 = vmatprep.mubr.f32.mxu0 0.0
      %2606 = vmatmul.mubr.f32.gmra.mrb[0].mxu0 %v1526
      %v2607 = vpop.f32.mrb[0].mxu0
      %v2608 = vadd.f32 0.0, %v2607
      %v2609 = vpop.f32.mrb[0].mxu0
      %2610 = vmatprep.mubr.f32.mxu0 0.0
      %2611 = vmatmul.mubr.f32.gmra.mrb[0].mxu0 %v1529
      %v2612 = vpop.f32.mrb[0].mxu0
      %v2613 = vadd.f32 0.0, %v2612
      %v2614 = vpop.f32.mrb[0].mxu0
      %2615 = vmatprep.mubr.f32.mxu0 0.0
      %2616 = vmatmul.mubr.f32.gmra.mrb[0].mxu0 %v1532
      %v2617 = vpop.f32.mrb[0].mxu0
      %v2618 = vadd.f32 0.0, %v2617
      %v2619 = vpop.f32.mrb[0].mxu0
      %2620 = vmatprep.mubr.f32.mxu0 0.0
      %2621 = vmatmul.mubr.f32.gmra.mrb[0].mxu0 %v1535
      %v2622 = vpop.f32.mrb[0].mxu0
      %v2623 = vadd.f32 0.0, %v2622
      %v2624 = vpop.f32.mrb[0].mxu0
      %2625 = vmatprep.mubr.f32.mxu0 0.0
      %2626 = vmatmul.mubr.f32.gmra.mrb[0].mxu0 %v1538
      %v2627 = vpop.f32.mrb[0].mxu0
      %v2628 = vadd.f32 0.0, %v2627
      %v2629 = vpop.f32.mrb[0].mxu0
      %2630 = vmatprep.mubr.f32.mxu0 0.0
      %2631 = vmatmul.mubr.f32.gmra.mrb[0].mxu0 %v1541
      %v2632 = vpop.f32.mrb[0].mxu0
      %v2633 = vadd.f32 0.0, %v2632
      %v2634 = vpop.f32.mrb[0].mxu0
      %2635 = vmatprep.mubr.f32.mxu0 0.0
      %2636 = vmatmul.mubr.f32.gmra.mrb[0].mxu0 %v1544
      %v2637 = vpop.f32.mrb[0].mxu0
      %v2638 = vadd.f32 0.0, %v2637
      %v2639 = vpop.f32.mrb[0].mxu0
      %2640 = vmatprep.mubr.f32.mxu0 0.0
      %2641 = vmatmul.mubr.f32.gmra.mrb[0].mxu0 %v1547
      %v2642 = vpop.f32.mrb[0].mxu0
      %v2643 = vadd.f32 0.0, %v2642
      %v2644 = vpop.f32.mrb[0].mxu0
      %2645 = vmatprep.mubr.f32.mxu0 0.0
      %2646 = vmatmul.mubr.f32.gmra.mrb[0].mxu0 %v1550
      %v2647 = vpop.f32.mrb[0].mxu0
      %v2648 = vadd.f32 0.0, %v2647
      %v2649 = vpop.f32.mrb[0].mxu0
      %2650 = vmatprep.mubr.f32.mxu0 0.0
      %2651 = vmatmul.mubr.f32.gmra.mrb[0].mxu0 %v1553
      %v2652 = vpop.f32.mrb[0].mxu0
      %v2653 = vadd.f32 0.0, %v2652
      %v2654 = vpop.f32.mrb[0].mxu0
      %2655 = vmatprep.mubr.f32.mxu0 0.0
      %2656 = vmatmul.mubr.f32.gmra.mrb[0].mxu0 %v1556
      %v2657 = vpop.f32.mrb[0].mxu0
      %v2658 = vadd.f32 0.0, %v2657
      %v2659 = vpop.f32.mrb[0].mxu0
      %2660 = vmatprep.mubr.f32.mxu0 0.0
      %2661 = vmatmul.mubr.f32.gmra.mrb[0].mxu0 %v1559
      %v2662 = vpop.f32.mrb[0].mxu0
      %v2663 = vadd.f32 0.0, %v2662
      %v2664 = vpop.f32.mrb[0].mxu0
      %2665 = vmatprep.mubr.f32.mxu0 0.0
      %2666 = vmatmul.mubr.f32.gmra.mrb[0].mxu0 %v1562
      %v2667 = vpop.f32.mrb[0].mxu0
      %v2668 = vadd.f32 0.0, %v2667
      %v2669 = vpop.f32.mrb[0].mxu0
      %2670 = vmatprep.mubr.f32.mxu0 0.0
      %2671 = vmatmul.mubr.f32.gmra.mrb[0].mxu0 %v1565
      %v2672 = vpop.f32.mrb[0].mxu0
      %v2673 = vadd.f32 0.0, %v2672
      %v2674 = vpop.f32.mrb[0].mxu0
      %2675 = vmatprep.mubr.f32.mxu0 0.0
      %2676 = vmatmul.mubr.f32.gmra.mrb[0].mxu0 %v1568
      %v2677 = vpop.f32.mrb[0].mxu0
      %v2678 = vadd.f32 0.0, %v2677
      %v2679 = vpop.f32.mrb[0].mxu0
      %2680 = vmatprep.mubr.f32.mxu0 0.0
      %2681 = vmatmul.mubr.f32.gmra.mrb[0].mxu0 %v1571
      %v2682 = vpop.f32.mrb[0].mxu0
      %v2683 = vadd.f32 0.0, %v2682
      %v2684 = vpop.f32.mrb[0].mxu0
      %2685 = vdwg.mxu0
      %v2686 = vadd.f32 %v2298, %v2528
      %v2687 = vadd.f32 %v2303, %v2533
      %v2688 = vadd.f32 %v2308, %v2538
      %v2689 = vadd.f32 %v2313, %v2543
      %v2690 = vadd.f32 %v2318, %v2548
      %v2691 = vadd.f32 %v2323, %v2553
      %v2692 = vadd.f32 %v2328, %v2558
      %v2693 = vadd.f32 %v2333, %v2563
      %v2694 = vadd.f32 %v2338, %v2568
      %v2695 = vadd.f32 %v2343, %v2573
      %v2696 = vadd.f32 %v2348, %v2578
      %v2697 = vadd.f32 %v2353, %v2583
      %v2698 = vadd.f32 %v2358, %v2588
      %v2699 = vadd.f32 %v2363, %v2593
      %v2700 = vadd.f32 %v2368, %v2598
      %v2701 = vadd.f32 %v2373, %v2603
      %v2702 = vadd.f32 %v2378, %v2608
      %v2703 = vadd.f32 %v2383, %v2613
      %v2704 = vadd.f32 %v2388, %v2618
      %v2705 = vadd.f32 %v2393, %v2623
      %v2706 = vadd.f32 %v2398, %v2628
      %v2707 = vadd.f32 %v2403, %v2633
      %v2708 = vadd.f32 %v2408, %v2638
      %v2709 = vadd.f32 %v2413, %v2643
      %v2710 = vadd.f32 %v2418, %v2648
      %v2711 = vadd.f32 %v2423, %v2653
      %v2712 = vadd.f32 %v2428, %v2658
      %v2713 = vadd.f32 %v2433, %v2663
      %v2714 = vadd.f32 %v2438, %v2668
      %v2715 = vadd.f32 %v2443, %v2673
      %v2716 = vadd.f32 %v2448, %v2678
      %v2717 = vadd.f32 %v2453, %v2683
      %s2718 = scalar_lea.vmem %s1, 224
      %v2719 = vld [vmem:[%s2718] sm:$0xff]
      %v2720 = vld [vmem:[%s2718 + $0x8] sm:$0xff]
      %v2721 = vld [vmem:[%s2718 + $0x10] sm:$0xff]
      %v2722 = vld [vmem:[%s2718 + $0x18] sm:$0xff]
      %v2724 = vsel %vm471, %v332, 0
      %v2727 = vsel %vm471, %v333, 0
      %v2730 = vsel %vm471, %v334, 0
      %v2733 = vsel %vm471, %v335, 0
      %v2736 = vsel %vm471, %v336, 0
      %v2739 = vsel %vm471, %v337, 0
      %v2742 = vsel %vm471, %v338, 0
      %v2745 = vsel %vm471, %v339, 0
      %v2748 = vsel %vm471, %v340, 0
      %v2751 = vsel %vm471, %v341, 0
      %v2754 = vsel %vm471, %v342, 0
      %v2757 = vsel %vm471, %v343, 0
      %v2760 = vsel %vm471, %v344, 0
      %v2763 = vsel %vm471, %v345, 0
      %v2766 = vsel %vm471, %v346, 0
      %v2769 = vsel %vm471, %v347, 0
      %v2772 = vsel %vm471, %v348, 0
      %v2775 = vsel %vm471, %v349, 0
      %v2778 = vsel %vm471, %v350, 0
      %v2781 = vsel %vm471, %v351, 0
      %v2784 = vsel %vm471, %v352, 0
      %v2787 = vsel %vm471, %v353, 0
      %v2790 = vsel %vm471, %v354, 0
      %v2793 = vsel %vm471, %v355, 0
      %v2796 = vsel %vm471, %v356, 0
      %v2799 = vsel %vm471, %v357, 0
      %v2802 = vsel %vm471, %v358, 0
      %v2805 = vsel %vm471, %v359, 0
      %v2808 = vsel %vm471, %v360, 0
      %v2811 = vsel %vm471, %v361, 0
      %v2814 = vsel %vm471, %v362, 0
      %v2817 = vsel %vm471, %v363, 0
      %2819 = vmatprep.subr.mxu0 0.0
      %2820 = vmatpush1.msra.mxu0 %v2719
      %2821 = vmatprep.subr.mxu0 0.0
      %2822 = vmatpush1.msra.mxu0 %v2720
      %2823 = vmatprep.subr.mxu0 0.0
      %2824 = vmatpush1.msra.mxu0 %v2721
      %2825 = vmatprep.subr.mxu0 0.0
      %2826 = vmatpush1.msra.mxu0 %v2722
      %2827 = vmatprep.subr.mxu0 0.0
      %2828 = vmatpush1.msra.mxu0 0.0
      %2829 = vmatprep.subr.mxu0 0.0
      %2830 = vmatpush1.msra.mxu0 0.0
      %2831 = vmatprep.subr.mxu0 0.0
      %2832 = vmatpush1.msra.mxu0 0.0
      %2833 = vmatprep.subr.mxu0 0.0
      %2834 = vmatpush1.msra.mxu0 0.0
      %2835 = vmatprep.subr.mxu0 0.0
      %2836 = vmatpush1.msra.mxu0 0.0
      %2837 = vmatprep.subr.mxu0 0.0
      %2838 = vmatpush1.msra.mxu0 0.0
      %2839 = vmatprep.subr.mxu0 0.0
      %2840 = vmatpush1.msra.mxu0 0.0
      %2841 = vmatprep.subr.mxu0 0.0
      %2842 = vmatpush1.msra.mxu0 0.0
      %2843 = vmatprep.subr.mxu0 0.0
      %2844 = vmatpush1.msra.mxu0 0.0
      %2845 = vmatprep.subr.mxu0 0.0
      %2846 = vmatpush1.msra.mxu0 0.0
      %2847 = vmatprep.subr.mxu0 0.0
      %2848 = vmatpush1.msra.mxu0 0.0
      %2849 = vmatprep.subr.mxu0 0.0
      %2850 = vmatpush1.msra.mxu0 0.0
      %2851 = vmatprep.subr.mxu0 0.0
      %2852 = vmatpush1.msra.mxu0 0.0
      %2853 = vmatprep.subr.mxu0 0.0
      %2854 = vmatpush1.msra.mxu0 0.0
      %2855 = vmatprep.subr.mxu0 0.0
      %2856 = vmatpush1.msra.mxu0 0.0
      %2857 = vmatprep.subr.mxu0 0.0
      %2858 = vmatpush1.msra.mxu0 0.0
      %2859 = vmatprep.subr.mxu0 0.0
      %2860 = vmatpush1.msra.mxu0 0.0
      %2861 = vmatprep.subr.mxu0 0.0
      %2862 = vmatpush1.msra.mxu0 0.0
      %2863 = vmatprep.subr.mxu0 0.0
      %2864 = vmatpush1.msra.mxu0 0.0
      %2865 = vmatprep.subr.mxu0 0.0
      %2866 = vmatpush1.msra.mxu0 0.0
      %2867 = vmatprep.subr.mxu0 0.0
      %2868 = vmatpush1.msra.mxu0 0.0
      %2869 = vmatprep.subr.mxu0 0.0
      %2870 = vmatpush1.msra.mxu0 0.0
      %2871 = vmatprep.subr.mxu0 0.0
      %2872 = vmatpush1.msra.mxu0 0.0
      %2873 = vmatprep.subr.mxu0 0.0
      %2874 = vmatpush1.msra.mxu0 0.0
      %2875 = vmatprep.subr.mxu0 0.0
      %2876 = vmatpush1.msra.mxu0 0.0
      %2877 = vmatprep.subr.mxu0 0.0
      %2878 = vmatpush1.msra.mxu0 0.0
      %2879 = vmatprep.subr.mxu0 0.0
      %2880 = vmatpush1.msra.mxu0 0.0
      %2881 = vmatprep.subr.mxu0 0.0
      %2882 = vmatpush1.msra.mxu0 0.0
      %2883 = vmatprep.mubr.f32.mxu0 0.0
      %2884 = vmatmul.mubr.f32.gmra.mrb[0].mxu0 %v2724
      %v2885 = vpop.f32.mrb[0].mxu0
      %v2886 = vadd.f32 0.0, %v2885
      %v2887 = vpop.f32.mrb[0].mxu0
      %2888 = vmatprep.mubr.f32.mxu0 0.0
      %2889 = vmatmul.mubr.f32.gmra.mrb[0].mxu0 %v2727
      %v2890 = vpop.f32.mrb[0].mxu0
      %v2891 = vadd.f32 0.0, %v2890
      %v2892 = vpop.f32.mrb[0].mxu0
      %2893 = vmatprep.mubr.f32.mxu0 0.0
      %2894 = vmatmul.mubr.f32.gmra.mrb[0].mxu0 %v2730
      %v2895 = vpop.f32.mrb[0].mxu0
      %v2896 = vadd.f32 0.0, %v2895
      %v2897 = vpop.f32.mrb[0].mxu0
      %2898 = vmatprep.mubr.f32.mxu0 0.0
      %2899 = vmatmul.mubr.f32.gmra.mrb[0].mxu0 %v2733
      %v2900 = vpop.f32.mrb[0].mxu0
      %v2901 = vadd.f32 0.0, %v2900
      %v2902 = vpop.f32.mrb[0].mxu0
      %2903 = vmatprep.mubr.f32.mxu0 0.0
      %2904 = vmatmul.mubr.f32.gmra.mrb[0].mxu0 %v2736
      %v2905 = vpop.f32.mrb[0].mxu0
      %v2906 = vadd.f32 0.0, %v2905
      %v2907 = vpop.f32.mrb[0].mxu0
      %2908 = vmatprep.mubr.f32.mxu0 0.0
      %2909 = vmatmul.mubr.f32.gmra.mrb[0].mxu0 %v2739
      %v2910 = vpop.f32.mrb[0].mxu0
      %v2911 = vadd.f32 0.0, %v2910
      %v2912 = vpop.f32.mrb[0].mxu0
      %2913 = vmatprep.mubr.f32.mxu0 0.0
      %2914 = vmatmul.mubr.f32.gmra.mrb[0].mxu0 %v2742
      %v2915 = vpop.f32.mrb[0].mxu0
      %v2916 = vadd.f32 0.0, %v2915
      %v2917 = vpop.f32.mrb[0].mxu0
      %2918 = vmatprep.mubr.f32.mxu0 0.0
      %2919 = vmatmul.mubr.f32.gmra.mrb[0].mxu0 %v2745
      %v2920 = vpop.f32.mrb[0].mxu0
      %v2921 = vadd.f32 0.0, %v2920
      %v2922 = vpop.f32.mrb[0].mxu0
      %2923 = vmatprep.mubr.f32.mxu0 0.0
      %2924 = vmatmul.mubr.f32.gmra.mrb[0].mxu0 %v2748
      %v2925 = vpop.f32.mrb[0].mxu0
      %v2926 = vadd.f32 0.0, %v2925
      %v2927 = vpop.f32.mrb[0].mxu0
      %2928 = vmatprep.mubr.f32.mxu0 0.0
      %2929 = vmatmul.mubr.f32.gmra.mrb[0].mxu0 %v2751
      %v2930 = vpop.f32.mrb[0].mxu0
      %v2931 = vadd.f32 0.0, %v2930
      %v2932 = vpop.f32.mrb[0].mxu0
      %2933 = vmatprep.mubr.f32.mxu0 0.0
      %2934 = vmatmul.mubr.f32.gmra.mrb[0].mxu0 %v2754
      %v2935 = vpop.f32.mrb[0].mxu0
      %v2936 = vadd.f32 0.0, %v2935
      %v2937 = vpop.f32.mrb[0].mxu0
      %2938 = vmatprep.mubr.f32.mxu0 0.0
      %2939 = vmatmul.mubr.f32.gmra.mrb[0].mxu0 %v2757
      %v2940 = vpop.f32.mrb[0].mxu0
      %v2941 = vadd.f32 0.0, %v2940
      %v2942 = vpop.f32.mrb[0].mxu0
      %2943 = vmatprep.mubr.f32.mxu0 0.0
      %2944 = vmatmul.mubr.f32.gmra.mrb[0].mxu0 %v2760
      %v2945 = vpop.f32.mrb[0].mxu0
      %v2946 = vadd.f32 0.0, %v2945
      %v2947 = vpop.f32.mrb[0].mxu0
      %2948 = vmatprep.mubr.f32.mxu0 0.0
      %2949 = vmatmul.mubr.f32.gmra.mrb[0].mxu0 %v2763
      %v2950 = vpop.f32.mrb[0].mxu0
      %v2951 = vadd.f32 0.0, %v2950
      %v2952 = vpop.f32.mrb[0].mxu0
      %2953 = vmatprep.mubr.f32.mxu0 0.0
      %2954 = vmatmul.mubr.f32.gmra.mrb[0].mxu0 %v2766
      %v2955 = vpop.f32.mrb[0].mxu0
      %v2956 = vadd.f32 0.0, %v2955
      %v2957 = vpop.f32.mrb[0].mxu0
      %2958 = vmatprep.mubr.f32.mxu0 0.0
      %2959 = vmatmul.mubr.f32.gmra.mrb[0].mxu0 %v2769
      %v2960 = vpop.f32.mrb[0].mxu0
      %v2961 = vadd.f32 0.0, %v2960
      %v2962 = vpop.f32.mrb[0].mxu0
      %2963 = vmatprep.mubr.f32.mxu0 0.0
      %2964 = vmatmul.mubr.f32.gmra.mrb[0].mxu0 %v2772
      %v2965 = vpop.f32.mrb[0].mxu0
      %v2966 = vadd.f32 0.0, %v2965
      %v2967 = vpop.f32.mrb[0].mxu0
      %2968 = vmatprep.mubr.f32.mxu0 0.0
      %2969 = vmatmul.mubr.f32.gmra.mrb[0].mxu0 %v2775
      %v2970 = vpop.f32.mrb[0].mxu0
      %v2971 = vadd.f32 0.0, %v2970
      %v2972 = vpop.f32.mrb[0].mxu0
      %2973 = vmatprep.mubr.f32.mxu0 0.0
      %2974 = vmatmul.mubr.f32.gmra.mrb[0].mxu0 %v2778
      %v2975 = vpop.f32.mrb[0].mxu0
      %v2976 = vadd.f32 0.0, %v2975
      %v2977 = vpop.f32.mrb[0].mxu0
      %2978 = vmatprep.mubr.f32.mxu0 0.0
      %2979 = vmatmul.mubr.f32.gmra.mrb[0].mxu0 %v2781
      %v2980 = vpop.f32.mrb[0].mxu0
      %v2981 = vadd.f32 0.0, %v2980
      %v2982 = vpop.f32.mrb[0].mxu0
      %2983 = vmatprep.mubr.f32.mxu0 0.0
      %2984 = vmatmul.mubr.f32.gmra.mrb[0].mxu0 %v2784
      %v2985 = vpop.f32.mrb[0].mxu0
      %v2986 = vadd.f32 0.0, %v2985
      %v2987 = vpop.f32.mrb[0].mxu0
      %2988 = vmatprep.mubr.f32.mxu0 0.0
      %2989 = vmatmul.mubr.f32.gmra.mrb[0].mxu0 %v2787
      %v2990 = vpop.f32.mrb[0].mxu0
      %v2991 = vadd.f32 0.0, %v2990
      %v2992 = vpop.f32.mrb[0].mxu0
      %2993 = vmatprep.mubr.f32.mxu0 0.0
      %2994 = vmatmul.mubr.f32.gmra.mrb[0].mxu0 %v2790
      %v2995 = vpop.f32.mrb[0].mxu0
      %v2996 = vadd.f32 0.0, %v2995
      %v2997 = vpop.f32.mrb[0].mxu0
      %2998 = vmatprep.mubr.f32.mxu0 0.0
      %2999 = vmatmul.mubr.f32.gmra.mrb[0].mxu0 %v2793
      %v3000 = vpop.f32.mrb[0].mxu0
      %v3001 = vadd.f32 0.0, %v3000
      %v3002 = vpop.f32.mrb[0].mxu0
      %3003 = vmatprep.mubr.f32.mxu0 0.0
      %3004 = vmatmul.mubr.f32.gmra.mrb[0].mxu0 %v2796
      %v3005 = vpop.f32.mrb[0].mxu0
      %v3006 = vadd.f32 0.0, %v3005
      %v3007 = vpop.f32.mrb[0].mxu0
      %3008 = vmatprep.mubr.f32.mxu0 0.0
      %3009 = vmatmul.mubr.f32.gmra.mrb[0].mxu0 %v2799
      %v3010 = vpop.f32.mrb[0].mxu0
      %v3011 = vadd.f32 0.0, %v3010
      %v3012 = vpop.f32.mrb[0].mxu0
      %3013 = vmatprep.mubr.f32.mxu0 0.0
      %3014 = vmatmul.mubr.f32.gmra.mrb[0].mxu0 %v2802
      %v3015 = vpop.f32.mrb[0].mxu0
      %v3016 = vadd.f32 0.0, %v3015
      %v3017 = vpop.f32.mrb[0].mxu0
      %3018 = vmatprep.mubr.f32.mxu0 0.0
      %3019 = vmatmul.mubr.f32.gmra.mrb[0].mxu0 %v2805
      %v3020 = vpop.f32.mrb[0].mxu0
      %v3021 = vadd.f32 0.0, %v3020
      %v3022 = vpop.f32.mrb[0].mxu0
      %3023 = vmatprep.mubr.f32.mxu0 0.0
      %3024 = vmatmul.mubr.f32.gmra.mrb[0].mxu0 %v2808
      %v3025 = vpop.f32.mrb[0].mxu0
      %v3026 = vadd.f32 0.0, %v3025
      %v3027 = vpop.f32.mrb[0].mxu0
      %3028 = vmatprep.mubr.f32.mxu0 0.0
      %3029 = vmatmul.mubr.f32.gmra.mrb[0].mxu0 %v2811
      %v3030 = vpop.f32.mrb[0].mxu0
      %v3031 = vadd.f32 0.0, %v3030
      %v3032 = vpop.f32.mrb[0].mxu0
      %3033 = vmatprep.mubr.f32.mxu0 0.0
      %3034 = vmatmul.mubr.f32.gmra.mrb[0].mxu0 %v2814
      %v3035 = vpop.f32.mrb[0].mxu0
      %v3036 = vadd.f32 0.0, %v3035
      %v3037 = vpop.f32.mrb[0].mxu0
      %3038 = vmatprep.mubr.f32.mxu0 0.0
      %3039 = vmatmul.mubr.f32.gmra.mrb[0].mxu0 %v2817
      %v3040 = vpop.f32.mrb[0].mxu0
      %v3041 = vadd.f32 0.0, %v3040
      %v3042 = vpop.f32.mrb[0].mxu0
      %3043 = vdwg.mxu0
      %v3044 = vadd.f32 %v2686, %v2886
      %v3045 = vadd.f32 %v2687, %v2891
      %v3046 = vadd.f32 %v2688, %v2896
      %v3047 = vadd.f32 %v2689, %v2901
      %v3048 = vadd.f32 %v2690, %v2906
      %v3049 = vadd.f32 %v2691, %v2911
      %v3050 = vadd.f32 %v2692, %v2916
      %v3051 = vadd.f32 %v2693, %v2921
      %v3052 = vadd.f32 %v2694, %v2926
      %v3053 = vadd.f32 %v2695, %v2931
      %v3054 = vadd.f32 %v2696, %v2936
      %v3055 = vadd.f32 %v2697, %v2941
      %v3056 = vadd.f32 %v2698, %v2946
      %v3057 = vadd.f32 %v2699, %v2951
      %v3058 = vadd.f32 %v2700, %v2956
      %v3059 = vadd.f32 %v2701, %v2961
      %v3060 = vadd.f32 %v2702, %v2966
      %v3061 = vadd.f32 %v2703, %v2971
      %v3062 = vadd.f32 %v2704, %v2976
      %v3063 = vadd.f32 %v2705, %v2981
      %v3064 = vadd.f32 %v2706, %v2986
      %v3065 = vadd.f32 %v2707, %v2991
      %v3066 = vadd.f32 %v2708, %v2996
      %v3067 = vadd.f32 %v2709, %v3001
      %v3068 = vadd.f32 %v2710, %v3006
      %v3069 = vadd.f32 %v2711, %v3011
      %v3070 = vadd.f32 %v2712, %v3016
      %v3071 = vadd.f32 %v2713, %v3021
      %v3072 = vadd.f32 %v2714, %v3026
      %v3073 = vadd.f32 %v2715, %v3031
      %v3074 = vadd.f32 %v2716, %v3036
      %v3075 = vadd.f32 %v2717, %v3041
      %v3076 = vadd.f32 %v3044, %v1834
      %v3077 = vadd.f32 %v3045, %v1834
      %v3078 = vadd.f32 %v3046, %v1834
      %v3079 = vadd.f32 %v3047, %v1834
      %v3080 = vadd.f32 %v3048, %v1834
      %v3081 = vadd.f32 %v3049, %v1834
      %v3082 = vadd.f32 %v3050, %v1834
      %v3083 = vadd.f32 %v3051, %v1834
      %v3084 = vadd.f32 %v3052, %v1834
      %v3085 = vadd.f32 %v3053, %v1834
      %v3086 = vadd.f32 %v3054, %v1834
      %v3087 = vadd.f32 %v3055, %v1834
      %v3088 = vadd.f32 %v3056, %v1834
      %v3089 = vadd.f32 %v3057, %v1834
      %v3090 = vadd.f32 %v3058, %v1834
      %v3091 = vadd.f32 %v3059, %v1834
      %v3092 = vadd.f32 %v3060, %v1834
      %v3093 = vadd.f32 %v3061, %v1834
      %v3094 = vadd.f32 %v3062, %v1834
      %v3095 = vadd.f32 %v3063, %v1834
      %v3096 = vadd.f32 %v3064, %v1834
      %v3097 = vadd.f32 %v3065, %v1834
      %v3098 = vadd.f32 %v3066, %v1834
      %v3099 = vadd.f32 %v3067, %v1834
      %v3100 = vadd.f32 %v3068, %v1834
      %v3101 = vadd.f32 %v3069, %v1834
      %v3102 = vadd.f32 %v3070, %v1834
      %v3103 = vadd.f32 %v3071, %v1834
      %v3104 = vadd.f32 %v3072, %v1834
      %v3105 = vadd.f32 %v3073, %v1834
      %v3106 = vadd.f32 %v3074, %v1834
      %v3107 = vadd.f32 %v3075, %v1834
      %s3108 = scalar_lea.vmem %s170, 256
      %3109 = vst.msk [vmem:[%s3108] sm:$0xff] %vm471, %v3076
      %3110 = vst.msk [vmem:[%s3108 + $0x8] sm:$0xff] %vm471, %v3077
      %3111 = vst.msk [vmem:[%s3108 + $0x10] sm:$0xff] %vm471, %v3078
      %3112 = vst.msk [vmem:[%s3108 + $0x18] sm:$0xff] %vm471, %v3079
      %3113 = vst.msk [vmem:[%s3108 + $0x20] sm:$0xff] %vm471, %v3080
      %3114 = vst.msk [vmem:[%s3108 + $0x28] sm:$0xff] %vm471, %v3081
      %3115 = vst.msk [vmem:[%s3108 + $0x30] sm:$0xff] %vm471, %v3082
      %3116 = vst.msk [vmem:[%s3108 + $0x38] sm:$0xff] %vm471, %v3083
      %3117 = vst.msk [vmem:[%s3108 + $0x40] sm:$0xff] %vm471, %v3084
      %3118 = vst.msk [vmem:[%s3108 + $0x48] sm:$0xff] %vm471, %v3085
      %3119 = vst.msk [vmem:[%s3108 + $0x50] sm:$0xff] %vm471, %v3086
      %3120 = vst.msk [vmem:[%s3108 + $0x58] sm:$0xff] %vm471, %v3087
      %3121 = vst.msk [vmem:[%s3108 + $0x60] sm:$0xff] %vm471, %v3088
      %3122 = vst.msk [vmem:[%s3108 + $0x68] sm:$0xff] %vm471, %v3089
      %3123 = vst.msk [vmem:[%s3108 + $0x70] sm:$0xff] %vm471, %v3090
      %3124 = vst.msk [vmem:[%s3108 + $0x78] sm:$0xff] %vm471, %v3091
      %3125 = vst.msk [vmem:[%s3108 + $0x80] sm:$0xff] %vm471, %v3092
      %3126 = vst.msk [vmem:[%s3108 + $0x88] sm:$0xff] %vm471, %v3093
      %3127 = vst.msk [vmem:[%s3108 + $0x90] sm:$0xff] %vm471, %v3094
      %3128 = vst.msk [vmem:[%s3108 + $0x98] sm:$0xff] %vm471, %v3095
      %3129 = vst.msk [vmem:[%s3108 + $0xa0] sm:$0xff] %vm471, %v3096
      %3130 = vst.msk [vmem:[%s3108 + $0xa8] sm:$0xff] %vm471, %v3097
      %3131 = vst.msk [vmem:[%s3108 + $0xb0] sm:$0xff] %vm471, %v3098
      %3132 = vst.msk [vmem:[%s3108 + $0xb8] sm:$0xff] %vm471, %v3099
      %3133 = vst.msk [vmem:[%s3108 + $0xc0] sm:$0xff] %vm471, %v3100
      %3134 = vst.msk [vmem:[%s3108 + $0xc8] sm:$0xff] %vm471, %v3101
      %3135 = vst.msk [vmem:[%s3108 + $0xd0] sm:$0xff] %vm471, %v3102
      %3136 = vst.msk [vmem:[%s3108 + $0xd8] sm:$0xff] %vm471, %v3103
      %3137 = vst.msk [vmem:[%s3108 + $0xe0] sm:$0xff] %vm471, %v3104
      %3138 = vst.msk [vmem:[%s3108 + $0xe8] sm:$0xff] %vm471, %v3105
      %3139 = vst.msk [vmem:[%s3108 + $0xf0] sm:$0xff] %vm471, %v3106
      %3140 = vst.msk [vmem:[%s3108 + $0xf8] sm:$0xff] %vm471, %v3107
      %s3141 = scalar_lea.vmem %s1, 256
      %v3142 = vld [vmem:[%s3141] sm:$0xff]
      %v3143 = vld [vmem:[%s3141 + $0x8] sm:$0xff]
      %v3144 = vld [vmem:[%s3141 + $0x10] sm:$0xff]
      %v3145 = vld [vmem:[%s3141 + $0x18] sm:$0xff]
      %s3146 = scalar_lea.vmem %s1, 288
      %v3147 = vld [vmem:[%s3146] sm:$0xff]
      %v3148 = vld [vmem:[%s3146 + $0x8] sm:$0xff]
      %v3149 = vld [vmem:[%s3146 + $0x10] sm:$0xff]
      %v3150 = vld [vmem:[%s3146 + $0x18] sm:$0xff]
      %3151 = vmatprep.subr.mxu0 0.0
      %3152 = vmatpush1.msra.mxu0 %v3147
      %3153 = vmatprep.subr.mxu0 0.0
      %3154 = vmatpush1.msra.mxu0 %v3148
      %3155 = vmatprep.subr.mxu0 0.0
      %3156 = vmatpush1.msra.mxu0 %v3149
      %3157 = vmatprep.subr.mxu0 0.0
      %3158 = vmatpush1.msra.mxu0 %v3150
      %3159 = vmatprep.subr.mxu0 0.0
      %3160 = vmatpush1.msra.mxu0 0.0
      %3161 = vmatprep.subr.mxu0 0.0
      %3162 = vmatpush1.msra.mxu0 0.0
      %3163 = vmatprep.subr.mxu0 0.0
      %3164 = vmatpush1.msra.mxu0 0.0
      %3165 = vmatprep.subr.mxu0 0.0
      %3166 = vmatpush1.msra.mxu0 0.0
      %3167 = vmatprep.subr.mxu0 0.0
      %3168 = vmatpush1.msra.mxu0 0.0
      %3169 = vmatprep.subr.mxu0 0.0
      %3170 = vmatpush1.msra.mxu0 0.0
      %3171 = vmatprep.subr.mxu0 0.0
      %3172 = vmatpush1.msra.mxu0 0.0
      %3173 = vmatprep.subr.mxu0 0.0
      %3174 = vmatpush1.msra.mxu0 0.0
      %3175 = vmatprep.subr.mxu0 0.0
      %3176 = vmatpush1.msra.mxu0 0.0
      %3177 = vmatprep.subr.mxu0 0.0
      %3178 = vmatpush1.msra.mxu0 0.0
      %3179 = vmatprep.subr.mxu0 0.0
      %3180 = vmatpush1.msra.mxu0 0.0
      %3181 = vmatprep.subr.mxu0 0.0
      %3182 = vmatpush1.msra.mxu0 0.0
      %3183 = vmatprep.subr.mxu0 0.0
      %3184 = vmatpush1.msra.mxu0 0.0
      %3185 = vmatprep.subr.mxu0 0.0
      %3186 = vmatpush1.msra.mxu0 0.0
      %3187 = vmatprep.subr.mxu0 0.0
      %3188 = vmatpush1.msra.mxu0 0.0
      %3189 = vmatprep.subr.mxu0 0.0
      %3190 = vmatpush1.msra.mxu0 0.0
      %3191 = vmatprep.subr.mxu0 0.0
      %3192 = vmatpush1.msra.mxu0 0.0
      %3193 = vmatprep.subr.mxu0 0.0
      %3194 = vmatpush1.msra.mxu0 0.0
      %3195 = vmatprep.subr.mxu0 0.0
      %3196 = vmatpush1.msra.mxu0 0.0
      %3197 = vmatprep.subr.mxu0 0.0
      %3198 = vmatpush1.msra.mxu0 0.0
      %3199 = vmatprep.subr.mxu0 0.0
      %3200 = vmatpush1.msra.mxu0 0.0
      %3201 = vmatprep.subr.mxu0 0.0
      %3202 = vmatpush1.msra.mxu0 0.0
      %3203 = vmatprep.subr.mxu0 0.0
      %3204 = vmatpush1.msra.mxu0 0.0
      %3205 = vmatprep.subr.mxu0 0.0
      %3206 = vmatpush1.msra.mxu0 0.0
      %3207 = vmatprep.subr.mxu0 0.0
      %3208 = vmatpush1.msra.mxu0 0.0
      %3209 = vmatprep.subr.mxu0 0.0
      %3210 = vmatpush1.msra.mxu0 0.0
      %3211 = vmatprep.subr.mxu0 0.0
      %3212 = vmatpush1.msra.mxu0 0.0
      %3213 = vmatprep.subr.mxu0 0.0
      %3214 = vmatpush1.msra.mxu0 0.0
      %3215 = vmatprep.mubr.f32.mxu0 0.0
      %3216 = vmatmul.mubr.f32.gmra.mrb[0].mxu0 %v1478
      %v3217 = vpop.f32.mrb[0].mxu0
      %v3218 = vadd.f32 0.0, %v3217
      %v3219 = vpop.f32.mrb[0].mxu0
      %3220 = vmatprep.mubr.f32.mxu0 0.0
      %3221 = vmatmul.mubr.f32.gmra.mrb[0].mxu0 %v1481
      %v3222 = vpop.f32.mrb[0].mxu0
      %v3223 = vadd.f32 0.0, %v3222
      %v3224 = vpop.f32.mrb[0].mxu0
      %3225 = vmatprep.mubr.f32.mxu0 0.0
      %3226 = vmatmul.mubr.f32.gmra.mrb[0].mxu0 %v1484
      %v3227 = vpop.f32.mrb[0].mxu0
      %v3228 = vadd.f32 0.0, %v3227
      %v3229 = vpop.f32.mrb[0].mxu0
      %3230 = vmatprep.mubr.f32.mxu0 0.0
      %3231 = vmatmul.mubr.f32.gmra.mrb[0].mxu0 %v1487
      %v3232 = vpop.f32.mrb[0].mxu0
      %v3233 = vadd.f32 0.0, %v3232
      %v3234 = vpop.f32.mrb[0].mxu0
      %3235 = vmatprep.mubr.f32.mxu0 0.0
      %3236 = vmatmul.mubr.f32.gmra.mrb[0].mxu0 %v1490
      %v3237 = vpop.f32.mrb[0].mxu0
      %v3238 = vadd.f32 0.0, %v3237
      %v3239 = vpop.f32.mrb[0].mxu0
      %3240 = vmatprep.mubr.f32.mxu0 0.0
      %3241 = vmatmul.mubr.f32.gmra.mrb[0].mxu0 %v1493
      %v3242 = vpop.f32.mrb[0].mxu0
      %v3243 = vadd.f32 0.0, %v3242
      %v3244 = vpop.f32.mrb[0].mxu0
      %3245 = vmatprep.mubr.f32.mxu0 0.0
      %3246 = vmatmul.mubr.f32.gmra.mrb[0].mxu0 %v1496
      %v3247 = vpop.f32.mrb[0].mxu0
      %v3248 = vadd.f32 0.0, %v3247
      %v3249 = vpop.f32.mrb[0].mxu0
      %3250 = vmatprep.mubr.f32.mxu0 0.0
      %3251 = vmatmul.mubr.f32.gmra.mrb[0].mxu0 %v1499
      %v3252 = vpop.f32.mrb[0].mxu0
      %v3253 = vadd.f32 0.0, %v3252
      %v3254 = vpop.f32.mrb[0].mxu0
      %3255 = vmatprep.mubr.f32.mxu0 0.0
      %3256 = vmatmul.mubr.f32.gmra.mrb[0].mxu0 %v1502
      %v3257 = vpop.f32.mrb[0].mxu0
      %v3258 = vadd.f32 0.0, %v3257
      %v3259 = vpop.f32.mrb[0].mxu0
      %3260 = vmatprep.mubr.f32.mxu0 0.0
      %3261 = vmatmul.mubr.f32.gmra.mrb[0].mxu0 %v1505
      %v3262 = vpop.f32.mrb[0].mxu0
      %v3263 = vadd.f32 0.0, %v3262
      %v3264 = vpop.f32.mrb[0].mxu0
      %3265 = vmatprep.mubr.f32.mxu0 0.0
      %3266 = vmatmul.mubr.f32.gmra.mrb[0].mxu0 %v1508
      %v3267 = vpop.f32.mrb[0].mxu0
      %v3268 = vadd.f32 0.0, %v3267
      %v3269 = vpop.f32.mrb[0].mxu0
      %3270 = vmatprep.mubr.f32.mxu0 0.0
      %3271 = vmatmul.mubr.f32.gmra.mrb[0].mxu0 %v1511
      %v3272 = vpop.f32.mrb[0].mxu0
      %v3273 = vadd.f32 0.0, %v3272
      %v3274 = vpop.f32.mrb[0].mxu0
      %3275 = vmatprep.mubr.f32.mxu0 0.0
      %3276 = vmatmul.mubr.f32.gmra.mrb[0].mxu0 %v1514
      %v3277 = vpop.f32.mrb[0].mxu0
      %v3278 = vadd.f32 0.0, %v3277
      %v3279 = vpop.f32.mrb[0].mxu0
      %3280 = vmatprep.mubr.f32.mxu0 0.0
      %3281 = vmatmul.mubr.f32.gmra.mrb[0].mxu0 %v1517
      %v3282 = vpop.f32.mrb[0].mxu0
      %v3283 = vadd.f32 0.0, %v3282
      %v3284 = vpop.f32.mrb[0].mxu0
      %3285 = vmatprep.mubr.f32.mxu0 0.0
      %3286 = vmatmul.mubr.f32.gmra.mrb[0].mxu0 %v1520
      %v3287 = vpop.f32.mrb[0].mxu0
      %v3288 = vadd.f32 0.0, %v3287
      %v3289 = vpop.f32.mrb[0].mxu0
      %3290 = vmatprep.mubr.f32.mxu0 0.0
      %3291 = vmatmul.mubr.f32.gmra.mrb[0].mxu0 %v1523
      %v3292 = vpop.f32.mrb[0].mxu0
      %v3293 = vadd.f32 0.0, %v3292
      %v3294 = vpop.f32.mrb[0].mxu0
      %3295 = vmatprep.mubr.f32.mxu0 0.0
      %3296 = vmatmul.mubr.f32.gmra.mrb[0].mxu0 %v1526
      %v3297 = vpop.f32.mrb[0].mxu0
      %v3298 = vadd.f32 0.0, %v3297
      %v3299 = vpop.f32.mrb[0].mxu0
      %3300 = vmatprep.mubr.f32.mxu0 0.0
      %3301 = vmatmul.mubr.f32.gmra.mrb[0].mxu0 %v1529
      %v3302 = vpop.f32.mrb[0].mxu0
      %v3303 = vadd.f32 0.0, %v3302
      %v3304 = vpop.f32.mrb[0].mxu0
      %3305 = vmatprep.mubr.f32.mxu0 0.0
      %3306 = vmatmul.mubr.f32.gmra.mrb[0].mxu0 %v1532
      %v3307 = vpop.f32.mrb[0].mxu0
      %v3308 = vadd.f32 0.0, %v3307
      %v3309 = vpop.f32.mrb[0].mxu0
      %3310 = vmatprep.mubr.f32.mxu0 0.0
      %3311 = vmatmul.mubr.f32.gmra.mrb[0].mxu0 %v1535
      %v3312 = vpop.f32.mrb[0].mxu0
      %v3313 = vadd.f32 0.0, %v3312
      %v3314 = vpop.f32.mrb[0].mxu0
      %3315 = vmatprep.mubr.f32.mxu0 0.0
      %3316 = vmatmul.mubr.f32.gmra.mrb[0].mxu0 %v1538
      %v3317 = vpop.f32.mrb[0].mxu0
      %v3318 = vadd.f32 0.0, %v3317
      %v3319 = vpop.f32.mrb[0].mxu0
      %3320 = vmatprep.mubr.f32.mxu0 0.0
      %3321 = vmatmul.mubr.f32.gmra.mrb[0].mxu0 %v1541
      %v3322 = vpop.f32.mrb[0].mxu0
      %v3323 = vadd.f32 0.0, %v3322
      %v3324 = vpop.f32.mrb[0].mxu0
      %3325 = vmatprep.mubr.f32.mxu0 0.0
      %3326 = vmatmul.mubr.f32.gmra.mrb[0].mxu0 %v1544
      %v3327 = vpop.f32.mrb[0].mxu0
      %v3328 = vadd.f32 0.0, %v3327
      %v3329 = vpop.f32.mrb[0].mxu0
      %3330 = vmatprep.mubr.f32.mxu0 0.0
      %3331 = vmatmul.mubr.f32.gmra.mrb[0].mxu0 %v1547
      %v3332 = vpop.f32.mrb[0].mxu0
      %v3333 = vadd.f32 0.0, %v3332
      %v3334 = vpop.f32.mrb[0].mxu0
      %3335 = vmatprep.mubr.f32.mxu0 0.0
      %3336 = vmatmul.mubr.f32.gmra.mrb[0].mxu0 %v1550
      %v3337 = vpop.f32.mrb[0].mxu0
      %v3338 = vadd.f32 0.0, %v3337
      %v3339 = vpop.f32.mrb[0].mxu0
      %3340 = vmatprep.mubr.f32.mxu0 0.0
      %3341 = vmatmul.mubr.f32.gmra.mrb[0].mxu0 %v1553
      %v3342 = vpop.f32.mrb[0].mxu0
      %v3343 = vadd.f32 0.0, %v3342
      %v3344 = vpop.f32.mrb[0].mxu0
      %3345 = vmatprep.mubr.f32.mxu0 0.0
      %3346 = vmatmul.mubr.f32.gmra.mrb[0].mxu0 %v1556
      %v3347 = vpop.f32.mrb[0].mxu0
      %v3348 = vadd.f32 0.0, %v3347
      %v3349 = vpop.f32.mrb[0].mxu0
      %3350 = vmatprep.mubr.f32.mxu0 0.0
      %3351 = vmatmul.mubr.f32.gmra.mrb[0].mxu0 %v1559
      %v3352 = vpop.f32.mrb[0].mxu0
      %v3353 = vadd.f32 0.0, %v3352
      %v3354 = vpop.f32.mrb[0].mxu0
      %3355 = vmatprep.mubr.f32.mxu0 0.0
      %3356 = vmatmul.mubr.f32.gmra.mrb[0].mxu0 %v1562
      %v3357 = vpop.f32.mrb[0].mxu0
      %v3358 = vadd.f32 0.0, %v3357
      %v3359 = vpop.f32.mrb[0].mxu0
      %3360 = vmatprep.mubr.f32.mxu0 0.0
      %3361 = vmatmul.mubr.f32.gmra.mrb[0].mxu0 %v1565
      %v3362 = vpop.f32.mrb[0].mxu0
      %v3363 = vadd.f32 0.0, %v3362
      %v3364 = vpop.f32.mrb[0].mxu0
      %3365 = vmatprep.mubr.f32.mxu0 0.0
      %3366 = vmatmul.mubr.f32.gmra.mrb[0].mxu0 %v1568
      %v3367 = vpop.f32.mrb[0].mxu0
      %v3368 = vadd.f32 0.0, %v3367
      %v3369 = vpop.f32.mrb[0].mxu0
      %3370 = vmatprep.mubr.f32.mxu0 0.0
      %3371 = vmatmul.mubr.f32.gmra.mrb[0].mxu0 %v1571
      %v3372 = vpop.f32.mrb[0].mxu0
      %v3373 = vadd.f32 0.0, %v3372
      %v3374 = vpop.f32.mrb[0].mxu0
      %3375 = vdwg.mxu0
      %3376 = vmatprep.subr.mxu0 0.0
      %3377 = vmatpush1.msra.mxu0 %v3142
      %3378 = vmatprep.subr.mxu0 0.0
      %3379 = vmatpush1.msra.mxu0 %v3143
      %3380 = vmatprep.subr.mxu0 0.0
      %3381 = vmatpush1.msra.mxu0 %v3144
      %3382 = vmatprep.subr.mxu0 0.0
      %3383 = vmatpush1.msra.mxu0 %v3145
      %3384 = vmatprep.subr.mxu0 0.0
      %3385 = vmatpush1.msra.mxu0 0.0
      %3386 = vmatprep.subr.mxu0 0.0
      %3387 = vmatpush1.msra.mxu0 0.0
      %3388 = vmatprep.subr.mxu0 0.0
      %3389 = vmatpush1.msra.mxu0 0.0
      %3390 = vmatprep.subr.mxu0 0.0
      %3391 = vmatpush1.msra.mxu0 0.0
      %3392 = vmatprep.subr.mxu0 0.0
      %3393 = vmatpush1.msra.mxu0 0.0
      %3394 = vmatprep.subr.mxu0 0.0
      %3395 = vmatpush1.msra.mxu0 0.0
      %3396 = vmatprep.subr.mxu0 0.0
      %3397 = vmatpush1.msra.mxu0 0.0
      %3398 = vmatprep.subr.mxu0 0.0
      %3399 = vmatpush1.msra.mxu0 0.0
      %3400 = vmatprep.subr.mxu0 0.0
      %3401 = vmatpush1.msra.mxu0 0.0
      %3402 = vmatprep.subr.mxu0 0.0
      %3403 = vmatpush1.msra.mxu0 0.0
      %3404 = vmatprep.subr.mxu0 0.0
      %3405 = vmatpush1.msra.mxu0 0.0
      %3406 = vmatprep.subr.mxu0 0.0
      %3407 = vmatpush1.msra.mxu0 0.0
      %3408 = vmatprep.subr.mxu0 0.0
      %3409 = vmatpush1.msra.mxu0 0.0
      %3410 = vmatprep.subr.mxu0 0.0
      %3411 = vmatpush1.msra.mxu0 0.0
      %3412 = vmatprep.subr.mxu0 0.0
      %3413 = vmatpush1.msra.mxu0 0.0
      %3414 = vmatprep.subr.mxu0 0.0
      %3415 = vmatpush1.msra.mxu0 0.0
      %3416 = vmatprep.subr.mxu0 0.0
      %3417 = vmatpush1.msra.mxu0 0.0
      %3418 = vmatprep.subr.mxu0 0.0
      %3419 = vmatpush1.msra.mxu0 0.0
      %3420 = vmatprep.subr.mxu0 0.0
      %3421 = vmatpush1.msra.mxu0 0.0
      %3422 = vmatprep.subr.mxu0 0.0
      %3423 = vmatpush1.msra.mxu0 0.0
      %3424 = vmatprep.subr.mxu0 0.0
      %3425 = vmatpush1.msra.mxu0 0.0
      %3426 = vmatprep.subr.mxu0 0.0
      %3427 = vmatpush1.msra.mxu0 0.0
      %3428 = vmatprep.subr.mxu0 0.0
      %3429 = vmatpush1.msra.mxu0 0.0
      %3430 = vmatprep.subr.mxu0 0.0
      %3431 = vmatpush1.msra.mxu0 0.0
      %3432 = vmatprep.subr.mxu0 0.0
      %3433 = vmatpush1.msra.mxu0 0.0
      %3434 = vmatprep.subr.mxu0 0.0
      %3435 = vmatpush1.msra.mxu0 0.0
      %3436 = vmatprep.subr.mxu0 0.0
      %3437 = vmatpush1.msra.mxu0 0.0
      %3438 = vmatprep.subr.mxu0 0.0
      %3439 = vmatpush1.msra.mxu0 0.0
      %3440 = vmatprep.mubr.f32.mxu0 0.0
      %3441 = vmatmul.mubr.f32.gmra.mrb[0].mxu0 %v1120
      %v3442 = vpop.f32.mrb[0].mxu0
      %v3443 = vadd.f32 %v3218, %v3442
      %v3444 = vpop.f32.mrb[0].mxu0
      %3445 = vmatprep.mubr.f32.mxu0 0.0
      %3446 = vmatmul.mubr.f32.gmra.mrb[0].mxu0 %v1123
      %v3447 = vpop.f32.mrb[0].mxu0
      %v3448 = vadd.f32 %v3223, %v3447
      %v3449 = vpop.f32.mrb[0].mxu0
      %3450 = vmatprep.mubr.f32.mxu0 0.0
      %3451 = vmatmul.mubr.f32.gmra.mrb[0].mxu0 %v1126
      %v3452 = vpop.f32.mrb[0].mxu0
      %v3453 = vadd.f32 %v3228, %v3452
      %v3454 = vpop.f32.mrb[0].mxu0
      %3455 = vmatprep.mubr.f32.mxu0 0.0
      %3456 = vmatmul.mubr.f32.gmra.mrb[0].mxu0 %v1129
      %v3457 = vpop.f32.mrb[0].mxu0
      %v3458 = vadd.f32 %v3233, %v3457
      %v3459 = vpop.f32.mrb[0].mxu0
      %3460 = vmatprep.mubr.f32.mxu0 0.0
      %3461 = vmatmul.mubr.f32.gmra.mrb[0].mxu0 %v1132
      %v3462 = vpop.f32.mrb[0].mxu0
      %v3463 = vadd.f32 %v3238, %v3462
      %v3464 = vpop.f32.mrb[0].mxu0
      %3465 = vmatprep.mubr.f32.mxu0 0.0
      %3466 = vmatmul.mubr.f32.gmra.mrb[0].mxu0 %v1135
      %v3467 = vpop.f32.mrb[0].mxu0
      %v3468 = vadd.f32 %v3243, %v3467
      %v3469 = vpop.f32.mrb[0].mxu0
      %3470 = vmatprep.mubr.f32.mxu0 0.0
      %3471 = vmatmul.mubr.f32.gmra.mrb[0].mxu0 %v1138
      %v3472 = vpop.f32.mrb[0].mxu0
      %v3473 = vadd.f32 %v3248, %v3472
      %v3474 = vpop.f32.mrb[0].mxu0
      %3475 = vmatprep.mubr.f32.mxu0 0.0
      %3476 = vmatmul.mubr.f32.gmra.mrb[0].mxu0 %v1141
      %v3477 = vpop.f32.mrb[0].mxu0
      %v3478 = vadd.f32 %v3253, %v3477
      %v3479 = vpop.f32.mrb[0].mxu0
      %3480 = vmatprep.mubr.f32.mxu0 0.0
      %3481 = vmatmul.mubr.f32.gmra.mrb[0].mxu0 %v1144
      %v3482 = vpop.f32.mrb[0].mxu0
      %v3483 = vadd.f32 %v3258, %v3482
      %v3484 = vpop.f32.mrb[0].mxu0
      %3485 = vmatprep.mubr.f32.mxu0 0.0
      %3486 = vmatmul.mubr.f32.gmra.mrb[0].mxu0 %v1147
      %v3487 = vpop.f32.mrb[0].mxu0
      %v3488 = vadd.f32 %v3263, %v3487
      %v3489 = vpop.f32.mrb[0].mxu0
      %3490 = vmatprep.mubr.f32.mxu0 0.0
      %3491 = vmatmul.mubr.f32.gmra.mrb[0].mxu0 %v1150
      %v3492 = vpop.f32.mrb[0].mxu0
      %v3493 = vadd.f32 %v3268, %v3492
      %v3494 = vpop.f32.mrb[0].mxu0
      %3495 = vmatprep.mubr.f32.mxu0 0.0
      %3496 = vmatmul.mubr.f32.gmra.mrb[0].mxu0 %v1153
      %v3497 = vpop.f32.mrb[0].mxu0
      %v3498 = vadd.f32 %v3273, %v3497
      %v3499 = vpop.f32.mrb[0].mxu0
      %3500 = vmatprep.mubr.f32.mxu0 0.0
      %3501 = vmatmul.mubr.f32.gmra.mrb[0].mxu0 %v1156
      %v3502 = vpop.f32.mrb[0].mxu0
      %v3503 = vadd.f32 %v3278, %v3502
      %v3504 = vpop.f32.mrb[0].mxu0
      %3505 = vmatprep.mubr.f32.mxu0 0.0
      %3506 = vmatmul.mubr.f32.gmra.mrb[0].mxu0 %v1159
      %v3507 = vpop.f32.mrb[0].mxu0
      %v3508 = vadd.f32 %v3283, %v3507
      %v3509 = vpop.f32.mrb[0].mxu0
      %3510 = vmatprep.mubr.f32.mxu0 0.0
      %3511 = vmatmul.mubr.f32.gmra.mrb[0].mxu0 %v1162
      %v3512 = vpop.f32.mrb[0].mxu0
      %v3513 = vadd.f32 %v3288, %v3512
      %v3514 = vpop.f32.mrb[0].mxu0
      %3515 = vmatprep.mubr.f32.mxu0 0.0
      %3516 = vmatmul.mubr.f32.gmra.mrb[0].mxu0 %v1165
      %v3517 = vpop.f32.mrb[0].mxu0
      %v3518 = vadd.f32 %v3293, %v3517
      %v3519 = vpop.f32.mrb[0].mxu0
      %3520 = vmatprep.mubr.f32.mxu0 0.0
      %3521 = vmatmul.mubr.f32.gmra.mrb[0].mxu0 %v1168
      %v3522 = vpop.f32.mrb[0].mxu0
      %v3523 = vadd.f32 %v3298, %v3522
      %v3524 = vpop.f32.mrb[0].mxu0
      %3525 = vmatprep.mubr.f32.mxu0 0.0
      %3526 = vmatmul.mubr.f32.gmra.mrb[0].mxu0 %v1171
      %v3527 = vpop.f32.mrb[0].mxu0
      %v3528 = vadd.f32 %v3303, %v3527
      %v3529 = vpop.f32.mrb[0].mxu0
      %3530 = vmatprep.mubr.f32.mxu0 0.0
      %3531 = vmatmul.mubr.f32.gmra.mrb[0].mxu0 %v1174
      %v3532 = vpop.f32.mrb[0].mxu0
      %v3533 = vadd.f32 %v3308, %v3532
      %v3534 = vpop.f32.mrb[0].mxu0
      %3535 = vmatprep.mubr.f32.mxu0 0.0
      %3536 = vmatmul.mubr.f32.gmra.mrb[0].mxu0 %v1177
      %v3537 = vpop.f32.mrb[0].mxu0
      %v3538 = vadd.f32 %v3313, %v3537
      %v3539 = vpop.f32.mrb[0].mxu0
      %3540 = vmatprep.mubr.f32.mxu0 0.0
      %3541 = vmatmul.mubr.f32.gmra.mrb[0].mxu0 %v1180
      %v3542 = vpop.f32.mrb[0].mxu0
      %v3543 = vadd.f32 %v3318, %v3542
      %v3544 = vpop.f32.mrb[0].mxu0
      %3545 = vmatprep.mubr.f32.mxu0 0.0
      %3546 = vmatmul.mubr.f32.gmra.mrb[0].mxu0 %v1183
      %v3547 = vpop.f32.mrb[0].mxu0
      %v3548 = vadd.f32 %v3323, %v3547
      %v3549 = vpop.f32.mrb[0].mxu0
      %3550 = vmatprep.mubr.f32.mxu0 0.0
      %3551 = vmatmul.mubr.f32.gmra.mrb[0].mxu0 %v1186
      %v3552 = vpop.f32.mrb[0].mxu0
      %v3553 = vadd.f32 %v3328, %v3552
      %v3554 = vpop.f32.mrb[0].mxu0
      %3555 = vmatprep.mubr.f32.mxu0 0.0
      %3556 = vmatmul.mubr.f32.gmra.mrb[0].mxu0 %v1189
      %v3557 = vpop.f32.mrb[0].mxu0
      %v3558 = vadd.f32 %v3333, %v3557
      %v3559 = vpop.f32.mrb[0].mxu0
      %3560 = vmatprep.mubr.f32.mxu0 0.0
      %3561 = vmatmul.mubr.f32.gmra.mrb[0].mxu0 %v1192
      %v3562 = vpop.f32.mrb[0].mxu0
      %v3563 = vadd.f32 %v3338, %v3562
      %v3564 = vpop.f32.mrb[0].mxu0
      %3565 = vmatprep.mubr.f32.mxu0 0.0
      %3566 = vmatmul.mubr.f32.gmra.mrb[0].mxu0 %v1195
      %v3567 = vpop.f32.mrb[0].mxu0
      %v3568 = vadd.f32 %v3343, %v3567
      %v3569 = vpop.f32.mrb[0].mxu0
      %3570 = vmatprep.mubr.f32.mxu0 0.0
      %3571 = vmatmul.mubr.f32.gmra.mrb[0].mxu0 %v1198
      %v3572 = vpop.f32.mrb[0].mxu0
      %v3573 = vadd.f32 %v3348, %v3572
      %v3574 = vpop.f32.mrb[0].mxu0
      %3575 = vmatprep.mubr.f32.mxu0 0.0
      %3576 = vmatmul.mubr.f32.gmra.mrb[0].mxu0 %v1201
      %v3577 = vpop.f32.mrb[0].mxu0
      %v3578 = vadd.f32 %v3353, %v3577
      %v3579 = vpop.f32.mrb[0].mxu0
      %3580 = vmatprep.mubr.f32.mxu0 0.0
      %3581 = vmatmul.mubr.f32.gmra.mrb[0].mxu0 %v1204
      %v3582 = vpop.f32.mrb[0].mxu0
      %v3583 = vadd.f32 %v3358, %v3582
      %v3584 = vpop.f32.mrb[0].mxu0
      %3585 = vmatprep.mubr.f32.mxu0 0.0
      %3586 = vmatmul.mubr.f32.gmra.mrb[0].mxu0 %v1207
      %v3587 = vpop.f32.mrb[0].mxu0
      %v3588 = vadd.f32 %v3363, %v3587
      %v3589 = vpop.f32.mrb[0].mxu0
      %3590 = vmatprep.mubr.f32.mxu0 0.0
      %3591 = vmatmul.mubr.f32.gmra.mrb[0].mxu0 %v1210
      %v3592 = vpop.f32.mrb[0].mxu0
      %v3593 = vadd.f32 %v3368, %v3592
      %v3594 = vpop.f32.mrb[0].mxu0
      %3595 = vmatprep.mubr.f32.mxu0 0.0
      %3596 = vmatmul.mubr.f32.gmra.mrb[0].mxu0 %v1213
      %v3597 = vpop.f32.mrb[0].mxu0
      %v3598 = vadd.f32 %v3373, %v3597
      %v3599 = vpop.f32.mrb[0].mxu0
      %3600 = vdwg.mxu0
      %s3601 = scalar_lea.vmem %s1, 320
      %v3602 = vld [vmem:[%s3601] sm:$0xff]
      %v3603 = vld [vmem:[%s3601 + $0x8] sm:$0xff]
      %v3604 = vld [vmem:[%s3601 + $0x10] sm:$0xff]
      %v3605 = vld [vmem:[%s3601 + $0x18] sm:$0xff]
      %v3607 = vsel %vm471, %v365, 0
      %v3610 = vsel %vm471, %v366, 0
      %v3613 = vsel %vm471, %v367, 0
      %v3616 = vsel %vm471, %v368, 0
      %v3619 = vsel %vm471, %v369, 0
      %v3622 = vsel %vm471, %v370, 0
      %v3625 = vsel %vm471, %v371, 0
      %v3628 = vsel %vm471, %v372, 0
      %v3631 = vsel %vm471, %v373, 0
      %v3634 = vsel %vm471, %v374, 0
      %v3637 = vsel %vm471, %v375, 0
      %v3640 = vsel %vm471, %v376, 0
      %v3643 = vsel %vm471, %v377, 0
      %v3646 = vsel %vm471, %v378, 0
      %v3649 = vsel %vm471, %v379, 0
      %v3652 = vsel %vm471, %v380, 0
      %v3655 = vsel %vm471, %v381, 0
      %v3658 = vsel %vm471, %v382, 0
      %v3661 = vsel %vm471, %v383, 0
      %v3664 = vsel %vm471, %v384, 0
      %v3667 = vsel %vm471, %v385, 0
      %v3670 = vsel %vm471, %v386, 0
      %v3673 = vsel %vm471, %v387, 0
      %v3676 = vsel %vm471, %v388, 0
      %v3679 = vsel %vm471, %v389, 0
      %v3682 = vsel %vm471, %v390, 0
      %v3685 = vsel %vm471, %v391, 0
      %v3688 = vsel %vm471, %v392, 0
      %v3691 = vsel %vm471, %v393, 0
      %v3694 = vsel %vm471, %v394, 0
      %v3697 = vsel %vm471, %v395, 0
      %v3700 = vsel %vm471, %v396, 0
      %3702 = vmatprep.subr.mxu0 0.0
      %3703 = vmatpush1.msra.mxu0 %v3602
      %3704 = vmatprep.subr.mxu0 0.0
      %3705 = vmatpush1.msra.mxu0 %v3603
      %3706 = vmatprep.subr.mxu0 0.0
      %3707 = vmatpush1.msra.mxu0 %v3604
      %3708 = vmatprep.subr.mxu0 0.0
      %3709 = vmatpush1.msra.mxu0 %v3605
      %3710 = vmatprep.subr.mxu0 0.0
      %3711 = vmatpush1.msra.mxu0 0.0
      %3712 = vmatprep.subr.mxu0 0.0
      %3713 = vmatpush1.msra.mxu0 0.0
      %3714 = vmatprep.subr.mxu0 0.0
      %3715 = vmatpush1.msra.mxu0 0.0
      %3716 = vmatprep.subr.mxu0 0.0
      %3717 = vmatpush1.msra.mxu0 0.0
      %3718 = vmatprep.subr.mxu0 0.0
      %3719 = vmatpush1.msra.mxu0 0.0
      %3720 = vmatprep.subr.mxu0 0.0
      %3721 = vmatpush1.msra.mxu0 0.0
      %3722 = vmatprep.subr.mxu0 0.0
      %3723 = vmatpush1.msra.mxu0 0.0
      %3724 = vmatprep.subr.mxu0 0.0
      %3725 = vmatpush1.msra.mxu0 0.0
      %3726 = vmatprep.subr.mxu0 0.0
      %3727 = vmatpush1.msra.mxu0 0.0
      %3728 = vmatprep.subr.mxu0 0.0
      %3729 = vmatpush1.msra.mxu0 0.0
      %3730 = vmatprep.subr.mxu0 0.0
      %3731 = vmatpush1.msra.mxu0 0.0
      %3732 = vmatprep.subr.mxu0 0.0
      %3733 = vmatpush1.msra.mxu0 0.0
      %3734 = vmatprep.subr.mxu0 0.0
      %3735 = vmatpush1.msra.mxu0 0.0
      %3736 = vmatprep.subr.mxu0 0.0
      %3737 = vmatpush1.msra.mxu0 0.0
      %3738 = vmatprep.subr.mxu0 0.0
      %3739 = vmatpush1.msra.mxu0 0.0
      %3740 = vmatprep.subr.mxu0 0.0
      %3741 = vmatpush1.msra.mxu0 0.0
      %3742 = vmatprep.subr.mxu0 0.0
      %3743 = vmatpush1.msra.mxu0 0.0
      %3744 = vmatprep.subr.mxu0 0.0
      %3745 = vmatpush1.msra.mxu0 0.0
      %3746 = vmatprep.subr.mxu0 0.0
      %3747 = vmatpush1.msra.mxu0 0.0
      %3748 = vmatprep.subr.mxu0 0.0
      %3749 = vmatpush1.msra.mxu0 0.0
      %3750 = vmatprep.subr.mxu0 0.0
      %3751 = vmatpush1.msra.mxu0 0.0
      %3752 = vmatprep.subr.mxu0 0.0
      %3753 = vmatpush1.msra.mxu0 0.0
      %3754 = vmatprep.subr.mxu0 0.0
      %3755 = vmatpush1.msra.mxu0 0.0
      %3756 = vmatprep.subr.mxu0 0.0
      %3757 = vmatpush1.msra.mxu0 0.0
      %3758 = vmatprep.subr.mxu0 0.0
      %3759 = vmatpush1.msra.mxu0 0.0
      %3760 = vmatprep.subr.mxu0 0.0
      %3761 = vmatpush1.msra.mxu0 0.0
      %3762 = vmatprep.subr.mxu0 0.0
      %3763 = vmatpush1.msra.mxu0 0.0
      %3764 = vmatprep.subr.mxu0 0.0
      %3765 = vmatpush1.msra.mxu0 0.0
      %3766 = vmatprep.mubr.f32.mxu0 0.0
      %3767 = vmatmul.mubr.f32.gmra.mrb[0].mxu0 %v3607
      %v3768 = vpop.f32.mrb[0].mxu0
      %v3769 = vadd.f32 0.0, %v3768
      %v3770 = vpop.f32.mrb[0].mxu0
      %3771 = vmatprep.mubr.f32.mxu0 0.0
      %3772 = vmatmul.mubr.f32.gmra.mrb[0].mxu0 %v3610
      %v3773 = vpop.f32.mrb[0].mxu0
      %v3774 = vadd.f32 0.0, %v3773
      %v3775 = vpop.f32.mrb[0].mxu0
      %3776 = vmatprep.mubr.f32.mxu0 0.0
      %3777 = vmatmul.mubr.f32.gmra.mrb[0].mxu0 %v3613
      %v3778 = vpop.f32.mrb[0].mxu0
      %v3779 = vadd.f32 0.0, %v3778
      %v3780 = vpop.f32.mrb[0].mxu0
      %3781 = vmatprep.mubr.f32.mxu0 0.0
      %3782 = vmatmul.mubr.f32.gmra.mrb[0].mxu0 %v3616
      %v3783 = vpop.f32.mrb[0].mxu0
      %v3784 = vadd.f32 0.0, %v3783
      %v3785 = vpop.f32.mrb[0].mxu0
      %3786 = vmatprep.mubr.f32.mxu0 0.0
      %3787 = vmatmul.mubr.f32.gmra.mrb[0].mxu0 %v3619
      %v3788 = vpop.f32.mrb[0].mxu0
      %v3789 = vadd.f32 0.0, %v3788
      %v3790 = vpop.f32.mrb[0].mxu0
      %3791 = vmatprep.mubr.f32.mxu0 0.0
      %3792 = vmatmul.mubr.f32.gmra.mrb[0].mxu0 %v3622
      %v3793 = vpop.f32.mrb[0].mxu0
      %v3794 = vadd.f32 0.0, %v3793
      %v3795 = vpop.f32.mrb[0].mxu0
      %3796 = vmatprep.mubr.f32.mxu0 0.0
      %3797 = vmatmul.mubr.f32.gmra.mrb[0].mxu0 %v3625
      %v3798 = vpop.f32.mrb[0].mxu0
      %v3799 = vadd.f32 0.0, %v3798
      %v3800 = vpop.f32.mrb[0].mxu0
      %3801 = vmatprep.mubr.f32.mxu0 0.0
      %3802 = vmatmul.mubr.f32.gmra.mrb[0].mxu0 %v3628
      %v3803 = vpop.f32.mrb[0].mxu0
      %v3804 = vadd.f32 0.0, %v3803
      %v3805 = vpop.f32.mrb[0].mxu0
      %3806 = vmatprep.mubr.f32.mxu0 0.0
      %3807 = vmatmul.mubr.f32.gmra.mrb[0].mxu0 %v3631
      %v3808 = vpop.f32.mrb[0].mxu0
      %v3809 = vadd.f32 0.0, %v3808
      %v3810 = vpop.f32.mrb[0].mxu0
      %3811 = vmatprep.mubr.f32.mxu0 0.0
      %3812 = vmatmul.mubr.f32.gmra.mrb[0].mxu0 %v3634
      %v3813 = vpop.f32.mrb[0].mxu0
      %v3814 = vadd.f32 0.0, %v3813
      %v3815 = vpop.f32.mrb[0].mxu0
      %3816 = vmatprep.mubr.f32.mxu0 0.0
      %3817 = vmatmul.mubr.f32.gmra.mrb[0].mxu0 %v3637
      %v3818 = vpop.f32.mrb[0].mxu0
      %v3819 = vadd.f32 0.0, %v3818
      %v3820 = vpop.f32.mrb[0].mxu0
      %3821 = vmatprep.mubr.f32.mxu0 0.0
      %3822 = vmatmul.mubr.f32.gmra.mrb[0].mxu0 %v3640
      %v3823 = vpop.f32.mrb[0].mxu0
      %v3824 = vadd.f32 0.0, %v3823
      %v3825 = vpop.f32.mrb[0].mxu0
      %3826 = vmatprep.mubr.f32.mxu0 0.0
      %3827 = vmatmul.mubr.f32.gmra.mrb[0].mxu0 %v3643
      %v3828 = vpop.f32.mrb[0].mxu0
      %v3829 = vadd.f32 0.0, %v3828
      %v3830 = vpop.f32.mrb[0].mxu0
      %3831 = vmatprep.mubr.f32.mxu0 0.0
      %3832 = vmatmul.mubr.f32.gmra.mrb[0].mxu0 %v3646
      %v3833 = vpop.f32.mrb[0].mxu0
      %v3834 = vadd.f32 0.0, %v3833
      %v3835 = vpop.f32.mrb[0].mxu0
      %3836 = vmatprep.mubr.f32.mxu0 0.0
      %3837 = vmatmul.mubr.f32.gmra.mrb[0].mxu0 %v3649
      %v3838 = vpop.f32.mrb[0].mxu0
      %v3839 = vadd.f32 0.0, %v3838
      %v3840 = vpop.f32.mrb[0].mxu0
      %3841 = vmatprep.mubr.f32.mxu0 0.0
      %3842 = vmatmul.mubr.f32.gmra.mrb[0].mxu0 %v3652
      %v3843 = vpop.f32.mrb[0].mxu0
      %v3844 = vadd.f32 0.0, %v3843
      %v3845 = vpop.f32.mrb[0].mxu0
      %3846 = vmatprep.mubr.f32.mxu0 0.0
      %3847 = vmatmul.mubr.f32.gmra.mrb[0].mxu0 %v3655
      %v3848 = vpop.f32.mrb[0].mxu0
      %v3849 = vadd.f32 0.0, %v3848
      %v3850 = vpop.f32.mrb[0].mxu0
      %3851 = vmatprep.mubr.f32.mxu0 0.0
      %3852 = vmatmul.mubr.f32.gmra.mrb[0].mxu0 %v3658
      %v3853 = vpop.f32.mrb[0].mxu0
      %v3854 = vadd.f32 0.0, %v3853
      %v3855 = vpop.f32.mrb[0].mxu0
      %3856 = vmatprep.mubr.f32.mxu0 0.0
      %3857 = vmatmul.mubr.f32.gmra.mrb[0].mxu0 %v3661
      %v3858 = vpop.f32.mrb[0].mxu0
      %v3859 = vadd.f32 0.0, %v3858
      %v3860 = vpop.f32.mrb[0].mxu0
      %3861 = vmatprep.mubr.f32.mxu0 0.0
      %3862 = vmatmul.mubr.f32.gmra.mrb[0].mxu0 %v3664
      %v3863 = vpop.f32.mrb[0].mxu0
      %v3864 = vadd.f32 0.0, %v3863
      %v3865 = vpop.f32.mrb[0].mxu0
      %3866 = vmatprep.mubr.f32.mxu0 0.0
      %3867 = vmatmul.mubr.f32.gmra.mrb[0].mxu0 %v3667
      %v3868 = vpop.f32.mrb[0].mxu0
      %v3869 = vadd.f32 0.0, %v3868
      %v3870 = vpop.f32.mrb[0].mxu0
      %3871 = vmatprep.mubr.f32.mxu0 0.0
      %3872 = vmatmul.mubr.f32.gmra.mrb[0].mxu0 %v3670
      %v3873 = vpop.f32.mrb[0].mxu0
      %v3874 = vadd.f32 0.0, %v3873
      %v3875 = vpop.f32.mrb[0].mxu0
      %3876 = vmatprep.mubr.f32.mxu0 0.0
      %3877 = vmatmul.mubr.f32.gmra.mrb[0].mxu0 %v3673
      %v3878 = vpop.f32.mrb[0].mxu0
      %v3879 = vadd.f32 0.0, %v3878
      %v3880 = vpop.f32.mrb[0].mxu0
      %3881 = vmatprep.mubr.f32.mxu0 0.0
      %3882 = vmatmul.mubr.f32.gmra.mrb[0].mxu0 %v3676
      %v3883 = vpop.f32.mrb[0].mxu0
      %v3884 = vadd.f32 0.0, %v3883
      %v3885 = vpop.f32.mrb[0].mxu0
      %3886 = vmatprep.mubr.f32.mxu0 0.0
      %3887 = vmatmul.mubr.f32.gmra.mrb[0].mxu0 %v3679
      %v3888 = vpop.f32.mrb[0].mxu0
      %v3889 = vadd.f32 0.0, %v3888
      %v3890 = vpop.f32.mrb[0].mxu0
      %3891 = vmatprep.mubr.f32.mxu0 0.0
      %3892 = vmatmul.mubr.f32.gmra.mrb[0].mxu0 %v3682
      %v3893 = vpop.f32.mrb[0].mxu0
      %v3894 = vadd.f32 0.0, %v3893
      %v3895 = vpop.f32.mrb[0].mxu0
      %3896 = vmatprep.mubr.f32.mxu0 0.0
      %3897 = vmatmul.mubr.f32.gmra.mrb[0].mxu0 %v3685
      %v3898 = vpop.f32.mrb[0].mxu0
      %v3899 = vadd.f32 0.0, %v3898
      %v3900 = vpop.f32.mrb[0].mxu0
      %3901 = vmatprep.mubr.f32.mxu0 0.0
      %3902 = vmatmul.mubr.f32.gmra.mrb[0].mxu0 %v3688
      %v3903 = vpop.f32.mrb[0].mxu0
      %v3904 = vadd.f32 0.0, %v3903
      %v3905 = vpop.f32.mrb[0].mxu0
      %3906 = vmatprep.mubr.f32.mxu0 0.0
      %3907 = vmatmul.mubr.f32.gmra.mrb[0].mxu0 %v3691
      %v3908 = vpop.f32.mrb[0].mxu0
      %v3909 = vadd.f32 0.0, %v3908
      %v3910 = vpop.f32.mrb[0].mxu0
      %3911 = vmatprep.mubr.f32.mxu0 0.0
      %3912 = vmatmul.mubr.f32.gmra.mrb[0].mxu0 %v3694
      %v3913 = vpop.f32.mrb[0].mxu0
      %v3914 = vadd.f32 0.0, %v3913
      %v3915 = vpop.f32.mrb[0].mxu0
      %3916 = vmatprep.mubr.f32.mxu0 0.0
      %3917 = vmatmul.mubr.f32.gmra.mrb[0].mxu0 %v3697
      %v3918 = vpop.f32.mrb[0].mxu0
      %v3919 = vadd.f32 0.0, %v3918
      %v3920 = vpop.f32.mrb[0].mxu0
      %3921 = vmatprep.mubr.f32.mxu0 0.0
      %3922 = vmatmul.mubr.f32.gmra.mrb[0].mxu0 %v3700
      %v3923 = vpop.f32.mrb[0].mxu0
      %v3924 = vadd.f32 0.0, %v3923
      %v3925 = vpop.f32.mrb[0].mxu0
      %3926 = vdwg.mxu0
      %v3927 = vadd.f32 %v3443, %v3769
      %v3928 = vadd.f32 %v3448, %v3774
      %v3929 = vadd.f32 %v3453, %v3779
      %v3930 = vadd.f32 %v3458, %v3784
      %v3931 = vadd.f32 %v3463, %v3789
      %v3932 = vadd.f32 %v3468, %v3794
      %v3933 = vadd.f32 %v3473, %v3799
      %v3934 = vadd.f32 %v3478, %v3804
      %v3935 = vadd.f32 %v3483, %v3809
      %v3936 = vadd.f32 %v3488, %v3814
      %v3937 = vadd.f32 %v3493, %v3819
      %v3938 = vadd.f32 %v3498, %v3824
      %v3939 = vadd.f32 %v3503, %v3829
      %v3940 = vadd.f32 %v3508, %v3834
      %v3941 = vadd.f32 %v3513, %v3839
      %v3942 = vadd.f32 %v3518, %v3844
      %v3943 = vadd.f32 %v3523, %v3849
      %v3944 = vadd.f32 %v3528, %v3854
      %v3945 = vadd.f32 %v3533, %v3859
      %v3946 = vadd.f32 %v3538, %v3864
      %v3947 = vadd.f32 %v3543, %v3869
      %v3948 = vadd.f32 %v3548, %v3874
      %v3949 = vadd.f32 %v3553, %v3879
      %v3950 = vadd.f32 %v3558, %v3884
      %v3951 = vadd.f32 %v3563, %v3889
      %v3952 = vadd.f32 %v3568, %v3894
      %v3953 = vadd.f32 %v3573, %v3899
      %v3954 = vadd.f32 %v3578, %v3904
      %v3955 = vadd.f32 %v3583, %v3909
      %v3956 = vadd.f32 %v3588, %v3914
      %v3957 = vadd.f32 %v3593, %v3919
      %v3958 = vadd.f32 %v3598, %v3924
      %s3959 = scalar_lea.vmem %s1, 352
      %v3960 = vld [vmem:[%s3959] sm:$0xff]
      %v3961 = vld [vmem:[%s3959 + $0x8] sm:$0xff]
      %v3962 = vld [vmem:[%s3959 + $0x10] sm:$0xff]
      %v3963 = vld [vmem:[%s3959 + $0x18] sm:$0xff]
      %v3965 = vsel %vm471, %v397, 0
      %v3968 = vsel %vm471, %v398, 0
      %v3971 = vsel %vm471, %v399, 0
      %v3974 = vsel %vm471, %v400, 0
      %v3977 = vsel %vm471, %v401, 0
      %v3980 = vsel %vm471, %v402, 0
      %v3983 = vsel %vm471, %v403, 0
      %v3986 = vsel %vm471, %v404, 0
      %v3989 = vsel %vm471, %v405, 0
      %v3992 = vsel %vm471, %v406, 0
      %v3995 = vsel %vm471, %v407, 0
      %v3998 = vsel %vm471, %v408, 0
      %v4001 = vsel %vm471, %v409, 0
      %v4004 = vsel %vm471, %v410, 0
      %v4007 = vsel %vm471, %v411, 0
      %v4010 = vsel %vm471, %v412, 0
      %v4013 = vsel %vm471, %v413, 0
      %v4016 = vsel %vm471, %v414, 0
      %v4019 = vsel %vm471, %v415, 0
      %v4022 = vsel %vm471, %v416, 0
      %v4025 = vsel %vm471, %v417, 0
      %v4028 = vsel %vm471, %v418, 0
      %v4031 = vsel %vm471, %v419, 0
      %v4034 = vsel %vm471, %v420, 0
      %v4037 = vsel %vm471, %v421, 0
      %v4040 = vsel %vm471, %v422, 0
      %v4043 = vsel %vm471, %v423, 0
      %v4046 = vsel %vm471, %v424, 0
      %v4049 = vsel %vm471, %v425, 0
      %v4052 = vsel %vm471, %v426, 0
      %v4055 = vsel %vm471, %v427, 0
      %v4058 = vsel %vm471, %v428, 0
      %4060 = vmatprep.subr.mxu0 0.0
      %4061 = vmatpush1.msra.mxu0 %v3960
      %4062 = vmatprep.subr.mxu0 0.0
      %4063 = vmatpush1.msra.mxu0 %v3961
      %4064 = vmatprep.subr.mxu0 0.0
      %4065 = vmatpush1.msra.mxu0 %v3962
      %4066 = vmatprep.subr.mxu0 0.0
      %4067 = vmatpush1.msra.mxu0 %v3963
      %4068 = vmatprep.subr.mxu0 0.0
      %4069 = vmatpush1.msra.mxu0 0.0
      %4070 = vmatprep.subr.mxu0 0.0
      %4071 = vmatpush1.msra.mxu0 0.0
      %4072 = vmatprep.subr.mxu0 0.0
      %4073 = vmatpush1.msra.mxu0 0.0
      %4074 = vmatprep.subr.mxu0 0.0
      %4075 = vmatpush1.msra.mxu0 0.0
      %4076 = vmatprep.subr.mxu0 0.0
      %4077 = vmatpush1.msra.mxu0 0.0
      %4078 = vmatprep.subr.mxu0 0.0
      %4079 = vmatpush1.msra.mxu0 0.0
      %4080 = vmatprep.subr.mxu0 0.0
      %4081 = vmatpush1.msra.mxu0 0.0
      %4082 = vmatprep.subr.mxu0 0.0
      %4083 = vmatpush1.msra.mxu0 0.0
      %4084 = vmatprep.subr.mxu0 0.0
      %4085 = vmatpush1.msra.mxu0 0.0
      %4086 = vmatprep.subr.mxu0 0.0
      %4087 = vmatpush1.msra.mxu0 0.0
      %4088 = vmatprep.subr.mxu0 0.0
      %4089 = vmatpush1.msra.mxu0 0.0
      %4090 = vmatprep.subr.mxu0 0.0
      %4091 = vmatpush1.msra.mxu0 0.0
      %4092 = vmatprep.subr.mxu0 0.0
      %4093 = vmatpush1.msra.mxu0 0.0
      %4094 = vmatprep.subr.mxu0 0.0
      %4095 = vmatpush1.msra.mxu0 0.0
      %4096 = vmatprep.subr.mxu0 0.0
      %4097 = vmatpush1.msra.mxu0 0.0
      %4098 = vmatprep.subr.mxu0 0.0
      %4099 = vmatpush1.msra.mxu0 0.0
      %4100 = vmatprep.subr.mxu0 0.0
      %4101 = vmatpush1.msra.mxu0 0.0
      %4102 = vmatprep.subr.mxu0 0.0
      %4103 = vmatpush1.msra.mxu0 0.0
      %4104 = vmatprep.subr.mxu0 0.0
      %4105 = vmatpush1.msra.mxu0 0.0
      %4106 = vmatprep.subr.mxu0 0.0
      %4107 = vmatpush1.msra.mxu0 0.0
      %4108 = vmatprep.subr.mxu0 0.0
      %4109 = vmatpush1.msra.mxu0 0.0
      %4110 = vmatprep.subr.mxu0 0.0
      %4111 = vmatpush1.msra.mxu0 0.0
      %4112 = vmatprep.subr.mxu0 0.0
      %4113 = vmatpush1.msra.mxu0 0.0
      %4114 = vmatprep.subr.mxu0 0.0
      %4115 = vmatpush1.msra.mxu0 0.0
      %4116 = vmatprep.subr.mxu0 0.0
      %4117 = vmatpush1.msra.mxu0 0.0
      %4118 = vmatprep.subr.mxu0 0.0
      %4119 = vmatpush1.msra.mxu0 0.0
      %4120 = vmatprep.subr.mxu0 0.0
      %4121 = vmatpush1.msra.mxu0 0.0
      %4122 = vmatprep.subr.mxu0 0.0
      %4123 = vmatpush1.msra.mxu0 0.0
      %4124 = vmatprep.mubr.f32.mxu0 0.0
      %4125 = vmatmul.mubr.f32.gmra.mrb[0].mxu0 %v3965
      %v4126 = vpop.f32.mrb[0].mxu0
      %v4127 = vadd.f32 0.0, %v4126
      %v4128 = vpop.f32.mrb[0].mxu0
      %4129 = vmatprep.mubr.f32.mxu0 0.0
      %4130 = vmatmul.mubr.f32.gmra.mrb[0].mxu0 %v3968
      %v4131 = vpop.f32.mrb[0].mxu0
      %v4132 = vadd.f32 0.0, %v4131
      %v4133 = vpop.f32.mrb[0].mxu0
      %4134 = vmatprep.mubr.f32.mxu0 0.0
      %4135 = vmatmul.mubr.f32.gmra.mrb[0].mxu0 %v3971
      %v4136 = vpop.f32.mrb[0].mxu0
      %v4137 = vadd.f32 0.0, %v4136
      %v4138 = vpop.f32.mrb[0].mxu0
      %4139 = vmatprep.mubr.f32.mxu0 0.0
      %4140 = vmatmul.mubr.f32.gmra.mrb[0].mxu0 %v3974
      %v4141 = vpop.f32.mrb[0].mxu0
      %v4142 = vadd.f32 0.0, %v4141
      %v4143 = vpop.f32.mrb[0].mxu0
      %4144 = vmatprep.mubr.f32.mxu0 0.0
      %4145 = vmatmul.mubr.f32.gmra.mrb[0].mxu0 %v3977
      %v4146 = vpop.f32.mrb[0].mxu0
      %v4147 = vadd.f32 0.0, %v4146
      %v4148 = vpop.f32.mrb[0].mxu0
      %4149 = vmatprep.mubr.f32.mxu0 0.0
      %4150 = vmatmul.mubr.f32.gmra.mrb[0].mxu0 %v3980
      %v4151 = vpop.f32.mrb[0].mxu0
      %v4152 = vadd.f32 0.0, %v4151
      %v4153 = vpop.f32.mrb[0].mxu0
      %4154 = vmatprep.mubr.f32.mxu0 0.0
      %4155 = vmatmul.mubr.f32.gmra.mrb[0].mxu0 %v3983
      %v4156 = vpop.f32.mrb[0].mxu0
      %v4157 = vadd.f32 0.0, %v4156
      %v4158 = vpop.f32.mrb[0].mxu0
      %4159 = vmatprep.mubr.f32.mxu0 0.0
      %4160 = vmatmul.mubr.f32.gmra.mrb[0].mxu0 %v3986
      %v4161 = vpop.f32.mrb[0].mxu0
      %v4162 = vadd.f32 0.0, %v4161
      %v4163 = vpop.f32.mrb[0].mxu0
      %4164 = vmatprep.mubr.f32.mxu0 0.0
      %4165 = vmatmul.mubr.f32.gmra.mrb[0].mxu0 %v3989
      %v4166 = vpop.f32.mrb[0].mxu0
      %v4167 = vadd.f32 0.0, %v4166
      %v4168 = vpop.f32.mrb[0].mxu0
      %4169 = vmatprep.mubr.f32.mxu0 0.0
      %4170 = vmatmul.mubr.f32.gmra.mrb[0].mxu0 %v3992
      %v4171 = vpop.f32.mrb[0].mxu0
      %v4172 = vadd.f32 0.0, %v4171
      %v4173 = vpop.f32.mrb[0].mxu0
      %4174 = vmatprep.mubr.f32.mxu0 0.0
      %4175 = vmatmul.mubr.f32.gmra.mrb[0].mxu0 %v3995
      %v4176 = vpop.f32.mrb[0].mxu0
      %v4177 = vadd.f32 0.0, %v4176
      %v4178 = vpop.f32.mrb[0].mxu0
      %4179 = vmatprep.mubr.f32.mxu0 0.0
      %4180 = vmatmul.mubr.f32.gmra.mrb[0].mxu0 %v3998
      %v4181 = vpop.f32.mrb[0].mxu0
      %v4182 = vadd.f32 0.0, %v4181
      %v4183 = vpop.f32.mrb[0].mxu0
      %4184 = vmatprep.mubr.f32.mxu0 0.0
      %4185 = vmatmul.mubr.f32.gmra.mrb[0].mxu0 %v4001
      %v4186 = vpop.f32.mrb[0].mxu0
      %v4187 = vadd.f32 0.0, %v4186
      %v4188 = vpop.f32.mrb[0].mxu0
      %4189 = vmatprep.mubr.f32.mxu0 0.0
      %4190 = vmatmul.mubr.f32.gmra.mrb[0].mxu0 %v4004
      %v4191 = vpop.f32.mrb[0].mxu0
      %v4192 = vadd.f32 0.0, %v4191
      %v4193 = vpop.f32.mrb[0].mxu0
      %4194 = vmatprep.mubr.f32.mxu0 0.0
      %4195 = vmatmul.mubr.f32.gmra.mrb[0].mxu0 %v4007
      %v4196 = vpop.f32.mrb[0].mxu0
      %v4197 = vadd.f32 0.0, %v4196
      %v4198 = vpop.f32.mrb[0].mxu0
      %4199 = vmatprep.mubr.f32.mxu0 0.0
      %4200 = vmatmul.mubr.f32.gmra.mrb[0].mxu0 %v4010
      %v4201 = vpop.f32.mrb[0].mxu0
      %v4202 = vadd.f32 0.0, %v4201
      %v4203 = vpop.f32.mrb[0].mxu0
      %4204 = vmatprep.mubr.f32.mxu0 0.0
      %4205 = vmatmul.mubr.f32.gmra.mrb[0].mxu0 %v4013
      %v4206 = vpop.f32.mrb[0].mxu0
      %v4207 = vadd.f32 0.0, %v4206
      %v4208 = vpop.f32.mrb[0].mxu0
      %4209 = vmatprep.mubr.f32.mxu0 0.0
      %4210 = vmatmul.mubr.f32.gmra.mrb[0].mxu0 %v4016
      %v4211 = vpop.f32.mrb[0].mxu0
      %v4212 = vadd.f32 0.0, %v4211
      %v4213 = vpop.f32.mrb[0].mxu0
      %4214 = vmatprep.mubr.f32.mxu0 0.0
      %4215 = vmatmul.mubr.f32.gmra.mrb[0].mxu0 %v4019
      %v4216 = vpop.f32.mrb[0].mxu0
      %v4217 = vadd.f32 0.0, %v4216
      %v4218 = vpop.f32.mrb[0].mxu0
      %4219 = vmatprep.mubr.f32.mxu0 0.0
      %4220 = vmatmul.mubr.f32.gmra.mrb[0].mxu0 %v4022
      %v4221 = vpop.f32.mrb[0].mxu0
      %v4222 = vadd.f32 0.0, %v4221
      %v4223 = vpop.f32.mrb[0].mxu0
      %4224 = vmatprep.mubr.f32.mxu0 0.0
      %4225 = vmatmul.mubr.f32.gmra.mrb[0].mxu0 %v4025
      %v4226 = vpop.f32.mrb[0].mxu0
      %v4227 = vadd.f32 0.0, %v4226
      %v4228 = vpop.f32.mrb[0].mxu0
      %4229 = vmatprep.mubr.f32.mxu0 0.0
      %4230 = vmatmul.mubr.f32.gmra.mrb[0].mxu0 %v4028
      %v4231 = vpop.f32.mrb[0].mxu0
      %v4232 = vadd.f32 0.0, %v4231
      %v4233 = vpop.f32.mrb[0].mxu0
      %4234 = vmatprep.mubr.f32.mxu0 0.0
      %4235 = vmatmul.mubr.f32.gmra.mrb[0].mxu0 %v4031
      %v4236 = vpop.f32.mrb[0].mxu0
      %v4237 = vadd.f32 0.0, %v4236
      %v4238 = vpop.f32.mrb[0].mxu0
      %4239 = vmatprep.mubr.f32.mxu0 0.0
      %4240 = vmatmul.mubr.f32.gmra.mrb[0].mxu0 %v4034
      %v4241 = vpop.f32.mrb[0].mxu0
      %v4242 = vadd.f32 0.0, %v4241
      %v4243 = vpop.f32.mrb[0].mxu0
      %4244 = vmatprep.mubr.f32.mxu0 0.0
      %4245 = vmatmul.mubr.f32.gmra.mrb[0].mxu0 %v4037
      %v4246 = vpop.f32.mrb[0].mxu0
      %v4247 = vadd.f32 0.0, %v4246
      %v4248 = vpop.f32.mrb[0].mxu0
      %4249 = vmatprep.mubr.f32.mxu0 0.0
      %4250 = vmatmul.mubr.f32.gmra.mrb[0].mxu0 %v4040
      %v4251 = vpop.f32.mrb[0].mxu0
      %v4252 = vadd.f32 0.0, %v4251
      %v4253 = vpop.f32.mrb[0].mxu0
      %4254 = vmatprep.mubr.f32.mxu0 0.0
      %4255 = vmatmul.mubr.f32.gmra.mrb[0].mxu0 %v4043
      %v4256 = vpop.f32.mrb[0].mxu0
      %v4257 = vadd.f32 0.0, %v4256
      %v4258 = vpop.f32.mrb[0].mxu0
      %4259 = vmatprep.mubr.f32.mxu0 0.0
      %4260 = vmatmul.mubr.f32.gmra.mrb[0].mxu0 %v4046
      %v4261 = vpop.f32.mrb[0].mxu0
      %v4262 = vadd.f32 0.0, %v4261
      %v4263 = vpop.f32.mrb[0].mxu0
      %4264 = vmatprep.mubr.f32.mxu0 0.0
      %4265 = vmatmul.mubr.f32.gmra.mrb[0].mxu0 %v4049
      %v4266 = vpop.f32.mrb[0].mxu0
      %v4267 = vadd.f32 0.0, %v4266
      %v4268 = vpop.f32.mrb[0].mxu0
      %4269 = vmatprep.mubr.f32.mxu0 0.0
      %4270 = vmatmul.mubr.f32.gmra.mrb[0].mxu0 %v4052
      %v4271 = vpop.f32.mrb[0].mxu0
      %v4272 = vadd.f32 0.0, %v4271
      %v4273 = vpop.f32.mrb[0].mxu0
      %4274 = vmatprep.mubr.f32.mxu0 0.0
      %4275 = vmatmul.mubr.f32.gmra.mrb[0].mxu0 %v4055
      %v4276 = vpop.f32.mrb[0].mxu0
      %v4277 = vadd.f32 0.0, %v4276
      %v4278 = vpop.f32.mrb[0].mxu0
      %4279 = vmatprep.mubr.f32.mxu0 0.0
      %4280 = vmatmul.mubr.f32.gmra.mrb[0].mxu0 %v4058
      %v4281 = vpop.f32.mrb[0].mxu0
      %v4282 = vadd.f32 0.0, %v4281
      %v4283 = vpop.f32.mrb[0].mxu0
      %4284 = vdwg.mxu0
      %v4285 = vadd.f32 %v3927, %v4127
      %v4286 = vadd.f32 %v3928, %v4132
      %v4287 = vadd.f32 %v3929, %v4137
      %v4288 = vadd.f32 %v3930, %v4142
      %v4289 = vadd.f32 %v3931, %v4147
      %v4290 = vadd.f32 %v3932, %v4152
      %v4291 = vadd.f32 %v3933, %v4157
      %v4292 = vadd.f32 %v3934, %v4162
      %v4293 = vadd.f32 %v3935, %v4167
      %v4294 = vadd.f32 %v3936, %v4172
      %v4295 = vadd.f32 %v3937, %v4177
      %v4296 = vadd.f32 %v3938, %v4182
      %v4297 = vadd.f32 %v3939, %v4187
      %v4298 = vadd.f32 %v3940, %v4192
      %v4299 = vadd.f32 %v3941, %v4197
      %v4300 = vadd.f32 %v3942, %v4202
      %v4301 = vadd.f32 %v3943, %v4207
      %v4302 = vadd.f32 %v3944, %v4212
      %v4303 = vadd.f32 %v3945, %v4217
      %v4304 = vadd.f32 %v3946, %v4222
      %v4305 = vadd.f32 %v3947, %v4227
      %v4306 = vadd.f32 %v3948, %v4232
      %v4307 = vadd.f32 %v3949, %v4237
      %v4308 = vadd.f32 %v3950, %v4242
      %v4309 = vadd.f32 %v3951, %v4247
      %v4310 = vadd.f32 %v3952, %v4252
      %v4311 = vadd.f32 %v3953, %v4257
      %v4312 = vadd.f32 %v3954, %v4262
      %v4313 = vadd.f32 %v3955, %v4267
      %v4314 = vadd.f32 %v3956, %v4272
      %v4315 = vadd.f32 %v3957, %v4277
      %v4316 = vadd.f32 %v3958, %v4282
      %v4317 = vadd.f32 %v4285, %v1834
      %v4318 = vadd.f32 %v4286, %v1834
      %v4319 = vadd.f32 %v4287, %v1834
      %v4320 = vadd.f32 %v4288, %v1834
      %v4321 = vadd.f32 %v4289, %v1834
      %v4322 = vadd.f32 %v4290, %v1834
      %v4323 = vadd.f32 %v4291, %v1834
      %v4324 = vadd.f32 %v4292, %v1834
      %v4325 = vadd.f32 %v4293, %v1834
      %v4326 = vadd.f32 %v4294, %v1834
      %v4327 = vadd.f32 %v4295, %v1834
      %v4328 = vadd.f32 %v4296, %v1834
      %v4329 = vadd.f32 %v4297, %v1834
      %v4330 = vadd.f32 %v4298, %v1834
      %v4331 = vadd.f32 %v4299, %v1834
      %v4332 = vadd.f32 %v4300, %v1834
      %v4333 = vadd.f32 %v4301, %v1834
      %v4334 = vadd.f32 %v4302, %v1834
      %v4335 = vadd.f32 %v4303, %v1834
      %v4336 = vadd.f32 %v4304, %v1834
      %v4337 = vadd.f32 %v4305, %v1834
      %v4338 = vadd.f32 %v4306, %v1834
      %v4339 = vadd.f32 %v4307, %v1834
      %v4340 = vadd.f32 %v4308, %v1834
      %v4341 = vadd.f32 %v4309, %v1834
      %v4342 = vadd.f32 %v4310, %v1834
      %v4343 = vadd.f32 %v4311, %v1834
      %v4344 = vadd.f32 %v4312, %v1834
      %v4345 = vadd.f32 %v4313, %v1834
      %v4346 = vadd.f32 %v4314, %v1834
      %v4347 = vadd.f32 %v4315, %v1834
      %v4348 = vadd.f32 %v4316, %v1834
      %s4349 = scalar_lea.vmem %s170, 512
      %4350 = vst.msk [vmem:[%s4349] sm:$0xff] %vm471, %v4317
      %4351 = vst.msk [vmem:[%s4349 + $0x8] sm:$0xff] %vm471, %v4318
      %4352 = vst.msk [vmem:[%s4349 + $0x10] sm:$0xff] %vm471, %v4319
      %4353 = vst.msk [vmem:[%s4349 + $0x18] sm:$0xff] %vm471, %v4320
      %4354 = vst.msk [vmem:[%s4349 + $0x20] sm:$0xff] %vm471, %v4321
      %4355 = vst.msk [vmem:[%s4349 + $0x28] sm:$0xff] %vm471, %v4322
      %4356 = vst.msk [vmem:[%s4349 + $0x30] sm:$0xff] %vm471, %v4323
      %4357 = vst.msk [vmem:[%s4349 + $0x38] sm:$0xff] %vm471, %v4324
      %4358 = vst.msk [vmem:[%s4349 + $0x40] sm:$0xff] %vm471, %v4325
      %4359 = vst.msk [vmem:[%s4349 + $0x48] sm:$0xff] %vm471, %v4326
      %4360 = vst.msk [vmem:[%s4349 + $0x50] sm:$0xff] %vm471, %v4327
      %4361 = vst.msk [vmem:[%s4349 + $0x58] sm:$0xff] %vm471, %v4328
      %4362 = vst.msk [vmem:[%s4349 + $0x60] sm:$0xff] %vm471, %v4329
      %4363 = vst.msk [vmem:[%s4349 + $0x68] sm:$0xff] %vm471, %v4330
      %4364 = vst.msk [vmem:[%s4349 + $0x70] sm:$0xff] %vm471, %v4331
      %4365 = vst.msk [vmem:[%s4349 + $0x78] sm:$0xff] %vm471, %v4332
      %4366 = vst.msk [vmem:[%s4349 + $0x80] sm:$0xff] %vm471, %v4333
      %4367 = vst.msk [vmem:[%s4349 + $0x88] sm:$0xff] %vm471, %v4334
      %4368 = vst.msk [vmem:[%s4349 + $0x90] sm:$0xff] %vm471, %v4335
      %4369 = vst.msk [vmem:[%s4349 + $0x98] sm:$0xff] %vm471, %v4336
      %4370 = vst.msk [vmem:[%s4349 + $0xa0] sm:$0xff] %vm471, %v4337
      %4371 = vst.msk [vmem:[%s4349 + $0xa8] sm:$0xff] %vm471, %v4338
      %4372 = vst.msk [vmem:[%s4349 + $0xb0] sm:$0xff] %vm471, %v4339
      %4373 = vst.msk [vmem:[%s4349 + $0xb8] sm:$0xff] %vm471, %v4340
      %4374 = vst.msk [vmem:[%s4349 + $0xc0] sm:$0xff] %vm471, %v4341
      %4375 = vst.msk [vmem:[%s4349 + $0xc8] sm:$0xff] %vm471, %v4342
      %4376 = vst.msk [vmem:[%s4349 + $0xd0] sm:$0xff] %vm471, %v4343
      %4377 = vst.msk [vmem:[%s4349 + $0xd8] sm:$0xff] %vm471, %v4344
      %4378 = vst.msk [vmem:[%s4349 + $0xe0] sm:$0xff] %vm471, %v4345
      %4379 = vst.msk [vmem:[%s4349 + $0xe8] sm:$0xff] %vm471, %v4346
      %4380 = vst.msk [vmem:[%s4349 + $0xf0] sm:$0xff] %vm471, %v4347
      %4381 = vst.msk [vmem:[%s4349 + $0xf8] sm:$0xff] %vm471, %v4348
      %s4382 = scalar_lea.vmem %s1, 384
      %v4383 = vld [vmem:[%s4382] sm:$0xff]
      %v4384 = vld [vmem:[%s4382 + $0x8] sm:$0xff]
      %v4385 = vld [vmem:[%s4382 + $0x10] sm:$0xff]
      %v4386 = vld [vmem:[%s4382 + $0x18] sm:$0xff]
      %s4387 = scalar_lea.vmem %s1, 416
      %v4388 = vld [vmem:[%s4387] sm:$0xff]
      %v4389 = vld [vmem:[%s4387 + $0x8] sm:$0xff]
      %v4390 = vld [vmem:[%s4387 + $0x10] sm:$0xff]
      %v4391 = vld [vmem:[%s4387 + $0x18] sm:$0xff]
      %4392 = vmatprep.subr.mxu0 0.0
      %4393 = vmatpush1.msra.mxu0 %v4388
      %4394 = vmatprep.subr.mxu0 0.0
      %4395 = vmatpush1.msra.mxu0 %v4389
      %4396 = vmatprep.subr.mxu0 0.0
      %4397 = vmatpush1.msra.mxu0 %v4390
      %4398 = vmatprep.subr.mxu0 0.0
      %4399 = vmatpush1.msra.mxu0 %v4391
      %4400 = vmatprep.subr.mxu0 0.0
      %4401 = vmatpush1.msra.mxu0 0.0
      %4402 = vmatprep.subr.mxu0 0.0
      %4403 = vmatpush1.msra.mxu0 0.0
      %4404 = vmatprep.subr.mxu0 0.0
      %4405 = vmatpush1.msra.mxu0 0.0
      %4406 = vmatprep.subr.mxu0 0.0
      %4407 = vmatpush1.msra.mxu0 0.0
      %4408 = vmatprep.subr.mxu0 0.0
      %4409 = vmatpush1.msra.mxu0 0.0
      %4410 = vmatprep.subr.mxu0 0.0
      %4411 = vmatpush1.msra.mxu0 0.0
      %4412 = vmatprep.subr.mxu0 0.0
      %4413 = vmatpush1.msra.mxu0 0.0
      %4414 = vmatprep.subr.mxu0 0.0
      %4415 = vmatpush1.msra.mxu0 0.0
      %4416 = vmatprep.subr.mxu0 0.0
      %4417 = vmatpush1.msra.mxu0 0.0
      %4418 = vmatprep.subr.mxu0 0.0
      %4419 = vmatpush1.msra.mxu0 0.0
      %4420 = vmatprep.subr.mxu0 0.0
      %4421 = vmatpush1.msra.mxu0 0.0
      %4422 = vmatprep.subr.mxu0 0.0
      %4423 = vmatpush1.msra.mxu0 0.0
      %4424 = vmatprep.subr.mxu0 0.0
      %4425 = vmatpush1.msra.mxu0 0.0
      %4426 = vmatprep.subr.mxu0 0.0
      %4427 = vmatpush1.msra.mxu0 0.0
      %4428 = vmatprep.subr.mxu0 0.0
      %4429 = vmatpush1.msra.mxu0 0.0
      %4430 = vmatprep.subr.mxu0 0.0
      %4431 = vmatpush1.msra.mxu0 0.0
      %4432 = vmatprep.subr.mxu0 0.0
      %4433 = vmatpush1.msra.mxu0 0.0
      %4434 = vmatprep.subr.mxu0 0.0
      %4435 = vmatpush1.msra.mxu0 0.0
      %4436 = vmatprep.subr.mxu0 0.0
      %4437 = vmatpush1.msra.mxu0 0.0
      %4438 = vmatprep.subr.mxu0 0.0
      %4439 = vmatpush1.msra.mxu0 0.0
      %4440 = vmatprep.subr.mxu0 0.0
      %4441 = vmatpush1.msra.mxu0 0.0
      %4442 = vmatprep.subr.mxu0 0.0
      %4443 = vmatpush1.msra.mxu0 0.0
      %4444 = vmatprep.subr.mxu0 0.0
      %4445 = vmatpush1.msra.mxu0 0.0
      %4446 = vmatprep.subr.mxu0 0.0
      %4447 = vmatpush1.msra.mxu0 0.0
      %4448 = vmatprep.subr.mxu0 0.0
      %4449 = vmatpush1.msra.mxu0 0.0
      %4450 = vmatprep.subr.mxu0 0.0
      %4451 = vmatpush1.msra.mxu0 0.0
      %4452 = vmatprep.subr.mxu0 0.0
      %4453 = vmatpush1.msra.mxu0 0.0
      %4454 = vmatprep.subr.mxu0 0.0
      %4455 = vmatpush1.msra.mxu0 0.0
      %4456 = vmatprep.mubr.f32.mxu0 0.0
      %4457 = vmatmul.mubr.f32.gmra.mrb[0].mxu0 %v2724
      %v4458 = vpop.f32.mrb[0].mxu0
      %v4459 = vadd.f32 0.0, %v4458
      %v4460 = vpop.f32.mrb[0].mxu0
      %4461 = vmatprep.mubr.f32.mxu0 0.0
      %4462 = vmatmul.mubr.f32.gmra.mrb[0].mxu0 %v2727
      %v4463 = vpop.f32.mrb[0].mxu0
      %v4464 = vadd.f32 0.0, %v4463
      %v4465 = vpop.f32.mrb[0].mxu0
      %4466 = vmatprep.mubr.f32.mxu0 0.0
      %4467 = vmatmul.mubr.f32.gmra.mrb[0].mxu0 %v2730
      %v4468 = vpop.f32.mrb[0].mxu0
      %v4469 = vadd.f32 0.0, %v4468
      %v4470 = vpop.f32.mrb[0].mxu0
      %4471 = vmatprep.mubr.f32.mxu0 0.0
      %4472 = vmatmul.mubr.f32.gmra.mrb[0].mxu0 %v2733
      %v4473 = vpop.f32.mrb[0].mxu0
      %v4474 = vadd.f32 0.0, %v4473
      %v4475 = vpop.f32.mrb[0].mxu0
      %4476 = vmatprep.mubr.f32.mxu0 0.0
      %4477 = vmatmul.mubr.f32.gmra.mrb[0].mxu0 %v2736
      %v4478 = vpop.f32.mrb[0].mxu0
      %v4479 = vadd.f32 0.0, %v4478
      %v4480 = vpop.f32.mrb[0].mxu0
      %4481 = vmatprep.mubr.f32.mxu0 0.0
      %4482 = vmatmul.mubr.f32.gmra.mrb[0].mxu0 %v2739
      %v4483 = vpop.f32.mrb[0].mxu0
      %v4484 = vadd.f32 0.0, %v4483
      %v4485 = vpop.f32.mrb[0].mxu0
      %4486 = vmatprep.mubr.f32.mxu0 0.0
      %4487 = vmatmul.mubr.f32.gmra.mrb[0].mxu0 %v2742
      %v4488 = vpop.f32.mrb[0].mxu0
      %v4489 = vadd.f32 0.0, %v4488
      %v4490 = vpop.f32.mrb[0].mxu0
      %4491 = vmatprep.mubr.f32.mxu0 0.0
      %4492 = vmatmul.mubr.f32.gmra.mrb[0].mxu0 %v2745
      %v4493 = vpop.f32.mrb[0].mxu0
      %v4494 = vadd.f32 0.0, %v4493
      %v4495 = vpop.f32.mrb[0].mxu0
      %4496 = vmatprep.mubr.f32.mxu0 0.0
      %4497 = vmatmul.mubr.f32.gmra.mrb[0].mxu0 %v2748
      %v4498 = vpop.f32.mrb[0].mxu0
      %v4499 = vadd.f32 0.0, %v4498
      %v4500 = vpop.f32.mrb[0].mxu0
      %4501 = vmatprep.mubr.f32.mxu0 0.0
      %4502 = vmatmul.mubr.f32.gmra.mrb[0].mxu0 %v2751
      %v4503 = vpop.f32.mrb[0].mxu0
      %v4504 = vadd.f32 0.0, %v4503
      %v4505 = vpop.f32.mrb[0].mxu0
      %4506 = vmatprep.mubr.f32.mxu0 0.0
      %4507 = vmatmul.mubr.f32.gmra.mrb[0].mxu0 %v2754
      %v4508 = vpop.f32.mrb[0].mxu0
      %v4509 = vadd.f32 0.0, %v4508
      %v4510 = vpop.f32.mrb[0].mxu0
      %4511 = vmatprep.mubr.f32.mxu0 0.0
      %4512 = vmatmul.mubr.f32.gmra.mrb[0].mxu0 %v2757
      %v4513 = vpop.f32.mrb[0].mxu0
      %v4514 = vadd.f32 0.0, %v4513
      %v4515 = vpop.f32.mrb[0].mxu0
      %4516 = vmatprep.mubr.f32.mxu0 0.0
      %4517 = vmatmul.mubr.f32.gmra.mrb[0].mxu0 %v2760
      %v4518 = vpop.f32.mrb[0].mxu0
      %v4519 = vadd.f32 0.0, %v4518
      %v4520 = vpop.f32.mrb[0].mxu0
      %4521 = vmatprep.mubr.f32.mxu0 0.0
      %4522 = vmatmul.mubr.f32.gmra.mrb[0].mxu0 %v2763
      %v4523 = vpop.f32.mrb[0].mxu0
      %v4524 = vadd.f32 0.0, %v4523
      %v4525 = vpop.f32.mrb[0].mxu0
      %4526 = vmatprep.mubr.f32.mxu0 0.0
      %4527 = vmatmul.mubr.f32.gmra.mrb[0].mxu0 %v2766
      %v4528 = vpop.f32.mrb[0].mxu0
      %v4529 = vadd.f32 0.0, %v4528
      %v4530 = vpop.f32.mrb[0].mxu0
      %4531 = vmatprep.mubr.f32.mxu0 0.0
      %4532 = vmatmul.mubr.f32.gmra.mrb[0].mxu0 %v2769
      %v4533 = vpop.f32.mrb[0].mxu0
      %v4534 = vadd.f32 0.0, %v4533
      %v4535 = vpop.f32.mrb[0].mxu0
      %4536 = vmatprep.mubr.f32.mxu0 0.0
      %4537 = vmatmul.mubr.f32.gmra.mrb[0].mxu0 %v2772
      %v4538 = vpop.f32.mrb[0].mxu0
      %v4539 = vadd.f32 0.0, %v4538
      %v4540 = vpop.f32.mrb[0].mxu0
      %4541 = vmatprep.mubr.f32.mxu0 0.0
      %4542 = vmatmul.mubr.f32.gmra.mrb[0].mxu0 %v2775
      %v4543 = vpop.f32.mrb[0].mxu0
      %v4544 = vadd.f32 0.0, %v4543
      %v4545 = vpop.f32.mrb[0].mxu0
      %4546 = vmatprep.mubr.f32.mxu0 0.0
      %4547 = vmatmul.mubr.f32.gmra.mrb[0].mxu0 %v2778
      %v4548 = vpop.f32.mrb[0].mxu0
      %v4549 = vadd.f32 0.0, %v4548
      %v4550 = vpop.f32.mrb[0].mxu0
      %4551 = vmatprep.mubr.f32.mxu0 0.0
      %4552 = vmatmul.mubr.f32.gmra.mrb[0].mxu0 %v2781
      %v4553 = vpop.f32.mrb[0].mxu0
      %v4554 = vadd.f32 0.0, %v4553
      %v4555 = vpop.f32.mrb[0].mxu0
      %4556 = vmatprep.mubr.f32.mxu0 0.0
      %4557 = vmatmul.mubr.f32.gmra.mrb[0].mxu0 %v2784
      %v4558 = vpop.f32.mrb[0].mxu0
      %v4559 = vadd.f32 0.0, %v4558
      %v4560 = vpop.f32.mrb[0].mxu0
      %4561 = vmatprep.mubr.f32.mxu0 0.0
      %4562 = vmatmul.mubr.f32.gmra.mrb[0].mxu0 %v2787
      %v4563 = vpop.f32.mrb[0].mxu0
      %v4564 = vadd.f32 0.0, %v4563
      %v4565 = vpop.f32.mrb[0].mxu0
      %4566 = vmatprep.mubr.f32.mxu0 0.0
      %4567 = vmatmul.mubr.f32.gmra.mrb[0].mxu0 %v2790
      %v4568 = vpop.f32.mrb[0].mxu0
      %v4569 = vadd.f32 0.0, %v4568
      %v4570 = vpop.f32.mrb[0].mxu0
      %4571 = vmatprep.mubr.f32.mxu0 0.0
      %4572 = vmatmul.mubr.f32.gmra.mrb[0].mxu0 %v2793
      %v4573 = vpop.f32.mrb[0].mxu0
      %v4574 = vadd.f32 0.0, %v4573
      %v4575 = vpop.f32.mrb[0].mxu0
      %4576 = vmatprep.mubr.f32.mxu0 0.0
      %4577 = vmatmul.mubr.f32.gmra.mrb[0].mxu0 %v2796
      %v4578 = vpop.f32.mrb[0].mxu0
      %v4579 = vadd.f32 0.0, %v4578
      %v4580 = vpop.f32.mrb[0].mxu0
      %4581 = vmatprep.mubr.f32.mxu0 0.0
      %4582 = vmatmul.mubr.f32.gmra.mrb[0].mxu0 %v2799
      %v4583 = vpop.f32.mrb[0].mxu0
      %v4584 = vadd.f32 0.0, %v4583
      %v4585 = vpop.f32.mrb[0].mxu0
      %4586 = vmatprep.mubr.f32.mxu0 0.0
      %4587 = vmatmul.mubr.f32.gmra.mrb[0].mxu0 %v2802
      %v4588 = vpop.f32.mrb[0].mxu0
      %v4589 = vadd.f32 0.0, %v4588
      %v4590 = vpop.f32.mrb[0].mxu0
      %4591 = vmatprep.mubr.f32.mxu0 0.0
      %4592 = vmatmul.mubr.f32.gmra.mrb[0].mxu0 %v2805
      %v4593 = vpop.f32.mrb[0].mxu0
      %v4594 = vadd.f32 0.0, %v4593
      %v4595 = vpop.f32.mrb[0].mxu0
      %4596 = vmatprep.mubr.f32.mxu0 0.0
      %4597 = vmatmul.mubr.f32.gmra.mrb[0].mxu0 %v2808
      %v4598 = vpop.f32.mrb[0].mxu0
      %v4599 = vadd.f32 0.0, %v4598
      %v4600 = vpop.f32.mrb[0].mxu0
      %4601 = vmatprep.mubr.f32.mxu0 0.0
      %4602 = vmatmul.mubr.f32.gmra.mrb[0].mxu0 %v2811
      %v4603 = vpop.f32.mrb[0].mxu0
      %v4604 = vadd.f32 0.0, %v4603
      %v4605 = vpop.f32.mrb[0].mxu0
      %4606 = vmatprep.mubr.f32.mxu0 0.0
      %4607 = vmatmul.mubr.f32.gmra.mrb[0].mxu0 %v2814
      %v4608 = vpop.f32.mrb[0].mxu0
      %v4609 = vadd.f32 0.0, %v4608
      %v4610 = vpop.f32.mrb[0].mxu0
      %4611 = vmatprep.mubr.f32.mxu0 0.0
      %4612 = vmatmul.mubr.f32.gmra.mrb[0].mxu0 %v2817
      %v4613 = vpop.f32.mrb[0].mxu0
      %v4614 = vadd.f32 0.0, %v4613
      %v4615 = vpop.f32.mrb[0].mxu0
      %4616 = vdwg.mxu0
      %4617 = vmatprep.subr.mxu0 0.0
      %4618 = vmatpush1.msra.mxu0 %v4383
      %4619 = vmatprep.subr.mxu0 0.0
      %4620 = vmatpush1.msra.mxu0 %v4384
      %4621 = vmatprep.subr.mxu0 0.0
      %4622 = vmatpush1.msra.mxu0 %v4385
      %4623 = vmatprep.subr.mxu0 0.0
      %4624 = vmatpush1.msra.mxu0 %v4386
      %4625 = vmatprep.subr.mxu0 0.0
      %4626 = vmatpush1.msra.mxu0 0.0
      %4627 = vmatprep.subr.mxu0 0.0
      %4628 = vmatpush1.msra.mxu0 0.0
      %4629 = vmatprep.subr.mxu0 0.0
      %4630 = vmatpush1.msra.mxu0 0.0
      %4631 = vmatprep.subr.mxu0 0.0
      %4632 = vmatpush1.msra.mxu0 0.0
      %4633 = vmatprep.subr.mxu0 0.0
      %4634 = vmatpush1.msra.mxu0 0.0
      %4635 = vmatprep.subr.mxu0 0.0
      %4636 = vmatpush1.msra.mxu0 0.0
      %4637 = vmatprep.subr.mxu0 0.0
      %4638 = vmatpush1.msra.mxu0 0.0
      %4639 = vmatprep.subr.mxu0 0.0
      %4640 = vmatpush1.msra.mxu0 0.0
      %4641 = vmatprep.subr.mxu0 0.0
      %4642 = vmatpush1.msra.mxu0 0.0
      %4643 = vmatprep.subr.mxu0 0.0
      %4644 = vmatpush1.msra.mxu0 0.0
      %4645 = vmatprep.subr.mxu0 0.0
      %4646 = vmatpush1.msra.mxu0 0.0
      %4647 = vmatprep.subr.mxu0 0.0
      %4648 = vmatpush1.msra.mxu0 0.0
      %4649 = vmatprep.subr.mxu0 0.0
      %4650 = vmatpush1.msra.mxu0 0.0
      %4651 = vmatprep.subr.mxu0 0.0
      %4652 = vmatpush1.msra.mxu0 0.0
      %4653 = vmatprep.subr.mxu0 0.0
      %4654 = vmatpush1.msra.mxu0 0.0
      %4655 = vmatprep.subr.mxu0 0.0
      %4656 = vmatpush1.msra.mxu0 0.0
      %4657 = vmatprep.subr.mxu0 0.0
      %4658 = vmatpush1.msra.mxu0 0.0
      %4659 = vmatprep.subr.mxu0 0.0
      %4660 = vmatpush1.msra.mxu0 0.0
      %4661 = vmatprep.subr.mxu0 0.0
      %4662 = vmatpush1.msra.mxu0 0.0
      %4663 = vmatprep.subr.mxu0 0.0
      %4664 = vmatpush1.msra.mxu0 0.0
      %4665 = vmatprep.subr.mxu0 0.0
      %4666 = vmatpush1.msra.mxu0 0.0
      %4667 = vmatprep.subr.mxu0 0.0
      %4668 = vmatpush1.msra.mxu0 0.0
      %4669 = vmatprep.subr.mxu0 0.0
      %4670 = vmatpush1.msra.mxu0 0.0
      %4671 = vmatprep.subr.mxu0 0.0
      %4672 = vmatpush1.msra.mxu0 0.0
      %4673 = vmatprep.subr.mxu0 0.0
      %4674 = vmatpush1.msra.mxu0 0.0
      %4675 = vmatprep.subr.mxu0 0.0
      %4676 = vmatpush1.msra.mxu0 0.0
      %4677 = vmatprep.subr.mxu0 0.0
      %4678 = vmatpush1.msra.mxu0 0.0
      %4679 = vmatprep.subr.mxu0 0.0
      %4680 = vmatpush1.msra.mxu0 0.0
      %4681 = vmatprep.mubr.f32.mxu0 0.0
      %4682 = vmatmul.mubr.f32.gmra.mrb[0].mxu0 %v1478
      %v4683 = vpop.f32.mrb[0].mxu0
      %v4684 = vadd.f32 %v4459, %v4683
      %v4685 = vpop.f32.mrb[0].mxu0
      %4686 = vmatprep.mubr.f32.mxu0 0.0
      %4687 = vmatmul.mubr.f32.gmra.mrb[0].mxu0 %v1481
      %v4688 = vpop.f32.mrb[0].mxu0
      %v4689 = vadd.f32 %v4464, %v4688
      %v4690 = vpop.f32.mrb[0].mxu0
      %4691 = vmatprep.mubr.f32.mxu0 0.0
      %4692 = vmatmul.mubr.f32.gmra.mrb[0].mxu0 %v1484
      %v4693 = vpop.f32.mrb[0].mxu0
      %v4694 = vadd.f32 %v4469, %v4693
      %v4695 = vpop.f32.mrb[0].mxu0
      %4696 = vmatprep.mubr.f32.mxu0 0.0
      %4697 = vmatmul.mubr.f32.gmra.mrb[0].mxu0 %v1487
      %v4698 = vpop.f32.mrb[0].mxu0
      %v4699 = vadd.f32 %v4474, %v4698
      %v4700 = vpop.f32.mrb[0].mxu0
      %4701 = vmatprep.mubr.f32.mxu0 0.0
      %4702 = vmatmul.mubr.f32.gmra.mrb[0].mxu0 %v1490
      %v4703 = vpop.f32.mrb[0].mxu0
      %v4704 = vadd.f32 %v4479, %v4703
      %v4705 = vpop.f32.mrb[0].mxu0
      %4706 = vmatprep.mubr.f32.mxu0 0.0
      %4707 = vmatmul.mubr.f32.gmra.mrb[0].mxu0 %v1493
      %v4708 = vpop.f32.mrb[0].mxu0
      %v4709 = vadd.f32 %v4484, %v4708
      %v4710 = vpop.f32.mrb[0].mxu0
      %4711 = vmatprep.mubr.f32.mxu0 0.0
      %4712 = vmatmul.mubr.f32.gmra.mrb[0].mxu0 %v1496
      %v4713 = vpop.f32.mrb[0].mxu0
      %v4714 = vadd.f32 %v4489, %v4713
      %v4715 = vpop.f32.mrb[0].mxu0
      %4716 = vmatprep.mubr.f32.mxu0 0.0
      %4717 = vmatmul.mubr.f32.gmra.mrb[0].mxu0 %v1499
      %v4718 = vpop.f32.mrb[0].mxu0
      %v4719 = vadd.f32 %v4494, %v4718
      %v4720 = vpop.f32.mrb[0].mxu0
      %4721 = vmatprep.mubr.f32.mxu0 0.0
      %4722 = vmatmul.mubr.f32.gmra.mrb[0].mxu0 %v1502
      %v4723 = vpop.f32.mrb[0].mxu0
      %v4724 = vadd.f32 %v4499, %v4723
      %v4725 = vpop.f32.mrb[0].mxu0
      %4726 = vmatprep.mubr.f32.mxu0 0.0
      %4727 = vmatmul.mubr.f32.gmra.mrb[0].mxu0 %v1505
      %v4728 = vpop.f32.mrb[0].mxu0
      %v4729 = vadd.f32 %v4504, %v4728
      %v4730 = vpop.f32.mrb[0].mxu0
      %4731 = vmatprep.mubr.f32.mxu0 0.0
      %4732 = vmatmul.mubr.f32.gmra.mrb[0].mxu0 %v1508
      %v4733 = vpop.f32.mrb[0].mxu0
      %v4734 = vadd.f32 %v4509, %v4733
      %v4735 = vpop.f32.mrb[0].mxu0
      %4736 = vmatprep.mubr.f32.mxu0 0.0
      %4737 = vmatmul.mubr.f32.gmra.mrb[0].mxu0 %v1511
      %v4738 = vpop.f32.mrb[0].mxu0
      %v4739 = vadd.f32 %v4514, %v4738
      %v4740 = vpop.f32.mrb[0].mxu0
      %4741 = vmatprep.mubr.f32.mxu0 0.0
      %4742 = vmatmul.mubr.f32.gmra.mrb[0].mxu0 %v1514
      %v4743 = vpop.f32.mrb[0].mxu0
      %v4744 = vadd.f32 %v4519, %v4743
      %v4745 = vpop.f32.mrb[0].mxu0
      %4746 = vmatprep.mubr.f32.mxu0 0.0
      %4747 = vmatmul.mubr.f32.gmra.mrb[0].mxu0 %v1517
      %v4748 = vpop.f32.mrb[0].mxu0
      %v4749 = vadd.f32 %v4524, %v4748
      %v4750 = vpop.f32.mrb[0].mxu0
      %4751 = vmatprep.mubr.f32.mxu0 0.0
      %4752 = vmatmul.mubr.f32.gmra.mrb[0].mxu0 %v1520
      %v4753 = vpop.f32.mrb[0].mxu0
      %v4754 = vadd.f32 %v4529, %v4753
      %v4755 = vpop.f32.mrb[0].mxu0
      %4756 = vmatprep.mubr.f32.mxu0 0.0
      %4757 = vmatmul.mubr.f32.gmra.mrb[0].mxu0 %v1523
      %v4758 = vpop.f32.mrb[0].mxu0
      %v4759 = vadd.f32 %v4534, %v4758
      %v4760 = vpop.f32.mrb[0].mxu0
      %4761 = vmatprep.mubr.f32.mxu0 0.0
      %4762 = vmatmul.mubr.f32.gmra.mrb[0].mxu0 %v1526
      %v4763 = vpop.f32.mrb[0].mxu0
      %v4764 = vadd.f32 %v4539, %v4763
      %v4765 = vpop.f32.mrb[0].mxu0
      %4766 = vmatprep.mubr.f32.mxu0 0.0
      %4767 = vmatmul.mubr.f32.gmra.mrb[0].mxu0 %v1529
      %v4768 = vpop.f32.mrb[0].mxu0
      %v4769 = vadd.f32 %v4544, %v4768
      %v4770 = vpop.f32.mrb[0].mxu0
      %4771 = vmatprep.mubr.f32.mxu0 0.0
      %4772 = vmatmul.mubr.f32.gmra.mrb[0].mxu0 %v1532
      %v4773 = vpop.f32.mrb[0].mxu0
      %v4774 = vadd.f32 %v4549, %v4773
      %v4775 = vpop.f32.mrb[0].mxu0
      %4776 = vmatprep.mubr.f32.mxu0 0.0
      %4777 = vmatmul.mubr.f32.gmra.mrb[0].mxu0 %v1535
      %v4778 = vpop.f32.mrb[0].mxu0
      %v4779 = vadd.f32 %v4554, %v4778
      %v4780 = vpop.f32.mrb[0].mxu0
      %4781 = vmatprep.mubr.f32.mxu0 0.0
      %4782 = vmatmul.mubr.f32.gmra.mrb[0].mxu0 %v1538
      %v4783 = vpop.f32.mrb[0].mxu0
      %v4784 = vadd.f32 %v4559, %v4783
      %v4785 = vpop.f32.mrb[0].mxu0
      %4786 = vmatprep.mubr.f32.mxu0 0.0
      %4787 = vmatmul.mubr.f32.gmra.mrb[0].mxu0 %v1541
      %v4788 = vpop.f32.mrb[0].mxu0
      %v4789 = vadd.f32 %v4564, %v4788
      %v4790 = vpop.f32.mrb[0].mxu0
      %4791 = vmatprep.mubr.f32.mxu0 0.0
      %4792 = vmatmul.mubr.f32.gmra.mrb[0].mxu0 %v1544
      %v4793 = vpop.f32.mrb[0].mxu0
      %v4794 = vadd.f32 %v4569, %v4793
      %v4795 = vpop.f32.mrb[0].mxu0
      %4796 = vmatprep.mubr.f32.mxu0 0.0
      %4797 = vmatmul.mubr.f32.gmra.mrb[0].mxu0 %v1547
      %v4798 = vpop.f32.mrb[0].mxu0
      %v4799 = vadd.f32 %v4574, %v4798
      %v4800 = vpop.f32.mrb[0].mxu0
      %4801 = vmatprep.mubr.f32.mxu0 0.0
      %4802 = vmatmul.mubr.f32.gmra.mrb[0].mxu0 %v1550
      %v4803 = vpop.f32.mrb[0].mxu0
      %v4804 = vadd.f32 %v4579, %v4803
      %v4805 = vpop.f32.mrb[0].mxu0
      %4806 = vmatprep.mubr.f32.mxu0 0.0
      %4807 = vmatmul.mubr.f32.gmra.mrb[0].mxu0 %v1553
      %v4808 = vpop.f32.mrb[0].mxu0
      %v4809 = vadd.f32 %v4584, %v4808
      %v4810 = vpop.f32.mrb[0].mxu0
      %4811 = vmatprep.mubr.f32.mxu0 0.0
      %4812 = vmatmul.mubr.f32.gmra.mrb[0].mxu0 %v1556
      %v4813 = vpop.f32.mrb[0].mxu0
      %v4814 = vadd.f32 %v4589, %v4813
      %v4815 = vpop.f32.mrb[0].mxu0
      %4816 = vmatprep.mubr.f32.mxu0 0.0
      %4817 = vmatmul.mubr.f32.gmra.mrb[0].mxu0 %v1559
      %v4818 = vpop.f32.mrb[0].mxu0
      %v4819 = vadd.f32 %v4594, %v4818
      %v4820 = vpop.f32.mrb[0].mxu0
      %4821 = vmatprep.mubr.f32.mxu0 0.0
      %4822 = vmatmul.mubr.f32.gmra.mrb[0].mxu0 %v1562
      %v4823 = vpop.f32.mrb[0].mxu0
      %v4824 = vadd.f32 %v4599, %v4823
      %v4825 = vpop.f32.mrb[0].mxu0
      %4826 = vmatprep.mubr.f32.mxu0 0.0
      %4827 = vmatmul.mubr.f32.gmra.mrb[0].mxu0 %v1565
      %v4828 = vpop.f32.mrb[0].mxu0
      %v4829 = vadd.f32 %v4604, %v4828
      %v4830 = vpop.f32.mrb[0].mxu0
      %4831 = vmatprep.mubr.f32.mxu0 0.0
      %4832 = vmatmul.mubr.f32.gmra.mrb[0].mxu0 %v1568
      %v4833 = vpop.f32.mrb[0].mxu0
      %v4834 = vadd.f32 %v4609, %v4833
      %v4835 = vpop.f32.mrb[0].mxu0
      %4836 = vmatprep.mubr.f32.mxu0 0.0
      %4837 = vmatmul.mubr.f32.gmra.mrb[0].mxu0 %v1571
      %v4838 = vpop.f32.mrb[0].mxu0
      %v4839 = vadd.f32 %v4614, %v4838
      %v4840 = vpop.f32.mrb[0].mxu0
      %4841 = vdwg.mxu0
      %s4842 = scalar_lea.vmem %s1, 448
      %v4843 = vld [vmem:[%s4842] sm:$0xff]
      %v4844 = vld [vmem:[%s4842 + $0x8] sm:$0xff]
      %v4845 = vld [vmem:[%s4842 + $0x10] sm:$0xff]
      %v4846 = vld [vmem:[%s4842 + $0x18] sm:$0xff]
      %4847 = vmatprep.subr.mxu0 0.0
      %4848 = vmatpush1.msra.mxu0 %v4843
      %4849 = vmatprep.subr.mxu0 0.0
      %4850 = vmatpush1.msra.mxu0 %v4844
      %4851 = vmatprep.subr.mxu0 0.0
      %4852 = vmatpush1.msra.mxu0 %v4845
      %4853 = vmatprep.subr.mxu0 0.0
      %4854 = vmatpush1.msra.mxu0 %v4846
      %4855 = vmatprep.subr.mxu0 0.0
      %4856 = vmatpush1.msra.mxu0 0.0
      %4857 = vmatprep.subr.mxu0 0.0
      %4858 = vmatpush1.msra.mxu0 0.0
      %4859 = vmatprep.subr.mxu0 0.0
      %4860 = vmatpush1.msra.mxu0 0.0
      %4861 = vmatprep.subr.mxu0 0.0
      %4862 = vmatpush1.msra.mxu0 0.0
      %4863 = vmatprep.subr.mxu0 0.0
      %4864 = vmatpush1.msra.mxu0 0.0
      %4865 = vmatprep.subr.mxu0 0.0
      %4866 = vmatpush1.msra.mxu0 0.0
      %4867 = vmatprep.subr.mxu0 0.0
      %4868 = vmatpush1.msra.mxu0 0.0
      %4869 = vmatprep.subr.mxu0 0.0
      %4870 = vmatpush1.msra.mxu0 0.0
      %4871 = vmatprep.subr.mxu0 0.0
      %4872 = vmatpush1.msra.mxu0 0.0
      %4873 = vmatprep.subr.mxu0 0.0
      %4874 = vmatpush1.msra.mxu0 0.0
      %4875 = vmatprep.subr.mxu0 0.0
      %4876 = vmatpush1.msra.mxu0 0.0
      %4877 = vmatprep.subr.mxu0 0.0
      %4878 = vmatpush1.msra.mxu0 0.0
      %4879 = vmatprep.subr.mxu0 0.0
      %4880 = vmatpush1.msra.mxu0 0.0
      %4881 = vmatprep.subr.mxu0 0.0
      %4882 = vmatpush1.msra.mxu0 0.0
      %4883 = vmatprep.subr.mxu0 0.0
      %4884 = vmatpush1.msra.mxu0 0.0
      %4885 = vmatprep.subr.mxu0 0.0
      %4886 = vmatpush1.msra.mxu0 0.0
      %4887 = vmatprep.subr.mxu0 0.0
      %4888 = vmatpush1.msra.mxu0 0.0
      %4889 = vmatprep.subr.mxu0 0.0
      %4890 = vmatpush1.msra.mxu0 0.0
      %4891 = vmatprep.subr.mxu0 0.0
      %4892 = vmatpush1.msra.mxu0 0.0
      %4893 = vmatprep.subr.mxu0 0.0
      %4894 = vmatpush1.msra.mxu0 0.0
      %4895 = vmatprep.subr.mxu0 0.0
      %4896 = vmatpush1.msra.mxu0 0.0
      %4897 = vmatprep.subr.mxu0 0.0
      %4898 = vmatpush1.msra.mxu0 0.0
      %4899 = vmatprep.subr.mxu0 0.0
      %4900 = vmatpush1.msra.mxu0 0.0
      %4901 = vmatprep.subr.mxu0 0.0
      %4902 = vmatpush1.msra.mxu0 0.0
      %4903 = vmatprep.subr.mxu0 0.0
      %4904 = vmatpush1.msra.mxu0 0.0
      %4905 = vmatprep.subr.mxu0 0.0
      %4906 = vmatpush1.msra.mxu0 0.0
      %4907 = vmatprep.subr.mxu0 0.0
      %4908 = vmatpush1.msra.mxu0 0.0
      %4909 = vmatprep.subr.mxu0 0.0
      %4910 = vmatpush1.msra.mxu0 0.0
      %4911 = vmatprep.mubr.f32.mxu0 0.0
      %4912 = vmatmul.mubr.f32.gmra.mrb[0].mxu0 %v3965
      %v4913 = vpop.f32.mrb[0].mxu0
      %v4914 = vadd.f32 0.0, %v4913
      %v4915 = vpop.f32.mrb[0].mxu0
      %4916 = vmatprep.mubr.f32.mxu0 0.0
      %4917 = vmatmul.mubr.f32.gmra.mrb[0].mxu0 %v3968
      %v4918 = vpop.f32.mrb[0].mxu0
      %v4919 = vadd.f32 0.0, %v4918
      %v4920 = vpop.f32.mrb[0].mxu0
      %4921 = vmatprep.mubr.f32.mxu0 0.0
      %4922 = vmatmul.mubr.f32.gmra.mrb[0].mxu0 %v3971
      %v4923 = vpop.f32.mrb[0].mxu0
      %v4924 = vadd.f32 0.0, %v4923
      %v4925 = vpop.f32.mrb[0].mxu0
      %4926 = vmatprep.mubr.f32.mxu0 0.0
      %4927 = vmatmul.mubr.f32.gmra.mrb[0].mxu0 %v3974
      %v4928 = vpop.f32.mrb[0].mxu0
      %v4929 = vadd.f32 0.0, %v4928
      %v4930 = vpop.f32.mrb[0].mxu0
      %4931 = vmatprep.mubr.f32.mxu0 0.0
      %4932 = vmatmul.mubr.f32.gmra.mrb[0].mxu0 %v3977
      %v4933 = vpop.f32.mrb[0].mxu0
      %v4934 = vadd.f32 0.0, %v4933
      %v4935 = vpop.f32.mrb[0].mxu0
      %4936 = vmatprep.mubr.f32.mxu0 0.0
      %4937 = vmatmul.mubr.f32.gmra.mrb[0].mxu0 %v3980
      %v4938 = vpop.f32.mrb[0].mxu0
      %v4939 = vadd.f32 0.0, %v4938
      %v4940 = vpop.f32.mrb[0].mxu0
      %4941 = vmatprep.mubr.f32.mxu0 0.0
      %4942 = vmatmul.mubr.f32.gmra.mrb[0].mxu0 %v3983
      %v4943 = vpop.f32.mrb[0].mxu0
      %v4944 = vadd.f32 0.0, %v4943
      %v4945 = vpop.f32.mrb[0].mxu0
      %4946 = vmatprep.mubr.f32.mxu0 0.0
      %4947 = vmatmul.mubr.f32.gmra.mrb[0].mxu0 %v3986
      %v4948 = vpop.f32.mrb[0].mxu0
      %v4949 = vadd.f32 0.0, %v4948
      %v4950 = vpop.f32.mrb[0].mxu0
      %4951 = vmatprep.mubr.f32.mxu0 0.0
      %4952 = vmatmul.mubr.f32.gmra.mrb[0].mxu0 %v3989
      %v4953 = vpop.f32.mrb[0].mxu0
      %v4954 = vadd.f32 0.0, %v4953
      %v4955 = vpop.f32.mrb[0].mxu0
      %4956 = vmatprep.mubr.f32.mxu0 0.0
      %4957 = vmatmul.mubr.f32.gmra.mrb[0].mxu0 %v3992
      %v4958 = vpop.f32.mrb[0].mxu0
      %v4959 = vadd.f32 0.0, %v4958
      %v4960 = vpop.f32.mrb[0].mxu0
      %4961 = vmatprep.mubr.f32.mxu0 0.0
      %4962 = vmatmul.mubr.f32.gmra.mrb[0].mxu0 %v3995
      %v4963 = vpop.f32.mrb[0].mxu0
      %v4964 = vadd.f32 0.0, %v4963
      %v4965 = vpop.f32.mrb[0].mxu0
      %4966 = vmatprep.mubr.f32.mxu0 0.0
      %4967 = vmatmul.mubr.f32.gmra.mrb[0].mxu0 %v3998
      %v4968 = vpop.f32.mrb[0].mxu0
      %v4969 = vadd.f32 0.0, %v4968
      %v4970 = vpop.f32.mrb[0].mxu0
      %4971 = vmatprep.mubr.f32.mxu0 0.0
      %4972 = vmatmul.mubr.f32.gmra.mrb[0].mxu0 %v4001
      %v4973 = vpop.f32.mrb[0].mxu0
      %v4974 = vadd.f32 0.0, %v4973
      %v4975 = vpop.f32.mrb[0].mxu0
      %4976 = vmatprep.mubr.f32.mxu0 0.0
      %4977 = vmatmul.mubr.f32.gmra.mrb[0].mxu0 %v4004
      %v4978 = vpop.f32.mrb[0].mxu0
      %v4979 = vadd.f32 0.0, %v4978
      %v4980 = vpop.f32.mrb[0].mxu0
      %4981 = vmatprep.mubr.f32.mxu0 0.0
      %4982 = vmatmul.mubr.f32.gmra.mrb[0].mxu0 %v4007
      %v4983 = vpop.f32.mrb[0].mxu0
      %v4984 = vadd.f32 0.0, %v4983
      %v4985 = vpop.f32.mrb[0].mxu0
      %4986 = vmatprep.mubr.f32.mxu0 0.0
      %4987 = vmatmul.mubr.f32.gmra.mrb[0].mxu0 %v4010
      %v4988 = vpop.f32.mrb[0].mxu0
      %v4989 = vadd.f32 0.0, %v4988
      %v4990 = vpop.f32.mrb[0].mxu0
      %4991 = vmatprep.mubr.f32.mxu0 0.0
      %4992 = vmatmul.mubr.f32.gmra.mrb[0].mxu0 %v4013
      %v4993 = vpop.f32.mrb[0].mxu0
      %v4994 = vadd.f32 0.0, %v4993
      %v4995 = vpop.f32.mrb[0].mxu0
      %4996 = vmatprep.mubr.f32.mxu0 0.0
      %4997 = vmatmul.mubr.f32.gmra.mrb[0].mxu0 %v4016
      %v4998 = vpop.f32.mrb[0].mxu0
      %v4999 = vadd.f32 0.0, %v4998
      %v5000 = vpop.f32.mrb[0].mxu0
      %5001 = vmatprep.mubr.f32.mxu0 0.0
      %5002 = vmatmul.mubr.f32.gmra.mrb[0].mxu0 %v4019
      %v5003 = vpop.f32.mrb[0].mxu0
      %v5004 = vadd.f32 0.0, %v5003
      %v5005 = vpop.f32.mrb[0].mxu0
      %5006 = vmatprep.mubr.f32.mxu0 0.0
      %5007 = vmatmul.mubr.f32.gmra.mrb[0].mxu0 %v4022
      %v5008 = vpop.f32.mrb[0].mxu0
      %v5009 = vadd.f32 0.0, %v5008
      %v5010 = vpop.f32.mrb[0].mxu0
      %5011 = vmatprep.mubr.f32.mxu0 0.0
      %5012 = vmatmul.mubr.f32.gmra.mrb[0].mxu0 %v4025
      %v5013 = vpop.f32.mrb[0].mxu0
      %v5014 = vadd.f32 0.0, %v5013
      %v5015 = vpop.f32.mrb[0].mxu0
      %5016 = vmatprep.mubr.f32.mxu0 0.0
      %5017 = vmatmul.mubr.f32.gmra.mrb[0].mxu0 %v4028
      %v5018 = vpop.f32.mrb[0].mxu0
      %v5019 = vadd.f32 0.0, %v5018
      %v5020 = vpop.f32.mrb[0].mxu0
      %5021 = vmatprep.mubr.f32.mxu0 0.0
      %5022 = vmatmul.mubr.f32.gmra.mrb[0].mxu0 %v4031
      %v5023 = vpop.f32.mrb[0].mxu0
      %v5024 = vadd.f32 0.0, %v5023
      %v5025 = vpop.f32.mrb[0].mxu0
      %5026 = vmatprep.mubr.f32.mxu0 0.0
      %5027 = vmatmul.mubr.f32.gmra.mrb[0].mxu0 %v4034
      %v5028 = vpop.f32.mrb[0].mxu0
      %v5029 = vadd.f32 0.0, %v5028
      %v5030 = vpop.f32.mrb[0].mxu0
      %5031 = vmatprep.mubr.f32.mxu0 0.0
      %5032 = vmatmul.mubr.f32.gmra.mrb[0].mxu0 %v4037
      %v5033 = vpop.f32.mrb[0].mxu0
      %v5034 = vadd.f32 0.0, %v5033
      %v5035 = vpop.f32.mrb[0].mxu0
      %5036 = vmatprep.mubr.f32.mxu0 0.0
      %5037 = vmatmul.mubr.f32.gmra.mrb[0].mxu0 %v4040
      %v5038 = vpop.f32.mrb[0].mxu0
      %v5039 = vadd.f32 0.0, %v5038
      %v5040 = vpop.f32.mrb[0].mxu0
      %5041 = vmatprep.mubr.f32.mxu0 0.0
      %5042 = vmatmul.mubr.f32.gmra.mrb[0].mxu0 %v4043
      %v5043 = vpop.f32.mrb[0].mxu0
      %v5044 = vadd.f32 0.0, %v5043
      %v5045 = vpop.f32.mrb[0].mxu0
      %5046 = vmatprep.mubr.f32.mxu0 0.0
      %5047 = vmatmul.mubr.f32.gmra.mrb[0].mxu0 %v4046
      %v5048 = vpop.f32.mrb[0].mxu0
      %v5049 = vadd.f32 0.0, %v5048
      %v5050 = vpop.f32.mrb[0].mxu0
      %5051 = vmatprep.mubr.f32.mxu0 0.0
      %5052 = vmatmul.mubr.f32.gmra.mrb[0].mxu0 %v4049
      %v5053 = vpop.f32.mrb[0].mxu0
      %v5054 = vadd.f32 0.0, %v5053
      %v5055 = vpop.f32.mrb[0].mxu0
      %5056 = vmatprep.mubr.f32.mxu0 0.0
      %5057 = vmatmul.mubr.f32.gmra.mrb[0].mxu0 %v4052
      %v5058 = vpop.f32.mrb[0].mxu0
      %v5059 = vadd.f32 0.0, %v5058
      %v5060 = vpop.f32.mrb[0].mxu0
      %5061 = vmatprep.mubr.f32.mxu0 0.0
      %5062 = vmatmul.mubr.f32.gmra.mrb[0].mxu0 %v4055
      %v5063 = vpop.f32.mrb[0].mxu0
      %v5064 = vadd.f32 0.0, %v5063
      %v5065 = vpop.f32.mrb[0].mxu0
      %5066 = vmatprep.mubr.f32.mxu0 0.0
      %5067 = vmatmul.mubr.f32.gmra.mrb[0].mxu0 %v4058
      %v5068 = vpop.f32.mrb[0].mxu0
      %v5069 = vadd.f32 0.0, %v5068
      %v5070 = vpop.f32.mrb[0].mxu0
      %5071 = vdwg.mxu0
      %v5072 = vadd.f32 %v4684, %v4914
      %v5073 = vadd.f32 %v4689, %v4919
      %v5074 = vadd.f32 %v4694, %v4924
      %v5075 = vadd.f32 %v4699, %v4929
      %v5076 = vadd.f32 %v4704, %v4934
      %v5077 = vadd.f32 %v4709, %v4939
      %v5078 = vadd.f32 %v4714, %v4944
      %v5079 = vadd.f32 %v4719, %v4949
      %v5080 = vadd.f32 %v4724, %v4954
      %v5081 = vadd.f32 %v4729, %v4959
      %v5082 = vadd.f32 %v4734, %v4964
      %v5083 = vadd.f32 %v4739, %v4969
      %v5084 = vadd.f32 %v4744, %v4974
      %v5085 = vadd.f32 %v4749, %v4979
      %v5086 = vadd.f32 %v4754, %v4984
      %v5087 = vadd.f32 %v4759, %v4989
      %v5088 = vadd.f32 %v4764, %v4994
      %v5089 = vadd.f32 %v4769, %v4999
      %v5090 = vadd.f32 %v4774, %v5004
      %v5091 = vadd.f32 %v4779, %v5009
      %v5092 = vadd.f32 %v4784, %v5014
      %v5093 = vadd.f32 %v4789, %v5019
      %v5094 = vadd.f32 %v4794, %v5024
      %v5095 = vadd.f32 %v4799, %v5029
      %v5096 = vadd.f32 %v4804, %v5034
      %v5097 = vadd.f32 %v4809, %v5039
      %v5098 = vadd.f32 %v4814, %v5044
      %v5099 = vadd.f32 %v4819, %v5049
      %v5100 = vadd.f32 %v4824, %v5054
      %v5101 = vadd.f32 %v4829, %v5059
      %v5102 = vadd.f32 %v4834, %v5064
      %v5103 = vadd.f32 %v4839, %v5069
      %s5104 = scalar_lea.vmem %s1, 480
      %v5105 = vld [vmem:[%s5104] sm:$0xff]
      %v5106 = vld [vmem:[%s5104 + $0x8] sm:$0xff]
      %v5107 = vld [vmem:[%s5104 + $0x10] sm:$0xff]
      %v5108 = vld [vmem:[%s5104 + $0x18] sm:$0xff]
      %v5110 = vsel %vm471, %v429, 0
      %v5113 = vsel %vm471, %v430, 0
      %v5116 = vsel %vm471, %v431, 0
      %v5119 = vsel %vm471, %v432, 0
      %v5122 = vsel %vm471, %v433, 0
      %v5125 = vsel %vm471, %v434, 0
      %v5128 = vsel %vm471, %v435, 0
      %v5131 = vsel %vm471, %v436, 0
      %v5134 = vsel %vm471, %v437, 0
      %v5137 = vsel %vm471, %v438, 0
      %v5140 = vsel %vm471, %v439, 0
      %v5143 = vsel %vm471, %v440, 0
      %v5146 = vsel %vm471, %v441, 0
      %v5149 = vsel %vm471, %v442, 0
      %v5152 = vsel %vm471, %v443, 0
      %v5155 = vsel %vm471, %v444, 0
      %v5158 = vsel %vm471, %v445, 0
      %v5161 = vsel %vm471, %v446, 0
      %v5164 = vsel %vm471, %v447, 0
      %v5167 = vsel %vm471, %v448, 0
      %v5170 = vsel %vm471, %v449, 0
      %v5173 = vsel %vm471, %v450, 0
      %v5176 = vsel %vm471, %v451, 0
      %v5179 = vsel %vm471, %v452, 0
      %v5182 = vsel %vm471, %v453, 0
      %v5185 = vsel %vm471, %v454, 0
      %v5188 = vsel %vm471, %v455, 0
      %v5191 = vsel %vm471, %v456, 0
      %v5194 = vsel %vm471, %v457, 0
      %v5197 = vsel %vm471, %v458, 0
      %v5200 = vsel %vm471, %v459, 0
      %v5203 = vsel %vm471, %v460, 0
      %5205 = vmatprep.subr.mxu0 0.0
      %5206 = vmatpush1.msra.mxu0 %v5105
      %5207 = vmatprep.subr.mxu0 0.0
      %5208 = vmatpush1.msra.mxu0 %v5106
      %5209 = vmatprep.subr.mxu0 0.0
      %5210 = vmatpush1.msra.mxu0 %v5107
      %5211 = vmatprep.subr.mxu0 0.0
      %5212 = vmatpush1.msra.mxu0 %v5108
      %5213 = vmatprep.subr.mxu0 0.0
      %5214 = vmatpush1.msra.mxu0 0.0
      %5215 = vmatprep.subr.mxu0 0.0
      %5216 = vmatpush1.msra.mxu0 0.0
      %5217 = vmatprep.subr.mxu0 0.0
      %5218 = vmatpush1.msra.mxu0 0.0
      %5219 = vmatprep.subr.mxu0 0.0
      %5220 = vmatpush1.msra.mxu0 0.0
      %5221 = vmatprep.subr.mxu0 0.0
      %5222 = vmatpush1.msra.mxu0 0.0
      %5223 = vmatprep.subr.mxu0 0.0
      %5224 = vmatpush1.msra.mxu0 0.0
      %5225 = vmatprep.subr.mxu0 0.0
      %5226 = vmatpush1.msra.mxu0 0.0
      %5227 = vmatprep.subr.mxu0 0.0
      %5228 = vmatpush1.msra.mxu0 0.0
      %5229 = vmatprep.subr.mxu0 0.0
      %5230 = vmatpush1.msra.mxu0 0.0
      %5231 = vmatprep.subr.mxu0 0.0
      %5232 = vmatpush1.msra.mxu0 0.0
      %5233 = vmatprep.subr.mxu0 0.0
      %5234 = vmatpush1.msra.mxu0 0.0
      %5235 = vmatprep.subr.mxu0 0.0
      %5236 = vmatpush1.msra.mxu0 0.0
      %5237 = vmatprep.subr.mxu0 0.0
      %5238 = vmatpush1.msra.mxu0 0.0
      %5239 = vmatprep.subr.mxu0 0.0
      %5240 = vmatpush1.msra.mxu0 0.0
      %5241 = vmatprep.subr.mxu0 0.0
      %5242 = vmatpush1.msra.mxu0 0.0
      %5243 = vmatprep.subr.mxu0 0.0
      %5244 = vmatpush1.msra.mxu0 0.0
      %5245 = vmatprep.subr.mxu0 0.0
      %5246 = vmatpush1.msra.mxu0 0.0
      %5247 = vmatprep.subr.mxu0 0.0
      %5248 = vmatpush1.msra.mxu0 0.0
      %5249 = vmatprep.subr.mxu0 0.0
      %5250 = vmatpush1.msra.mxu0 0.0
      %5251 = vmatprep.subr.mxu0 0.0
      %5252 = vmatpush1.msra.mxu0 0.0
      %5253 = vmatprep.subr.mxu0 0.0
      %5254 = vmatpush1.msra.mxu0 0.0
      %5255 = vmatprep.subr.mxu0 0.0
      %5256 = vmatpush1.msra.mxu0 0.0
      %5257 = vmatprep.subr.mxu0 0.0
      %5258 = vmatpush1.msra.mxu0 0.0
      %5259 = vmatprep.subr.mxu0 0.0
      %5260 = vmatpush1.msra.mxu0 0.0
      %5261 = vmatprep.subr.mxu0 0.0
      %5262 = vmatpush1.msra.mxu0 0.0
      %5263 = vmatprep.subr.mxu0 0.0
      %5264 = vmatpush1.msra.mxu0 0.0
      %5265 = vmatprep.subr.mxu0 0.0
      %5266 = vmatpush1.msra.mxu0 0.0
      %5267 = vmatprep.subr.mxu0 0.0
      %5268 = vmatpush1.msra.mxu0 0.0
      %5269 = vmatprep.mubr.f32.mxu0 0.0
      %5270 = vmatmul.mubr.f32.gmra.mrb[0].mxu0 %v5110
      %v5271 = vpop.f32.mrb[0].mxu0
      %v5272 = vadd.f32 0.0, %v5271
      %v5273 = vpop.f32.mrb[0].mxu0
      %5274 = vmatprep.mubr.f32.mxu0 0.0
      %5275 = vmatmul.mubr.f32.gmra.mrb[0].mxu0 %v5113
      %v5276 = vpop.f32.mrb[0].mxu0
      %v5277 = vadd.f32 0.0, %v5276
      %v5278 = vpop.f32.mrb[0].mxu0
      %5279 = vmatprep.mubr.f32.mxu0 0.0
      %5280 = vmatmul.mubr.f32.gmra.mrb[0].mxu0 %v5116
      %v5281 = vpop.f32.mrb[0].mxu0
      %v5282 = vadd.f32 0.0, %v5281
      %v5283 = vpop.f32.mrb[0].mxu0
      %5284 = vmatprep.mubr.f32.mxu0 0.0
      %5285 = vmatmul.mubr.f32.gmra.mrb[0].mxu0 %v5119
      %v5286 = vpop.f32.mrb[0].mxu0
      %v5287 = vadd.f32 0.0, %v5286
      %v5288 = vpop.f32.mrb[0].mxu0
      %5289 = vmatprep.mubr.f32.mxu0 0.0
      %5290 = vmatmul.mubr.f32.gmra.mrb[0].mxu0 %v5122
      %v5291 = vpop.f32.mrb[0].mxu0
      %v5292 = vadd.f32 0.0, %v5291
      %v5293 = vpop.f32.mrb[0].mxu0
      %5294 = vmatprep.mubr.f32.mxu0 0.0
      %5295 = vmatmul.mubr.f32.gmra.mrb[0].mxu0 %v5125
      %v5296 = vpop.f32.mrb[0].mxu0
      %v5297 = vadd.f32 0.0, %v5296
      %v5298 = vpop.f32.mrb[0].mxu0
      %5299 = vmatprep.mubr.f32.mxu0 0.0
      %5300 = vmatmul.mubr.f32.gmra.mrb[0].mxu0 %v5128
      %v5301 = vpop.f32.mrb[0].mxu0
      %v5302 = vadd.f32 0.0, %v5301
      %v5303 = vpop.f32.mrb[0].mxu0
      %5304 = vmatprep.mubr.f32.mxu0 0.0
      %5305 = vmatmul.mubr.f32.gmra.mrb[0].mxu0 %v5131
      %v5306 = vpop.f32.mrb[0].mxu0
      %v5307 = vadd.f32 0.0, %v5306
      %v5308 = vpop.f32.mrb[0].mxu0
      %5309 = vmatprep.mubr.f32.mxu0 0.0
      %5310 = vmatmul.mubr.f32.gmra.mrb[0].mxu0 %v5134
      %v5311 = vpop.f32.mrb[0].mxu0
      %v5312 = vadd.f32 0.0, %v5311
      %v5313 = vpop.f32.mrb[0].mxu0
      %5314 = vmatprep.mubr.f32.mxu0 0.0
      %5315 = vmatmul.mubr.f32.gmra.mrb[0].mxu0 %v5137
      %v5316 = vpop.f32.mrb[0].mxu0
      %v5317 = vadd.f32 0.0, %v5316
      %v5318 = vpop.f32.mrb[0].mxu0
      %5319 = vmatprep.mubr.f32.mxu0 0.0
      %5320 = vmatmul.mubr.f32.gmra.mrb[0].mxu0 %v5140
      %v5321 = vpop.f32.mrb[0].mxu0
      %v5322 = vadd.f32 0.0, %v5321
      %v5323 = vpop.f32.mrb[0].mxu0
      %5324 = vmatprep.mubr.f32.mxu0 0.0
      %5325 = vmatmul.mubr.f32.gmra.mrb[0].mxu0 %v5143
      %v5326 = vpop.f32.mrb[0].mxu0
      %v5327 = vadd.f32 0.0, %v5326
      %v5328 = vpop.f32.mrb[0].mxu0
      %5329 = vmatprep.mubr.f32.mxu0 0.0
      %5330 = vmatmul.mubr.f32.gmra.mrb[0].mxu0 %v5146
      %v5331 = vpop.f32.mrb[0].mxu0
      %v5332 = vadd.f32 0.0, %v5331
      %v5333 = vpop.f32.mrb[0].mxu0
      %5334 = vmatprep.mubr.f32.mxu0 0.0
      %5335 = vmatmul.mubr.f32.gmra.mrb[0].mxu0 %v5149
      %v5336 = vpop.f32.mrb[0].mxu0
      %v5337 = vadd.f32 0.0, %v5336
      %v5338 = vpop.f32.mrb[0].mxu0
      %5339 = vmatprep.mubr.f32.mxu0 0.0
      %5340 = vmatmul.mubr.f32.gmra.mrb[0].mxu0 %v5152
      %v5341 = vpop.f32.mrb[0].mxu0
      %v5342 = vadd.f32 0.0, %v5341
      %v5343 = vpop.f32.mrb[0].mxu0
      %5344 = vmatprep.mubr.f32.mxu0 0.0
      %5345 = vmatmul.mubr.f32.gmra.mrb[0].mxu0 %v5155
      %v5346 = vpop.f32.mrb[0].mxu0
      %v5347 = vadd.f32 0.0, %v5346
      %v5348 = vpop.f32.mrb[0].mxu0
      %5349 = vmatprep.mubr.f32.mxu0 0.0
      %5350 = vmatmul.mubr.f32.gmra.mrb[0].mxu0 %v5158
      %v5351 = vpop.f32.mrb[0].mxu0
      %v5352 = vadd.f32 0.0, %v5351
      %v5353 = vpop.f32.mrb[0].mxu0
      %5354 = vmatprep.mubr.f32.mxu0 0.0
      %5355 = vmatmul.mubr.f32.gmra.mrb[0].mxu0 %v5161
      %v5356 = vpop.f32.mrb[0].mxu0
      %v5357 = vadd.f32 0.0, %v5356
      %v5358 = vpop.f32.mrb[0].mxu0
      %5359 = vmatprep.mubr.f32.mxu0 0.0
      %5360 = vmatmul.mubr.f32.gmra.mrb[0].mxu0 %v5164
      %v5361 = vpop.f32.mrb[0].mxu0
      %v5362 = vadd.f32 0.0, %v5361
      %v5363 = vpop.f32.mrb[0].mxu0
      %5364 = vmatprep.mubr.f32.mxu0 0.0
      %5365 = vmatmul.mubr.f32.gmra.mrb[0].mxu0 %v5167
      %v5366 = vpop.f32.mrb[0].mxu0
      %v5367 = vadd.f32 0.0, %v5366
      %v5368 = vpop.f32.mrb[0].mxu0
      %5369 = vmatprep.mubr.f32.mxu0 0.0
      %5370 = vmatmul.mubr.f32.gmra.mrb[0].mxu0 %v5170
      %v5371 = vpop.f32.mrb[0].mxu0
      %v5372 = vadd.f32 0.0, %v5371
      %v5373 = vpop.f32.mrb[0].mxu0
      %5374 = vmatprep.mubr.f32.mxu0 0.0
      %5375 = vmatmul.mubr.f32.gmra.mrb[0].mxu0 %v5173
      %v5376 = vpop.f32.mrb[0].mxu0
      %v5377 = vadd.f32 0.0, %v5376
      %v5378 = vpop.f32.mrb[0].mxu0
      %5379 = vmatprep.mubr.f32.mxu0 0.0
      %5380 = vmatmul.mubr.f32.gmra.mrb[0].mxu0 %v5176
      %v5381 = vpop.f32.mrb[0].mxu0
      %v5382 = vadd.f32 0.0, %v5381
      %v5383 = vpop.f32.mrb[0].mxu0
      %5384 = vmatprep.mubr.f32.mxu0 0.0
      %5385 = vmatmul.mubr.f32.gmra.mrb[0].mxu0 %v5179
      %v5386 = vpop.f32.mrb[0].mxu0
      %v5387 = vadd.f32 0.0, %v5386
      %v5388 = vpop.f32.mrb[0].mxu0
      %5389 = vmatprep.mubr.f32.mxu0 0.0
      %5390 = vmatmul.mubr.f32.gmra.mrb[0].mxu0 %v5182
      %v5391 = vpop.f32.mrb[0].mxu0
      %v5392 = vadd.f32 0.0, %v5391
      %v5393 = vpop.f32.mrb[0].mxu0
      %5394 = vmatprep.mubr.f32.mxu0 0.0
      %5395 = vmatmul.mubr.f32.gmra.mrb[0].mxu0 %v5185
      %v5396 = vpop.f32.mrb[0].mxu0
      %v5397 = vadd.f32 0.0, %v5396
      %v5398 = vpop.f32.mrb[0].mxu0
      %5399 = vmatprep.mubr.f32.mxu0 0.0
      %5400 = vmatmul.mubr.f32.gmra.mrb[0].mxu0 %v5188
      %v5401 = vpop.f32.mrb[0].mxu0
      %v5402 = vadd.f32 0.0, %v5401
      %v5403 = vpop.f32.mrb[0].mxu0
      %5404 = vmatprep.mubr.f32.mxu0 0.0
      %5405 = vmatmul.mubr.f32.gmra.mrb[0].mxu0 %v5191
      %v5406 = vpop.f32.mrb[0].mxu0
      %v5407 = vadd.f32 0.0, %v5406
      %v5408 = vpop.f32.mrb[0].mxu0
      %5409 = vmatprep.mubr.f32.mxu0 0.0
      %5410 = vmatmul.mubr.f32.gmra.mrb[0].mxu0 %v5194
      %v5411 = vpop.f32.mrb[0].mxu0
      %v5412 = vadd.f32 0.0, %v5411
      %v5413 = vpop.f32.mrb[0].mxu0
      %5414 = vmatprep.mubr.f32.mxu0 0.0
      %5415 = vmatmul.mubr.f32.gmra.mrb[0].mxu0 %v5197
      %v5416 = vpop.f32.mrb[0].mxu0
      %v5417 = vadd.f32 0.0, %v5416
      %v5418 = vpop.f32.mrb[0].mxu0
      %5419 = vmatprep.mubr.f32.mxu0 0.0
      %5420 = vmatmul.mubr.f32.gmra.mrb[0].mxu0 %v5200
      %v5421 = vpop.f32.mrb[0].mxu0
      %v5422 = vadd.f32 0.0, %v5421
      %v5423 = vpop.f32.mrb[0].mxu0
      %5424 = vmatprep.mubr.f32.mxu0 0.0
      %5425 = vmatmul.mubr.f32.gmra.mrb[0].mxu0 %v5203
      %v5426 = vpop.f32.mrb[0].mxu0
      %v5427 = vadd.f32 0.0, %v5426
      %v5428 = vpop.f32.mrb[0].mxu0
      %5429 = vdwg.mxu0
      %v5430 = vadd.f32 %v5072, %v5272
      %v5431 = vadd.f32 %v5073, %v5277
      %v5432 = vadd.f32 %v5074, %v5282
      %v5433 = vadd.f32 %v5075, %v5287
      %v5434 = vadd.f32 %v5076, %v5292
      %v5435 = vadd.f32 %v5077, %v5297
      %v5436 = vadd.f32 %v5078, %v5302
      %v5437 = vadd.f32 %v5079, %v5307
      %v5438 = vadd.f32 %v5080, %v5312
      %v5439 = vadd.f32 %v5081, %v5317
      %v5440 = vadd.f32 %v5082, %v5322
      %v5441 = vadd.f32 %v5083, %v5327
      %v5442 = vadd.f32 %v5084, %v5332
      %v5443 = vadd.f32 %v5085, %v5337
      %v5444 = vadd.f32 %v5086, %v5342
      %v5445 = vadd.f32 %v5087, %v5347
      %v5446 = vadd.f32 %v5088, %v5352
      %v5447 = vadd.f32 %v5089, %v5357
      %v5448 = vadd.f32 %v5090, %v5362
      %v5449 = vadd.f32 %v5091, %v5367
      %v5450 = vadd.f32 %v5092, %v5372
      %v5451 = vadd.f32 %v5093, %v5377
      %v5452 = vadd.f32 %v5094, %v5382
      %v5453 = vadd.f32 %v5095, %v5387
      %v5454 = vadd.f32 %v5096, %v5392
      %v5455 = vadd.f32 %v5097, %v5397
      %v5456 = vadd.f32 %v5098, %v5402
      %v5457 = vadd.f32 %v5099, %v5407
      %v5458 = vadd.f32 %v5100, %v5412
      %v5459 = vadd.f32 %v5101, %v5417
      %v5460 = vadd.f32 %v5102, %v5422
      %v5461 = vadd.f32 %v5103, %v5427
      %v5462 = vadd.f32 %v5430, %v1834
      %v5463 = vadd.f32 %v5431, %v1834
      %v5464 = vadd.f32 %v5432, %v1834
      %v5465 = vadd.f32 %v5433, %v1834
      %v5466 = vadd.f32 %v5434, %v1834
      %v5467 = vadd.f32 %v5435, %v1834
      %v5468 = vadd.f32 %v5436, %v1834
      %v5469 = vadd.f32 %v5437, %v1834
      %v5470 = vadd.f32 %v5438, %v1834
      %v5471 = vadd.f32 %v5439, %v1834
      %v5472 = vadd.f32 %v5440, %v1834
      %v5473 = vadd.f32 %v5441, %v1834
      %v5474 = vadd.f32 %v5442, %v1834
      %v5475 = vadd.f32 %v5443, %v1834
      %v5476 = vadd.f32 %v5444, %v1834
      %v5477 = vadd.f32 %v5445, %v1834
      %v5478 = vadd.f32 %v5446, %v1834
      %v5479 = vadd.f32 %v5447, %v1834
      %v5480 = vadd.f32 %v5448, %v1834
      %v5481 = vadd.f32 %v5449, %v1834
      %v5482 = vadd.f32 %v5450, %v1834
      %v5483 = vadd.f32 %v5451, %v1834
      %v5484 = vadd.f32 %v5452, %v1834
      %v5485 = vadd.f32 %v5453, %v1834
      %v5486 = vadd.f32 %v5454, %v1834
      %v5487 = vadd.f32 %v5455, %v1834
      %v5488 = vadd.f32 %v5456, %v1834
      %v5489 = vadd.f32 %v5457, %v1834
      %v5490 = vadd.f32 %v5458, %v1834
      %v5491 = vadd.f32 %v5459, %v1834
      %v5492 = vadd.f32 %v5460, %v1834
      %v5493 = vadd.f32 %v5461, %v1834
      %s5494 = scalar_lea.vmem %s170, 768
      %5495 = vst.msk [vmem:[%s5494] sm:$0xff] %vm471, %v5462
      %5496 = vst.msk [vmem:[%s5494 + $0x8] sm:$0xff] %vm471, %v5463
      %5497 = vst.msk [vmem:[%s5494 + $0x10] sm:$0xff] %vm471, %v5464
      %5498 = vst.msk [vmem:[%s5494 + $0x18] sm:$0xff] %vm471, %v5465
      %5499 = vst.msk [vmem:[%s5494 + $0x20] sm:$0xff] %vm471, %v5466
      %5500 = vst.msk [vmem:[%s5494 + $0x28] sm:$0xff] %vm471, %v5467
      %5501 = vst.msk [vmem:[%s5494 + $0x30] sm:$0xff] %vm471, %v5468
      %5502 = vst.msk [vmem:[%s5494 + $0x38] sm:$0xff] %vm471, %v5469
      %5503 = vst.msk [vmem:[%s5494 + $0x40] sm:$0xff] %vm471, %v5470
      %5504 = vst.msk [vmem:[%s5494 + $0x48] sm:$0xff] %vm471, %v5471
      %5505 = vst.msk [vmem:[%s5494 + $0x50] sm:$0xff] %vm471, %v5472
      %5506 = vst.msk [vmem:[%s5494 + $0x58] sm:$0xff] %vm471, %v5473
      %5507 = vst.msk [vmem:[%s5494 + $0x60] sm:$0xff] %vm471, %v5474
      %5508 = vst.msk [vmem:[%s5494 + $0x68] sm:$0xff] %vm471, %v5475
      %5509 = vst.msk [vmem:[%s5494 + $0x70] sm:$0xff] %vm471, %v5476
      %5510 = vst.msk [vmem:[%s5494 + $0x78] sm:$0xff] %vm471, %v5477
      %5511 = vst.msk [vmem:[%s5494 + $0x80] sm:$0xff] %vm471, %v5478
      %5512 = vst.msk [vmem:[%s5494 + $0x88] sm:$0xff] %vm471, %v5479
      %5513 = vst.msk [vmem:[%s5494 + $0x90] sm:$0xff] %vm471, %v5480
      %5514 = vst.msk [vmem:[%s5494 + $0x98] sm:$0xff] %vm471, %v5481
      %5515 = vst.msk [vmem:[%s5494 + $0xa0] sm:$0xff] %vm471, %v5482
      %5516 = vst.msk [vmem:[%s5494 + $0xa8] sm:$0xff] %vm471, %v5483
      %5517 = vst.msk [vmem:[%s5494 + $0xb0] sm:$0xff] %vm471, %v5484
      %5518 = vst.msk [vmem:[%s5494 + $0xb8] sm:$0xff] %vm471, %v5485
      %5519 = vst.msk [vmem:[%s5494 + $0xc0] sm:$0xff] %vm471, %v5486
      %5520 = vst.msk [vmem:[%s5494 + $0xc8] sm:$0xff] %vm471, %v5487
      %5521 = vst.msk [vmem:[%s5494 + $0xd0] sm:$0xff] %vm471, %v5488
      %5522 = vst.msk [vmem:[%s5494 + $0xd8] sm:$0xff] %vm471, %v5489
      %5523 = vst.msk [vmem:[%s5494 + $0xe0] sm:$0xff] %vm471, %v5490
      %5524 = vst.msk [vmem:[%s5494 + $0xe8] sm:$0xff] %vm471, %v5491
      %5525 = vst.msk [vmem:[%s5494 + $0xf0] sm:$0xff] %vm471, %v5492
      %5526 = vst.msk [vmem:[%s5494 + $0xf8] sm:$0xff] %vm471, %v5493
      %p5527 = scmp.lt.s32.totalorder %s14, 1
      %s5528 = scalar_select %p5527, %s14, 1
      %s5529 = smul.addr %s5528, 128
      %s5530 = smul.addr %s5529, 8
      %s5531 = scalar_lea.vmem %s3, %s5530
      // Predicated region
      $region33: #{upsample_conv2x.1} parent=31 // pred_check
        %p5532 = pneg %p100
      $region34: #{upsample_conv2x.1} parent=31 // pred_check_branch
        %5534 = sbr.rel (%p5532) target = $region36
      $region35: #{upsample_conv2x.1} parent=31 // pred_region
        _
      $region36: #{upsample_conv2x.1} parent=31 // pred_fallthru
        _
    $region32: #{upsample_conv2x.1} parent=5 // pred_fallthru
      _
    %p5535 = scmp.le.s32.totalorder 2, %s9
    // Predicated region
    $region37: #{upsample_conv2x.1} parent=5 // pred_check
      %p5536 = pneg %p5535
    $region38: #{upsample_conv2x.1} parent=5 // pred_check_branch
      %5538 = sbr.rel (%p5536) target = $region40
    $region39: #{upsample_conv2x.1} parent=5 // pred_region
      %s5539 = ssub.s32 %s9, 2
      // Predicated region
      $region41: #{upsample_conv2x.1} parent=39 // pred_check
        %p5540 = pneg %p106
      $region42: #{upsample_conv2x.1} parent=39 // pred_check_branch
        %5542 = sbr.rel (%p5540) target = $region44
      $region43: #{upsample_conv2x.1} parent=39 // pred_region
        %p5543 = scmp.lt.s32.totalorder %s15, 1
        %s5544 = scalar_select %p5543, %s15, 1
        %s5545 = smul.addr %s5544, 128
        %s5546 = smul.addr %s5545, 8
        %s5547 = scalar_lea.vmem %s3, %s5546
      $region44: #{upsample_conv2x.1} parent=39 // pred_fallthru
        _
    $region40: #{upsample_conv2x.1} parent=5 // pred_fallthru
      _
  $region6: #{upsample_conv2x.1} parent=0 // loop_footer
    %s13 = sadd.s32 1, %s9
  $region7: #{upsample_conv2x.1} parent=0 // loop_footer_branch
    %8 = sbr.rel target = $region3
  $region8: #{upsample_conv2x.1} parent=0 // loop_exit
    _

</llo_original>
